<compile_context>
chip_gen: v7x
topology: tpu7x:2x2x1
jax: 0.10.0
libtpu: 0.0.40
codegen_flags: <defaults>
</compile_context>

<pallas_src>
import math

import jax
import jax.numpy as jnp
from jax import lax
from jax.experimental import pallas as pl
from jax.experimental.pallas import tpu as pltpu

LOG2 = math.log(2.0)
LANE = 128


def _rup(x, m):
    return ((x + m - 1) // m) * m


def _shifted_softplus(x):
    # softplus(x) - log(2), numerically stable; maps 0 -> 0 (keeps padding clean).
    # (log1p would be marginally more accurate but the absolute error of this
    #  form is bounded by ~1e-7 here and log1p lowering support is not needed.)
    return jnp.maximum(x, 0.0) + jnp.log(1.0 + jnp.exp(-jnp.abs(x))) - LOG2


def schnet_kernel(h0_ref, src_ref, dst_ref, cmask_ref, ea_ref,
                  nn_w1_ref, nn_b1_ref, nn_w2_ref, nn_b2_ref,
                  lin1_w_ref, lin2_w_ref, lin2_b_ref, lin_w_ref, lin_b_ref,
                  out_ref, h_sc, gather_sc, scatter_sc):
    f32, bf16 = jnp.float32, jnp.bfloat16
    l = pl.program_id(1)
    n_layers = pl.num_programs(1)
    N = h_sc.shape[0]          # padded nodes per block
    E = gather_sc.shape[0]     # padded edges per block

    # --- per-block init (layer 0): residual stream + one-hot gather/scatter ---
    # Padded node rows carry garbage biases through the layers; they are never
    # referenced by real edges (src/dst < NB) and are sliced away in the wrapper.
    @pl.when(l == 0)
    def _():
        h_sc[...] = h0_ref[...]
        src = src_ref[...]                               # (E, 1) i32, source (x_j gather)
        dst = dst_ref[...]                               # (1, E) i32, target (scatter-add)
        gather_sc[...] = (lax.broadcasted_iota(jnp.int32, (E, N), 1) == src).astype(f32)
        scatter_sc[...] = (lax.broadcasted_iota(jnp.int32, (N, E), 0) == dst).astype(f32)

    def mmw(a, b):   # genuine weight matmul: bf16 MXU inputs, f32 accumulation
        return jnp.dot(a.astype(bf16), b.astype(bf16), preferred_element_type=f32)

    def mmp(a, b):   # permutation / scatter-add matmul (pure data movement): f32
        return jnp.dot(a, b, preferred_element_type=f32)

    h = h_sc[...]                                        # (N, Hp) f32
    C = cmask_ref[...]                                   # (E, 1) hard-cutoff mask (0 on pads)

    # CFConv filter network: W = nn(edge_attr) * C
    w = _shifted_softplus(mmw(ea_ref[...], nn_w1_ref[...]) + nn_b1_ref[...])
    w = mmw(w, nn_w2_ref[...]) + nn_b2_ref[...]
    w = w * C                                            # (E, Fp)

    # CFConv: lin1 -> gather x_j -> message -> scatter-add -> lin2
    xf = mmw(h, lin1_w_ref[...])                         # (N, Fp), lin1 has no bias
    xj = mmp(gather_sc[...], xf)                         # (E, Fp) gather x_j (lane-major LHS)
    msg = xj * w                                         # message()
    agg = mmp(scatter_sc[...], msg)                      # (N, Fp) scatter-add (lane-major LHS)
    xc = mmw(agg, lin2_w_ref[...]) + lin2_b_ref[...]     # (N, Hp)

    # InteractionBlock: act + lin, residual add in the encoder
    xi = mmw(_shifted_softplus(xc), lin_w_ref[...]) + lin_b_ref[...]
    h_new = h + xi
    h_sc[...] = h_new

    @pl.when(l == n_layers - 1)
    def _():
        out_ref[...] = h_new


def schnet_forward(z, edge_index, edge_length, edge_attr, params, *,
                   input_dim, cutoff):
    """z:(B,NB,input_dim+H)  edge_index:(B,EB,2) block-local node ids
    edge_length:(B,EB,1)  edge_attr:(B,EB,ECH).  Blocks are disjoint graphs."""
    f32, bf16 = jnp.float32, jnp.bfloat16
    B, NB, _ = z.shape
    EB = edge_index.shape[1]
    H = params["emb_w"].shape[1]
    F_ = params["lin1_w"].shape[2]
    ECH = edge_attr.shape[2]
    L = params["lin1_w"].shape[0]

    NBp = max(_rup(NB, 8), 8)
    EBp = max(_rup(EB, 8), 8)
    Hp, Fp, ECHp = _rup(H, LANE), _rup(F_, LANE), _rup(ECH, LANE)

    # --- tiny (K=input_dim) embedding matmul stays in plain XLA ---
    h0 = z[..., :input_dim] @ params["emb_w"] + params["emb_b"] + z[..., input_dim:]
    h0p = jnp.zeros((B, NBp, Hp), f32).at[:, :NB, :H].set(h0.astype(f32))

    # --- edge metadata; padded edges point at node NBp (match nothing), mask 0 ---
    src = jnp.full((B, EBp, 1), NBp, jnp.int32).at[:, :EB, 0].set(
        edge_index[..., 0].astype(jnp.int32))
    dst = jnp.full((B, 1, EBp), NBp, jnp.int32).at[:, 0, :EB].set(
        edge_index[..., 1].astype(jnp.int32))
    cmask = jnp.zeros((B, EBp, 1), f32).at[:, :EB, :].set(
        (edge_length <= cutoff).astype(f32))
    eap = jnp.zeros((B, EBp, ECHp), f32).at[:, :EB, :ECH].set(edge_attr.astype(f32))

    def pad3(a, r, c, dtype):
        out = jnp.zeros((a.shape[0], r, c), dtype)
        return out.at[:, :a.shape[1], :a.shape[2]].set(a.astype(dtype))

    inputs = [
        h0p, src, dst, cmask, eap,
        pad3(params["nn_w1"], ECHp, Fp, bf16),
        pad3(params["nn_b1"], 1, Fp, f32),
        pad3(params["nn_w2"], Fp, Fp, bf16),
        pad3(params["nn_b2"], 1, Fp, f32),
        pad3(params["lin1_w"], Hp, Fp, bf16),
        pad3(params["lin2_w"], Fp, Hp, bf16),
        pad3(params["lin2_b"], 1, Hp, f32),
        pad3(params["lin_w"], Hp, Hp, bf16),
        pad3(params["lin_b"], 1, Hp, f32),
    ]

    def block_spec(shape):    # per-molecule-block data, resident across the layer axis
        return pl.BlockSpec((None,) + shape, lambda b, l: (b, 0, 0))

    def layer_spec(shape):    # per-layer weights, streamed/double-buffered along l
        return pl.BlockSpec((None,) + shape, lambda b, l: (l, 0, 0))

    in_specs = [
        block_spec((NBp, Hp)),      # h0
        block_spec((EBp, 1)),       # src
        block_spec((1, EBp)),       # dst
        block_spec((EBp, 1)),       # cutoff mask
        block_spec((EBp, ECHp)),    # edge_attr
        layer_spec((ECHp, Fp)),     # nn_w1
        layer_spec((1, Fp)),        # nn_b1
        layer_spec((Fp, Fp)),       # nn_w2
        layer_spec((1, Fp)),        # nn_b2
        layer_spec((Hp, Fp)),       # lin1_w
        layer_spec((Fp, Hp)),       # lin2_w
        layer_spec((1, Hp)),        # lin2_b
        layer_spec((Hp, Hp)),       # lin_w
        layer_spec((1, Hp)),        # lin_b
    ]

    out_pad = pl.pallas_call(
        schnet_kernel,
        grid=(B, L),
        in_specs=in_specs,
        out_specs=pl.BlockSpec((None, NBp, Hp), lambda b, l: (b, 0, 0)),
        out_shape=jax.ShapeDtypeStruct((B, NBp, Hp), f32),
        scratch_shapes=[
            pltpu.VMEM((NBp, Hp), f32),    # residual stream h (resident across l)
            pltpu.VMEM((EBp, NBp), f32),   # gather one-hot (built once per block)
            pltpu.VMEM((NBp, EBp), f32),   # scatter one-hot (built once per block)
        ],
        compiler_params=pltpu.CompilerParams(
            dimension_semantics=("parallel", "arbitrary"),
            vmem_limit_bytes=32 * 1024 * 1024),
    )(*inputs)
    return out_pad[:, :NB, :H]


# -------------------- pure-JAX reference (flat disjoint graph) ---------------
def schnet_ref(z, edge_index, edge_length, edge_attr, params, *, input_dim, cutoff):
    B, NB, _ = z.shape
    EB = edge_index.shape[1]
    z_flat = z.reshape(B * NB, -1)
    off = (jnp.arange(B, dtype=jnp.int32) * NB)[:, None]
    src = (edge_index[..., 0] + off).reshape(-1)
    dst = (edge_index[..., 1] + off).reshape(-1)
    el = edge_length.reshape(-1, 1)
    ea = edge_attr.reshape(B * EB, -1)

    h = z_flat[:, :input_dim] @ params["emb_w"] + params["emb_b"] + z_flat[:, input_dim:]
    C = (el <= cutoff).astype(jnp.float32)
    L = params["lin1_w"].shape[0]
    for l in range(L):
        w = _shifted_softplus(ea @ params["nn_w1"][l] + params["nn_b1"][l])
        w = w @ params["nn_w2"][l] + params["nn_b2"][l]
        w = w * C
        xf = h @ params["lin1_w"][l]
        msg = xf[src] * w
        agg = jnp.zeros_like(xf).at[dst].add(msg)
        xc = agg @ params["lin2_w"][l] + params["lin2_b"][l]
        xi = _shifted_softplus(xc) @ params["lin_w"][l] + params["lin_b"][l]
        h = h + xi
    return h.reshape(B, NB, -1)


# ---------------------------------- main -------------------------------------
if __name__ == "__main__":
    # Pack 16 small molecules (16 nodes / 32 edges each) into B=2 disjoint
    # blocks of 8 molecules, so matmul row dims reach 128 (nodes) / 256 (edges).
    B, MOLS_PER_BLOCK = 2, 8
    N_MOL, E_MOL = 16, 32
    NB, EB = MOLS_PER_BLOCK * N_MOL, MOLS_PER_BLOCK * E_MOL   # 128 nodes, 256 edges per block
    H, F = 32, 32                # hidden_channels, num_filters
    ECH = 16                     # edge_channels (num_gaussians)
    INPUT_DIM = 4
    L = 3                        # num_interactions
    CUTOFF = 10.0

    key = jax.random.PRNGKey(0)
    ks = jax.random.split(key, 20)

    z = jax.random.normal(ks[0], (B, NB, INPUT_DIM + H), dtype=jnp.float32)
    # edges stay inside their molecule -> block-local node ids in [0, NB)
    mol_of_edge = jnp.repeat(jnp.arange(MOLS_PER_BLOCK, dtype=jnp.int32), E_MOL)
    local = jax.random.randint(ks[1], (B, EB, 2), 0, N_MOL, dtype=jnp.int32)
    edge_index = local + (mol_of_edge * N_MOL)[None, :, None]
    edge_length = jax.random.uniform(ks[2], (B, EB, 1), dtype=jnp.float32,
                                     minval=0.0, maxval=1.2 * CUTOFF)
    edge_attr = jax.random.normal(ks[3], (B, EB, ECH), dtype=jnp.float32)

    def w_init(k, shape, fan_in):
        return jax.random.normal(k, shape, dtype=jnp.float32) / math.sqrt(fan_in)

    params = {
        "emb_w":  w_init(ks[4], (INPUT_DIM, H), INPUT_DIM),
        "emb_b":  0.1 * jax.random.normal(ks[5], (1, H), dtype=jnp.float32),
        "nn_w1":  w_init(ks[6], (L, ECH, F), ECH),
        "nn_b1":  0.1 * jax.random.normal(ks[7], (L, 1, F), dtype=jnp.float32),
        "nn_w2":  w_init(ks[8], (L, F, F), F),
        "nn_b2":  0.1 * jax.random.normal(ks[9], (L, 1, F), dtype=jnp.float32),
        "lin1_w": w_init(ks[10], (L, H, F), H),          # lin1 has no bias
        "lin2_w": w_init(ks[11], (L, F, H), F),
        "lin2_b": 0.1 * jax.random.normal(ks[12], (L, 1, H), dtype=jnp.float32),
        "lin_w":  w_init(ks[13], (L, H, H), H),
        "lin_b":  0.1 * jax.random.normal(ks[14], (L, 1, H), dtype=jnp.float32),
    }

    out = schnet_forward(z, edge_index, edge_length, edge_attr, params,
                         input_dim=INPUT_DIM, cutoff=CUTOFF)
    out = jax.block_until_ready(out)

    ref = schnet_ref(z, edge_index, edge_length, edge_attr, params,
                     input_dim=INPUT_DIM, cutoff=CUTOFF)
    ref = jax.block_until_ready(ref)

    assert out.shape == (B, NB, H) and out.dtype == jnp.float32
    # bf16 weight matmuls (f32 accumulation, f32 gather/scatter & residual) vs
    # a pure-f32 reference: validate with loosened tolerances.
    if not jnp.allclose(out, ref, rtol=5e-2, atol=5e-2):
        err = float(jnp.max(jnp.abs(out - ref)))
        raise AssertionError(f"Pallas kernel output mismatch vs JAX reference (max abs err {err})")

    print("KERNEL_OK")
</pallas_src>

<mosaic_0001>
module attributes {stable_mosaic.version = 11 : i64} {
  func.func @schnet_kernel(%arg0: i32, %arg1: i32, %arg2: memref<1x128x128xf32, #tpu.memory_space<vmem>>, %arg3: memref<1x256x1xi32, #tpu.memory_space<vmem>>, %arg4: memref<1x1x256xi32, #tpu.memory_space<vmem>>, %arg5: memref<1x256x1xf32, #tpu.memory_space<vmem>>, %arg6: memref<1x256x128xf32, #tpu.memory_space<vmem>>, %arg7: memref<1x128x128xbf16, #tpu.memory_space<vmem>>, %arg8: memref<1x1x128xf32, #tpu.memory_space<vmem>>, %arg9: memref<1x128x128xbf16, #tpu.memory_space<vmem>>, %arg10: memref<1x1x128xf32, #tpu.memory_space<vmem>>, %arg11: memref<1x128x128xbf16, #tpu.memory_space<vmem>>, %arg12: memref<1x128x128xbf16, #tpu.memory_space<vmem>>, %arg13: memref<1x1x128xf32, #tpu.memory_space<vmem>>, %arg14: memref<1x128x128xbf16, #tpu.memory_space<vmem>>, %arg15: memref<1x1x128xf32, #tpu.memory_space<vmem>>, %arg16: memref<1x128x128xf32, #tpu.memory_space<vmem>>, %arg17: memref<128x128xf32, #tpu.memory_space<vmem>>, %arg18: memref<256x128xf32, #tpu.memory_space<vmem>>, %arg19: memref<128x256xf32, #tpu.memory_space<vmem>>) attributes {dimension_semantics = [#tpu.dimension_semantics<parallel>, #tpu.dimension_semantics<arbitrary>], iteration_bounds = array<i64: 2, 3>, scalar_prefetch = 0 : i64, scratch_operands = 3 : i64, tpu.core_type = #tpu.core_type<tc>, window_params = [{transform_indices = @transform_0, window_bounds = array<i64: 1, 128, 128>}, {transform_indices = @transform_1, window_bounds = array<i64: 1, 256, 1>}, {transform_indices = @transform_2, window_bounds = array<i64: 1, 1, 256>}, {transform_indices = @transform_3, window_bounds = array<i64: 1, 256, 1>}, {transform_indices = @transform_4, window_bounds = array<i64: 1, 256, 128>}, {transform_indices = @transform_5, window_bounds = array<i64: 1, 128, 128>}, {transform_indices = @transform_6, window_bounds = array<i64: 1, 1, 128>}, {transform_indices = @transform_7, window_bounds = array<i64: 1, 128, 128>}, {transform_indices = @transform_8, window_bounds = array<i64: 1, 1, 128>}, {transform_indices = @transform_9, window_bounds = array<i64: 1, 128, 128>}, {transform_indices = @transform_10, window_bounds = array<i64: 1, 128, 128>}, {transform_indices = @transform_11, window_bounds = array<i64: 1, 1, 128>}, {transform_indices = @transform_12, window_bounds = array<i64: 1, 128, 128>}, {transform_indices = @transform_13, window_bounds = array<i64: 1, 1, 128>}, {transform_indices = @transform_14, window_bounds = array<i64: 1, 128, 128>}]} {
    %c0_i32 = arith.constant 0 : i32
    %0 = arith.cmpi eq, %arg1, %c0_i32 : i32
    %1 = arith.extui %0 : i1 to i32
    %c0_i32_0 = arith.constant 0 : i32
    %2 = arith.cmpi ne, %1, %c0_i32_0 : i32
    scf.if %2 {
      %c0_56 = arith.constant 0 : index
      %c0_57 = arith.constant 0 : index
      %c0_58 = arith.constant 0 : index
      %80 = vector.load %arg2[%c0_56, %c0_57, %c0_58] : memref<1x128x128xf32, #tpu.memory_space<vmem>>, vector<1x128x128xf32>
      %81 = vector.shape_cast %80 : vector<1x128x128xf32> to vector<128x128xf32>
      %c0_59 = arith.constant 0 : index
      %c0_60 = arith.constant 0 : index
      %82 = vector.load %arg17[%c0_59, %c0_60] : memref<128x128xf32, #tpu.memory_space<vmem>>, vector<128x128xf32>
      tpu.vector_store %arg17[%c0_59, %c0_60], %81 {strides = array<i32>} : memref<128x128xf32, #tpu.memory_space<vmem>>, vector<128x128xf32>,
      %c0_61 = arith.constant 0 : index
      %c0_62 = arith.constant 0 : index
      %c0_63 = arith.constant 0 : index
      %83 = vector.load %arg3[%c0_61, %c0_62, %c0_63] : memref<1x256x1xi32, #tpu.memory_space<vmem>>, vector<1x256x1xi32>
      %84 = vector.shape_cast %83 : vector<1x256x1xi32> to vector<256x1xi32>
      %c0_64 = arith.constant 0 : index
      %c0_65 = arith.constant 0 : index
      %c0_66 = arith.constant 0 : index
      %85 = vector.load %arg4[%c0_64, %c0_65, %c0_66] : memref<1x1x256xi32, #tpu.memory_space<vmem>>, vector<1x1x256xi32>
      %86 = vector.shape_cast %85 : vector<1x1x256xi32> to vector<1x256xi32>
      %87 = tpu.iota {dimensions = array<i32: 1>} : vector<256x128xi32>
      %88 = vector.broadcast %84 : vector<256x1xi32> to vector<256x128xi32>
      %89 = arith.cmpi eq, %87, %88 : vector<256x128xi32>
      %90 = arith.extui %89 : vector<256x128xi1> to vector<256x128xi32>
      %91 = arith.sitofp %90 : vector<256x128xi32> to vector<256x128xf32>
      %c0_67 = arith.constant 0 : index
      %c0_68 = arith.constant 0 : index
      %92 = vector.load %arg18[%c0_67, %c0_68] : memref<256x128xf32, #tpu.memory_space<vmem>>, vector<256x128xf32>
      tpu.vector_store %arg18[%c0_67, %c0_68], %91 {strides = array<i32>} : memref<256x128xf32, #tpu.memory_space<vmem>>, vector<256x128xf32>,
      %93 = tpu.iota {dimensions = array<i32: 0>} : vector<128x256xi32>
      %94 = vector.broadcast %86 : vector<1x256xi32> to vector<128x256xi32>
      %95 = arith.cmpi eq, %93, %94 : vector<128x256xi32>
      %96 = arith.extui %95 : vector<128x256xi1> to vector<128x256xi32>
      %97 = arith.sitofp %96 : vector<128x256xi32> to vector<128x256xf32>
      %c0_69 = arith.constant 0 : index
      %c0_70 = arith.constant 0 : index
      %98 = vector.load %arg19[%c0_69, %c0_70] : memref<128x256xf32, #tpu.memory_space<vmem>>, vector<128x256xf32>
      tpu.vector_store %arg19[%c0_69, %c0_70], %97 {strides = array<i32>} : memref<128x256xf32, #tpu.memory_space<vmem>>, vector<128x256xf32>,
    } else {
    }
    %c0 = arith.constant 0 : index
    %c0_1 = arith.constant 0 : index
    %3 = vector.load %arg17[%c0, %c0_1] : memref<128x128xf32, #tpu.memory_space<vmem>>, vector<128x128xf32>
    %c0_2 = arith.constant 0 : index
    %c0_3 = arith.constant 0 : index
    %c0_4 = arith.constant 0 : index
    %4 = vector.load %arg5[%c0_2, %c0_3, %c0_4] : memref<1x256x1xf32, #tpu.memory_space<vmem>>, vector<1x256x1xf32>
    %5 = vector.shape_cast %4 : vector<1x256x1xf32> to vector<256x1xf32>
    %c0_5 = arith.constant 0 : index
    %c0_6 = arith.constant 0 : index
    %c0_7 = arith.constant 0 : index
    %6 = vector.load %arg6[%c0_5, %c0_6, %c0_7] : memref<1x256x128xf32, #tpu.memory_space<vmem>>, vector<1x256x128xf32>
    %7 = vector.shape_cast %6 : vector<1x256x128xf32> to vector<256x128xf32>
    %c0_8 = arith.constant 0 : index
    %c0_9 = arith.constant 0 : index
    %c0_10 = arith.constant 0 : index
    %8 = vector.load %arg7[%c0_8, %c0_9, %c0_10] : memref<1x128x128xbf16, #tpu.memory_space<vmem>>, vector<1x128x128xbf16>
    %9 = vector.shape_cast %8 : vector<1x128x128xbf16> to vector<128x128xbf16>
    %10 = arith.truncf %7 : vector<256x128xf32> to vector<256x128xbf16>
    %cst = arith.constant dense<0.000000e+00> : vector<256x128xf32>
    %11 = tpu.matmul %10, %9, %cst {dimension_numbers = #tpu.dot_dimension_numbers<[1], [0], [0], [1], [0, 0, 1, 1], [], []>} : vector<256x128xbf16>, vector<128x128xbf16>, vector<256x128xf32> -> vector<256x128xf32>
    %c0_11 = arith.constant 0 : index
    %c0_12 = arith.constant 0 : index
    %c0_13 = arith.constant 0 : index
    %12 = vector.load %arg8[%c0_11, %c0_12, %c0_13] : memref<1x1x128xf32, #tpu.memory_space<vmem>>, vector<1x1x128xf32>
    %13 = vector.shape_cast %12 : vector<1x1x128xf32> to vector<1x128xf32>
    %14 = vector.broadcast %13 : vector<1x128xf32> to vector<256x128xf32>
    %15 = arith.addf %11, %14 : vector<256x128xf32>
    %cst_14 = arith.constant 0.000000e+00 : f32
    %16 = vector.broadcast %cst_14 : f32 to vector<256x128xf32>
    %17 = arith.maximumf %15, %16 : vector<256x128xf32>
    %18 = math.absf %15 : vector<256x128xf32>
    %cst_15 = arith.constant 0.000000e+00 : f32
    %19 = vector.broadcast %cst_15 : f32 to vector<256x128xf32>
    %20 = arith.subf %19, %18 : vector<256x128xf32>
    %21 = math.exp %20 : vector<256x128xf32>
    %cst_16 = arith.constant 1.000000e+00 : f32
    %22 = vector.broadcast %cst_16 : f32 to vector<256x128xf32>
    %23 = arith.addf %22, %21 : vector<256x128xf32>
    %24 = math.log %23 : vector<256x128xf32>
    %25 = arith.addf %17, %24 : vector<256x128xf32>
    %cst_17 = arith.constant 0.693147182 : f32
    %26 = vector.broadcast %cst_17 : f32 to vector<256x128xf32>
    %27 = arith.subf %25, %26 : vector<256x128xf32>
    %c0_18 = arith.constant 0 : index
    %c0_19 = arith.constant 0 : index
    %c0_20 = arith.constant 0 : index
    %28 = vector.load %arg9[%c0_18, %c0_19, %c0_20] : memref<1x128x128xbf16, #tpu.memory_space<vmem>>, vector<1x128x128xbf16>
    %29 = vector.shape_cast %28 : vector<1x128x128xbf16> to vector<128x128xbf16>
    %30 = arith.truncf %27 : vector<256x128xf32> to vector<256x128xbf16>
    %cst_21 = arith.constant dense<0.000000e+00> : vector<256x128xf32>
    %31 = tpu.matmul %30, %29, %cst_21 {dimension_numbers = #tpu.dot_dimension_numbers<[1], [0], [0], [1], [0, 0, 1, 1], [], []>} : vector<256x128xbf16>, vector<128x128xbf16>, vector<256x128xf32> -> vector<256x128xf32>
    %c0_22 = arith.constant 0 : index
    %c0_23 = arith.constant 0 : index
    %c0_24 = arith.constant 0 : index
    %32 = vector.load %arg10[%c0_22, %c0_23, %c0_24] : memref<1x1x128xf32, #tpu.memory_space<vmem>>, vector<1x1x128xf32>
    %33 = vector.shape_cast %32 : vector<1x1x128xf32> to vector<1x128xf32>
    %34 = vector.broadcast %33 : vector<1x128xf32> to vector<256x128xf32>
    %35 = arith.addf %31, %34 : vector<256x128xf32>
    %36 = vector.broadcast %5 : vector<256x1xf32> to vector<256x128xf32>
    %37 = arith.mulf %35, %36 : vector<256x128xf32>
    %c0_25 = arith.constant 0 : index
    %c0_26 = arith.constant 0 : index
    %c0_27 = arith.constant 0 : index
    %38 = vector.load %arg11[%c0_25, %c0_26, %c0_27] : memref<1x128x128xbf16, #tpu.memory_space<vmem>>, vector<1x128x128xbf16>
    %39 = vector.shape_cast %38 : vector<1x128x128xbf16> to vector<128x128xbf16>
    %40 = arith.truncf %3 : vector<128x128xf32> to vector<128x128xbf16>
    %cst_28 = arith.constant dense<0.000000e+00> : vector<128x128xf32>
    %41 = tpu.matmul %40, %39, %cst_28 {dimension_numbers = #tpu.dot_dimension_numbers<[1], [0], [0], [1], [0, 0, 1, 1], [], []>} : vector<128x128xbf16>, vector<128x128xbf16>, vector<128x128xf32> -> vector<128x128xf32>
    %c0_29 = arith.constant 0 : index
    %c0_30 = arith.constant 0 : index
    %42 = vector.load %arg18[%c0_29, %c0_30] : memref<256x128xf32, #tpu.memory_space<vmem>>, vector<256x128xf32>
    %cst_31 = arith.constant dense<0.000000e+00> : vector<256x128xf32>
    %43 = tpu.matmul %42, %41, %cst_31 {dimension_numbers = #tpu.dot_dimension_numbers<[1], [0], [0], [1], [0, 0, 1, 1], [], []>} : vector<256x128xf32>, vector<128x128xf32>, vector<256x128xf32> -> vector<256x128xf32>
    %44 = arith.mulf %43, %37 : vector<256x128xf32>
    %c0_32 = arith.constant 0 : index
    %c0_33 = arith.constant 0 : index
    %45 = vector.load %arg19[%c0_32, %c0_33] : memref<128x256xf32, #tpu.memory_space<vmem>>, vector<128x256xf32>
    %cst_34 = arith.constant dense<0.000000e+00> : vector<128x128xf32>
    %46 = tpu.matmul %45, %44, %cst_34 {dimension_numbers = #tpu.dot_dimension_numbers<[1], [0], [0], [1], [0, 0, 1, 1], [], []>} : vector<128x256xf32>, vector<256x128xf32>, vector<128x128xf32> -> vector<128x128xf32>
    %c0_35 = arith.constant 0 : index
    %c0_36 = arith.constant 0 : index
    %c0_37 = arith.constant 0 : index
    %47 = vector.load %arg12[%c0_35, %c0_36, %c0_37] : memref<1x128x128xbf16, #tpu.memory_space<vmem>>, vector<1x128x128xbf16>
    %48 = vector.shape_cast %47 : vector<1x128x128xbf16> to vector<128x128xbf16>
    %49 = arith.truncf %46 : vector<128x128xf32> to vector<128x128xbf16>
    %cst_38 = arith.constant dense<0.000000e+00> : vector<128x128xf32>
    %50 = tpu.matmul %49, %48, %cst_38 {dimension_numbers = #tpu.dot_dimension_numbers<[1], [0], [0], [1], [0, 0, 1, 1], [], []>} : vector<128x128xbf16>, vector<128x128xbf16>, vector<128x128xf32> -> vector<128x128xf32>
    %c0_39 = arith.constant 0 : index
    %c0_40 = arith.constant 0 : index
    %c0_41 = arith.constant 0 : index
    %51 = vector.load %arg13[%c0_39, %c0_40, %c0_41] : memref<1x1x128xf32, #tpu.memory_space<vmem>>, vector<1x1x128xf32>
    %52 = vector.shape_cast %51 : vector<1x1x128xf32> to vector<1x128xf32>
    %53 = vector.broadcast %52 : vector<1x128xf32> to vector<128x128xf32>
    %54 = arith.addf %50, %53 : vector<128x128xf32>
    %cst_42 = arith.constant 0.000000e+00 : f32
    %55 = vector.broadcast %cst_42 : f32 to vector<128x128xf32>
    %56 = arith.maximumf %54, %55 : vector<128x128xf32>
    %57 = math.absf %54 : vector<128x128xf32>
    %cst_43 = arith.constant 0.000000e+00 : f32
    %58 = vector.broadcast %cst_43 : f32 to vector<128x128xf32>
    %59 = arith.subf %58, %57 : vector<128x128xf32>
    %60 = math.exp %59 : vector<128x128xf32>
    %cst_44 = arith.constant 1.000000e+00 : f32
    %61 = vector.broadcast %cst_44 : f32 to vector<128x128xf32>
    %62 = arith.addf %61, %60 : vector<128x128xf32>
    %63 = math.log %62 : vector<128x128xf32>
    %64 = arith.addf %56, %63 : vector<128x128xf32>
    %cst_45 = arith.constant 0.693147182 : f32
    %65 = vector.broadcast %cst_45 : f32 to vector<128x128xf32>
    %66 = arith.subf %64, %65 : vector<128x128xf32>
    %c0_46 = arith.constant 0 : index
    %c0_47 = arith.constant 0 : index
    %c0_48 = arith.constant 0 : index
    %67 = vector.load %arg14[%c0_46, %c0_47, %c0_48] : memref<1x128x128xbf16, #tpu.memory_space<vmem>>, vector<1x128x128xbf16>
    %68 = vector.shape_cast %67 : vector<1x128x128xbf16> to vector<128x128xbf16>
    %69 = arith.truncf %66 : vector<128x128xf32> to vector<128x128xbf16>
    %cst_49 = arith.constant dense<0.000000e+00> : vector<128x128xf32>
    %70 = tpu.matmul %69, %68, %cst_49 {dimension_numbers = #tpu.dot_dimension_numbers<[1], [0], [0], [1], [0, 0, 1, 1], [], []>} : vector<128x128xbf16>, vector<128x128xbf16>, vector<128x128xf32> -> vector<128x128xf32>
    %c0_50 = arith.constant 0 : index
    %c0_51 = arith.constant 0 : index
    %c0_52 = arith.constant 0 : index
    %71 = vector.load %arg15[%c0_50, %c0_51, %c0_52] : memref<1x1x128xf32, #tpu.memory_space<vmem>>, vector<1x1x128xf32>
    %72 = vector.shape_cast %71 : vector<1x1x128xf32> to vector<1x128xf32>
    %73 = vector.broadcast %72 : vector<1x128xf32> to vector<128x128xf32>
    %74 = arith.addf %70, %73 : vector<128x128xf32>
    %75 = arith.addf %3, %74 : vector<128x128xf32>
    %c0_53 = arith.constant 0 : index
    %c0_54 = arith.constant 0 : index
    %76 = vector.load %arg17[%c0_53, %c0_54] : memref<128x128xf32, #tpu.memory_space<vmem>>, vector<128x128xf32>
    tpu.vector_store %arg17[%c0_53, %c0_54], %75 {strides = array<i32>} : memref<128x128xf32, #tpu.memory_space<vmem>>, vector<128x128xf32>,
    %c2_i32 = arith.constant 2 : i32
    %77 = arith.cmpi eq, %arg1, %c2_i32 : i32
    %78 = arith.extui %77 : i1 to i32
    %c0_i32_55 = arith.constant 0 : i32
    %79 = arith.cmpi ne, %78, %c0_i32_55 : i32
    scf.if %79 {
      %c0_56 = arith.constant 0 : index
      %c0_57 = arith.constant 0 : index
      %c0_58 = arith.constant 0 : index
      %80 = vector.load %arg16[%c0_56, %c0_57, %c0_58] : memref<1x128x128xf32, #tpu.memory_space<vmem>>, vector<1x128x128xf32>
      %81 = vector.shape_cast %80 : vector<1x128x128xf32> to vector<128x128xf32>
      %82 = vector.shape_cast %75 : vector<128x128xf32> to vector<1x128x128xf32>
      tpu.vector_store %arg16[%c0_56, %c0_57, %c0_58], %82 {strides = array<i32>} : memref<1x128x128xf32, #tpu.memory_space<vmem>>, vector<1x128x128xf32>,
    } else {
    }
    return
  }
  func.func @transform_0(%arg0: i32, %arg1: i32) -> (i32, i32, i32) {
    %c0_i32 = arith.constant 0 : i32
    %c0_i32_0 = arith.constant 0 : i32
    %c0_i32_1 = arith.constant 0 : i32
    return %arg0, %c0_i32, %c0_i32_0 : i32, i32, i32
  }
  func.func @transform_1(%arg0: i32, %arg1: i32) -> (i32, i32, i32) {
    %c0_i32 = arith.constant 0 : i32
    %c0_i32_0 = arith.constant 0 : i32
    %c0_i32_1 = arith.constant 0 : i32
    return %arg0, %c0_i32, %c0_i32_0 : i32, i32, i32
  }
  func.func @transform_2(%arg0: i32, %arg1: i32) -> (i32, i32, i32) {
    %c0_i32 = arith.constant 0 : i32
    %c0_i32_0 = arith.constant 0 : i32
    %c0_i32_1 = arith.constant 0 : i32
    return %arg0, %c0_i32, %c0_i32_0 : i32, i32, i32
  }
  func.func @transform_3(%arg0: i32, %arg1: i32) -> (i32, i32, i32) {
    %c0_i32 = arith.constant 0 : i32
    %c0_i32_0 = arith.constant 0 : i32
    %c0_i32_1 = arith.constant 0 : i32
    return %arg0, %c0_i32, %c0_i32_0 : i32, i32, i32
  }
  func.func @transform_4(%arg0: i32, %arg1: i32) -> (i32, i32, i32) {
    %c0_i32 = arith.constant 0 : i32
    %c0_i32_0 = arith.constant 0 : i32
    %c0_i32_1 = arith.constant 0 : i32
    return %arg0, %c0_i32, %c0_i32_0 : i32, i32, i32
  }
  func.func @transform_5(%arg0: i32, %arg1: i32) -> (i32, i32, i32) {
    %c0_i32 = arith.constant 0 : i32
    %c0_i32_0 = arith.constant 0 : i32
    %c0_i32_1 = arith.constant 0 : i32
    return %arg1, %c0_i32, %c0_i32_0 : i32, i32, i32
  }
  func.func @transform_6(%arg0: i32, %arg1: i32) -> (i32, i32, i32) {
    %c0_i32 = arith.constant 0 : i32
    %c0_i32_0 = arith.constant 0 : i32
    %c0_i32_1 = arith.constant 0 : i32
    return %arg1, %c0_i32, %c0_i32_0 : i32, i32, i32
  }
  func.func @transform_7(%arg0: i32, %arg1: i32) -> (i32, i32, i32) {
    %c0_i32 = arith.constant 0 : i32
    %c0_i32_0 = arith.constant 0 : i32
    %c0_i32_1 = arith.constant 0 : i32
    return %arg1, %c0_i32, %c0_i32_0 : i32, i32, i32
  }
  func.func @transform_8(%arg0: i32, %arg1: i32) -> (i32, i32, i32) {
    %c0_i32 = arith.constant 0 : i32
    %c0_i32_0 = arith.constant 0 : i32
    %c0_i32_1 = arith.constant 0 : i32
    return %arg1, %c0_i32, %c0_i32_0 : i32, i32, i32
  }
  func.func @transform_9(%arg0: i32, %arg1: i32) -> (i32, i32, i32) {
    %c0_i32 = arith.constant 0 : i32
    %c0_i32_0 = arith.constant 0 : i32
    %c0_i32_1 = arith.constant 0 : i32
    return %arg1, %c0_i32, %c0_i32_0 : i32, i32, i32
  }
  func.func @transform_10(%arg0: i32, %arg1: i32) -> (i32, i32, i32) {
    %c0_i32 = arith.constant 0 : i32
    %c0_i32_0 = arith.constant 0 : i32
    %c0_i32_1 = arith.constant 0 : i32
    return %arg1, %c0_i32, %c0_i32_0 : i32, i32, i32
  }
  func.func @transform_11(%arg0: i32, %arg1: i32) -> (i32, i32, i32) {
    %c0_i32 = arith.constant 0 : i32
    %c0_i32_0 = arith.constant 0 : i32
    %c0_i32_1 = arith.constant 0 : i32
    return %arg1, %c0_i32, %c0_i32_0 : i32, i32, i32
  }
  func.func @transform_12(%arg0: i32, %arg1: i32) -> (i32, i32, i32) {
    %c0_i32 = arith.constant 0 : i32
    %c0_i32_0 = arith.constant 0 : i32
    %c0_i32_1 = arith.constant 0 : i32
    return %arg1, %c0_i32, %c0_i32_0 : i32, i32, i32
  }
  func.func @transform_13(%arg0: i32, %arg1: i32) -> (i32, i32, i32) {
    %c0_i32 = arith.constant 0 : i32
    %c0_i32_0 = arith.constant 0 : i32
    %c0_i32_1 = arith.constant 0 : i32
    return %arg1, %c0_i32, %c0_i32_0 : i32, i32, i32
  }
  func.func @transform_14(%arg0: i32, %arg1: i32) -> (i32, i32, i32) {
    %c0_i32 = arith.constant 0 : i32
    %c0_i32_0 = arith.constant 0 : i32
    %c0_i32_1 = arith.constant 0 : i32
    return %arg0, %c0_i32, %c0_i32_0 : i32, i32, i32
  }
}

</mosaic_0001>

<llo_original>
// kernel: tpu_custom_call.1
$region0: #{tpu_custom_call.1}
  #allocation0 [shape = 'u32[]', space=smem, size = 0x4, offset = 0x4, fixed_abs, tag = 'smem constant byte address 0x4 - core index']
  #allocation1 [shape = 'u32[144,128]{1,0:T(1,128)}', space=vmem, size = 0x12000, scoped, tag = 'internal scratch']
  #allocation2 [shape = 'f32[128,128]{1,0:T(8,128)}', space=vmem, size = 0x10000, scoped, tag = 'scratch operand']
  #allocation3 [shape = 'f32[256,128]{1,0:T(8,128)}', space=vmem, size = 0x20000, scoped, tag = 'scratch operand']
  #allocation4 [shape = 'f32[128,256]{1,0:T(8,128)}', space=vmem, size = 0x20000, scoped, tag = 'scratch operand']
  %s0 = inlined_call_operand.vmem [shape: f32[2,128,128], index: 0, kind: input, shape index: {}]
  %s1 = inlined_call_operand.vmem [shape: s32[2,256,1], index: 1, kind: input, shape index: {}]
  %s2 = inlined_call_operand.vmem [shape: s32[2,1,256], index: 2, kind: input, shape index: {}]
  %s3 = inlined_call_operand.vmem [shape: f32[2,256,1], index: 3, kind: input, shape index: {}]
  %s4 = inlined_call_operand.vmem [shape: f32[2,256,128], index: 4, kind: input, shape index: {}]
  %s5 = inlined_call_operand.vmem [shape: bf16[3,128,128], index: 5, kind: input, shape index: {}]
  %s6 = inlined_call_operand.vmem [shape: f32[3,1,128], index: 6, kind: input, shape index: {}]
  %s7 = inlined_call_operand.hbm [shape: bf16[3,128,128], index: 7, kind: input, shape index: {}]
  %s8 = inlined_call_operand.vmem [shape: f32[3,1,128], index: 8, kind: input, shape index: {}]
  %s9 = inlined_call_operand.hbm [shape: bf16[3,128,128], index: 9, kind: input, shape index: {}]
  %s10 = inlined_call_operand.hbm [shape: bf16[3,128,128], index: 10, kind: input, shape index: {}]
  %s11 = inlined_call_operand.vmem [shape: f32[3,1,128], index: 11, kind: input, shape index: {}]
  %s12 = inlined_call_operand.hbm [shape: bf16[3,128,128], index: 12, kind: input, shape index: {}]
  %s13 = inlined_call_operand.vmem [shape: f32[3,1,128], index: 13, kind: input, shape index: {}]
  %s14 = inlined_call_operand.hbm [shape: f32[2,128,128], index: 14, kind: output, shape index: {}]
  %s15 = sld [smem:[#allocation0]]
  $region113: #{tpu_custom_call.1} parent=0
    _
  %s17 = ssub.s32 1, %s15
  %s18 = scalar_select 0, %s17, %s15
  $region1: #{tpu_custom_call.1} parent=0
    #allocation5 [shape = 'u8[65536]{0}', space=vmem, size = 0x10000, scoped, tag = 'input window, operand 7']
    #allocation6 [shape = 's32[2]{0}', space=sflag, size = 0x8, scoped, tag = 'scoped memory for tpu_custom_call.1']
    #allocation7 [shape = 's32[2]{0}', space=sflag, size = 0x8, scoped, tag = 'scoped memory for tpu_custom_call.1']
    #allocation8 [shape = 'u8[65536]{0}', space=vmem, size = 0x10000, scoped, tag = 'input window, operand 9']
    #allocation9 [shape = 's32[2]{0}', space=sflag, size = 0x8, scoped, tag = 'scoped memory for tpu_custom_call.1']
    #allocation10 [shape = 'u8[65536]{0}', space=vmem, size = 0x10000, scoped, tag = 'input window, operand 10']
    #allocation11 [shape = 'u8[65536]{0}', space=vmem, size = 0x10000, scoped, tag = 'input window, operand 12']
    #allocation12 [shape = 's32[2]{0}', space=sflag, size = 0x8, scoped, tag = 'scoped memory for tpu_custom_call.1']
    #allocation13 [shape = 'u8[131072]{0}', space=vmem, size = 0x20000, scoped, tag = 'output window, operand 0']
    %19 = vsyncpa [#allocation6], 0
    %s20 = scalar_lea.sflag [#allocation6], 1
    %21 = vsyncpa %s20, 0
    %22 = vsyncpa [#allocation9], 0
    %s23 = scalar_lea.sflag [#allocation9], 1
    %24 = vsyncpa %s23, 0
    %25 = vsyncpa [#allocation12], 0
    %s26 = scalar_lea.sflag [#allocation12], 1
    %27 = vsyncpa %s26, 0
    %28 = vsyncpa [#allocation7], 0
    %s29 = scalar_lea.sflag [#allocation7], 1
    %30 = vsyncpa %s29, 0
    loop: start=0, step=1, limit=8
    $region2: #{tpu_custom_call.1} parent=1 // loop_pre_header
      _
    $region3: #{tpu_custom_call.1} parent=1 // loop_header
      %s32 = sphi 0, %s36
      %p33 = scmp.ge.s32.totalorder %s32, 8
      %s39 = sphi 0, %s51
      %s40 = sphi 0, %s47
      %s41 = sphi 0, %s39
      %s42 = sphi 0, %s40
      %s43 = sphi 0, %s41
      %s44 = sphi 0, %s42
      %s54 = sphi 0, %s56
      %s57 = sphi 0, %s54
      %s58 = sphi 0, %s57
      %s74 = sphi 0, %s58
      %s80 = sphi 0, %s82
      %s83 = sphi 0, %s80
      %s84 = sphi 0, %s83
      %s100 = sphi 0, %s84
      %s106 = sphi 0, %s108
      %s109 = sphi 0, %s106
      %s110 = sphi 0, %s109
      %s126 = sphi 0, %s110
      %s132 = sphi 0, %s134
      %s135 = sphi 0, %s132
      %s136 = sphi 0, %s135
      %s152 = sphi 0, %s136
      %s158 = sphi 0, %s160
      %s161 = sphi 0, %s158
      %s162 = sphi 0, %s161
      %s178 = sphi 0, %s162
      %s184 = sphi 0, %s186
      %s187 = sphi 0, %s184
      %s188 = sphi 0, %s187
      %s204 = sphi 0, %s188
      %s210 = sphi 0, %s212
      %s213 = sphi 0, %s210
      %s214 = sphi 0, %s213
      %s230 = sphi 0, %s214
      %s236 = sphi 0, %s238
      %s239 = sphi 0, %s236
      %s240 = sphi 0, %s239
      %s256 = sphi 0, %s240
      %s262 = sphi 0, %s264
      %s265 = sphi 0, %s262
      %s266 = sphi 0, %s265
      %s282 = sphi 0, %s266
      %s288 = sphi 0, %s290
      %s291 = sphi 0, %s288
      %s292 = sphi 0, %s291
      %s308 = sphi 0, %s292
      %s314 = sphi 0, %s316
      %s317 = sphi 0, %s314
      %s318 = sphi 0, %s317
      %s334 = sphi 0, %s318
      %s340 = sphi 0, %s342
      %s343 = sphi 0, %s340
      %s344 = sphi 0, %s343
      %s360 = sphi 0, %s344
      %s366 = sphi 0, %s368
      %s369 = sphi 0, %s366
      %s370 = sphi 0, %s369
      %s386 = sphi 0, %s370
      %s392 = sphi 0, %s394
      %s395 = sphi 0, %s392
      %s396 = sphi 0, %s395
      %s412 = sphi 0, %s396
      %s418 = sphi 0, %s420
      %s421 = sphi 0, %s418
      %s422 = sphi 0, %s421
      %s438 = sphi 0, %s422
    $region4: #{tpu_custom_call.1} parent=1 // loop_header_branch
      %35 = sbr.rel (%p33) target = $region8
    $region5: #{tpu_custom_call.1} parent=1 // loop_body
      %s37 = ssub.s32 %s32, 1
      %s38 = ssub.s32 %s32, 2
      %s45 = sadd.s32 1, %s40
      %p46 = scmp.ge.s32.totalorder %s45, 3
      %s47 = scalar_select %p46, 0, %s45
      %s48 = sadd.s32 1, %s39
      %s49 = scalar_select %p46, %s48, %s39
      %p50 = scmp.ge.s32.totalorder %s49, 2
      %s51 = scalar_select %p50, 0, %s49
      %s52 = ssub.s32 %s39, %s51
      %p53 = scmp.eq.s32.totalorder %s52, 0
      %s55 = sadd.s32 %s54, 1
      %s56 = scalar_select %p53, %s54, %s55
      %p59 = pneg %p53
      %p60 = scmp.eq.s32.totalorder %s32, 5
      %p61 = por %p59, %p60
      %p62 = scmp.ne.s32.totalorder %s54, %s57
      %p63 = scmp.eq.s32.totalorder %s32, 0
      %p64 = por %p62, %p63
      %p65 = scmp.ne.s32.totalorder %s54, %s57
      %p66 = scmp.eq.s32.totalorder %s37, 5
      %p67 = por %p65, %p66
      %p68 = scmp.ne.s32.totalorder %s57, %s58
      %p69 = scmp.eq.s32.totalorder %s37, 0
      %p70 = por %p68, %p69
      %p71 = scmp.ne.s32.totalorder %s57, %s58
      %p72 = scmp.eq.s32.totalorder %s38, 5
      %p73 = por %p71, %p72
      %p75 = scmp.ne.s32.totalorder %s58, %s74
      %p76 = scmp.eq.s32.totalorder %s38, 0
      %p77 = por %p75, %p76
      %s78 = ssub.s32 %s39, %s51
      %p79 = scmp.eq.s32.totalorder %s78, 0
      %s81 = sadd.s32 %s80, 1
      %s82 = scalar_select %p79, %s80, %s81
      %p85 = pneg %p79
      %p86 = scmp.eq.s32.totalorder %s32, 5
      %p87 = por %p85, %p86
      %p88 = scmp.ne.s32.totalorder %s80, %s83
      %p89 = scmp.eq.s32.totalorder %s32, 0
      %p90 = por %p88, %p89
      %p91 = scmp.ne.s32.totalorder %s80, %s83
      %p92 = scmp.eq.s32.totalorder %s37, 5
      %p93 = por %p91, %p92
      %p94 = scmp.ne.s32.totalorder %s83, %s84
      %p95 = scmp.eq.s32.totalorder %s37, 0
      %p96 = por %p94, %p95
      %p97 = scmp.ne.s32.totalorder %s83, %s84
      %p98 = scmp.eq.s32.totalorder %s38, 5
      %p99 = por %p97, %p98
      %p101 = scmp.ne.s32.totalorder %s84, %s100
      %p102 = scmp.eq.s32.totalorder %s38, 0
      %p103 = por %p101, %p102
      %s104 = ssub.s32 %s39, %s51
      %p105 = scmp.eq.s32.totalorder %s104, 0
      %s107 = sadd.s32 %s106, 1
      %s108 = scalar_select %p105, %s106, %s107
      %p111 = pneg %p105
      %p112 = scmp.eq.s32.totalorder %s32, 5
      %p113 = por %p111, %p112
      %p114 = scmp.ne.s32.totalorder %s106, %s109
      %p115 = scmp.eq.s32.totalorder %s32, 0
      %p116 = por %p114, %p115
      %p117 = scmp.ne.s32.totalorder %s106, %s109
      %p118 = scmp.eq.s32.totalorder %s37, 5
      %p119 = por %p117, %p118
      %p120 = scmp.ne.s32.totalorder %s109, %s110
      %p121 = scmp.eq.s32.totalorder %s37, 0
      %p122 = por %p120, %p121
      %p123 = scmp.ne.s32.totalorder %s109, %s110
      %p124 = scmp.eq.s32.totalorder %s38, 5
      %p125 = por %p123, %p124
      %p127 = scmp.ne.s32.totalorder %s110, %s126
      %p128 = scmp.eq.s32.totalorder %s38, 0
      %p129 = por %p127, %p128
      %s130 = ssub.s32 %s39, %s51
      %p131 = scmp.eq.s32.totalorder %s130, 0
      %s133 = sadd.s32 %s132, 1
      %s134 = scalar_select %p131, %s132, %s133
      %p137 = pneg %p131
      %p138 = scmp.eq.s32.totalorder %s32, 5
      %p139 = por %p137, %p138
      %p140 = scmp.ne.s32.totalorder %s132, %s135
      %p141 = scmp.eq.s32.totalorder %s32, 0
      %p142 = por %p140, %p141
      %p143 = scmp.ne.s32.totalorder %s132, %s135
      %p144 = scmp.eq.s32.totalorder %s37, 5
      %p145 = por %p143, %p144
      %p146 = scmp.ne.s32.totalorder %s135, %s136
      %p147 = scmp.eq.s32.totalorder %s37, 0
      %p148 = por %p146, %p147
      %p149 = scmp.ne.s32.totalorder %s135, %s136
      %p150 = scmp.eq.s32.totalorder %s38, 5
      %p151 = por %p149, %p150
      %p153 = scmp.ne.s32.totalorder %s136, %s152
      %p154 = scmp.eq.s32.totalorder %s38, 0
      %p155 = por %p153, %p154
      %s156 = ssub.s32 %s39, %s51
      %p157 = scmp.eq.s32.totalorder %s156, 0
      %s159 = sadd.s32 %s158, 1
      %s160 = scalar_select %p157, %s158, %s159
      %p163 = pneg %p157
      %p164 = scmp.eq.s32.totalorder %s32, 5
      %p165 = por %p163, %p164
      %p166 = scmp.ne.s32.totalorder %s158, %s161
      %p167 = scmp.eq.s32.totalorder %s32, 0
      %p168 = por %p166, %p167
      %p169 = scmp.ne.s32.totalorder %s158, %s161
      %p170 = scmp.eq.s32.totalorder %s37, 5
      %p171 = por %p169, %p170
      %p172 = scmp.ne.s32.totalorder %s161, %s162
      %p173 = scmp.eq.s32.totalorder %s37, 0
      %p174 = por %p172, %p173
      %p175 = scmp.ne.s32.totalorder %s161, %s162
      %p176 = scmp.eq.s32.totalorder %s38, 5
      %p177 = por %p175, %p176
      %p179 = scmp.ne.s32.totalorder %s162, %s178
      %p180 = scmp.eq.s32.totalorder %s38, 0
      %p181 = por %p179, %p180
      %s182 = ssub.s32 %s40, %s47
      %p183 = scmp.eq.s32.totalorder %s182, 0
      %s185 = sadd.s32 %s184, 1
      %s186 = scalar_select %p183, %s184, %s185
      %p189 = pneg %p183
      %p190 = scmp.eq.s32.totalorder %s32, 5
      %p191 = por %p189, %p190
      %p192 = scmp.ne.s32.totalorder %s184, %s187
      %p193 = scmp.eq.s32.totalorder %s32, 0
      %p194 = por %p192, %p193
      %p195 = scmp.ne.s32.totalorder %s184, %s187
      %p196 = scmp.eq.s32.totalorder %s37, 5
      %p197 = por %p195, %p196
      %p198 = scmp.ne.s32.totalorder %s187, %s188
      %p199 = scmp.eq.s32.totalorder %s37, 0
      %p200 = por %p198, %p199
      %p201 = scmp.ne.s32.totalorder %s187, %s188
      %p202 = scmp.eq.s32.totalorder %s38, 5
      %p203 = por %p201, %p202
      %p205 = scmp.ne.s32.totalorder %s188, %s204
      %p206 = scmp.eq.s32.totalorder %s38, 0
      %p207 = por %p205, %p206
      %s208 = ssub.s32 %s40, %s47
      %p209 = scmp.eq.s32.totalorder %s208, 0
      %s211 = sadd.s32 %s210, 1
      %s212 = scalar_select %p209, %s210, %s211
      %p215 = pneg %p209
      %p216 = scmp.eq.s32.totalorder %s32, 5
      %p217 = por %p215, %p216
      %p218 = scmp.ne.s32.totalorder %s210, %s213
      %p219 = scmp.eq.s32.totalorder %s32, 0
      %p220 = por %p218, %p219
      %p221 = scmp.ne.s32.totalorder %s210, %s213
      %p222 = scmp.eq.s32.totalorder %s37, 5
      %p223 = por %p221, %p222
      %p224 = scmp.ne.s32.totalorder %s213, %s214
      %p225 = scmp.eq.s32.totalorder %s37, 0
      %p226 = por %p224, %p225
      %p227 = scmp.ne.s32.totalorder %s213, %s214
      %p228 = scmp.eq.s32.totalorder %s38, 5
      %p229 = por %p227, %p228
      %p231 = scmp.ne.s32.totalorder %s214, %s230
      %p232 = scmp.eq.s32.totalorder %s38, 0
      %p233 = por %p231, %p232
      %s234 = ssub.s32 %s40, %s47
      %p235 = scmp.eq.s32.totalorder %s234, 0
      %s237 = sadd.s32 %s236, 1
      %s238 = scalar_select %p235, %s236, %s237
      %p241 = pneg %p235
      %p242 = scmp.eq.s32.totalorder %s32, 5
      %p243 = por %p241, %p242
      %p244 = scmp.ne.s32.totalorder %s236, %s239
      %p245 = scmp.eq.s32.totalorder %s32, 0
      %p246 = por %p244, %p245
      %p247 = scmp.ne.s32.totalorder %s236, %s239
      %p248 = scmp.eq.s32.totalorder %s37, 5
      %p249 = por %p247, %p248
      %p250 = scmp.ne.s32.totalorder %s239, %s240
      %p251 = scmp.eq.s32.totalorder %s37, 0
      %p252 = por %p250, %p251
      %p253 = scmp.ne.s32.totalorder %s239, %s240
      %p254 = scmp.eq.s32.totalorder %s38, 5
      %p255 = por %p253, %p254
      %p257 = scmp.ne.s32.totalorder %s240, %s256
      %p258 = scmp.eq.s32.totalorder %s38, 0
      %p259 = por %p257, %p258
      %s260 = ssub.s32 %s40, %s47
      %p261 = scmp.eq.s32.totalorder %s260, 0
      %s263 = sadd.s32 %s262, 1
      %s264 = scalar_select %p261, %s262, %s263
      %p267 = pneg %p261
      %p268 = scmp.eq.s32.totalorder %s32, 5
      %p269 = por %p267, %p268
      %p270 = scmp.ne.s32.totalorder %s262, %s265
      %p271 = scmp.eq.s32.totalorder %s32, 0
      %p272 = por %p270, %p271
      %p273 = scmp.ne.s32.totalorder %s262, %s265
      %p274 = scmp.eq.s32.totalorder %s37, 5
      %p275 = por %p273, %p274
      %p276 = scmp.ne.s32.totalorder %s265, %s266
      %p277 = scmp.eq.s32.totalorder %s37, 0
      %p278 = por %p276, %p277
      %p279 = scmp.ne.s32.totalorder %s265, %s266
      %p280 = scmp.eq.s32.totalorder %s38, 5
      %p281 = por %p279, %p280
      %p283 = scmp.ne.s32.totalorder %s266, %s282
      %p284 = scmp.eq.s32.totalorder %s38, 0
      %p285 = por %p283, %p284
      %s286 = ssub.s32 %s40, %s47
      %p287 = scmp.eq.s32.totalorder %s286, 0
      %s289 = sadd.s32 %s288, 1
      %s290 = scalar_select %p287, %s288, %s289
      %p293 = pneg %p287
      %p294 = scmp.eq.s32.totalorder %s32, 5
      %p295 = por %p293, %p294
      %p296 = scmp.ne.s32.totalorder %s288, %s291
      %p297 = scmp.eq.s32.totalorder %s32, 0
      %p298 = por %p296, %p297
      %p299 = scmp.ne.s32.totalorder %s288, %s291
      %p300 = scmp.eq.s32.totalorder %s37, 5
      %p301 = por %p299, %p300
      %p302 = scmp.ne.s32.totalorder %s291, %s292
      %p303 = scmp.eq.s32.totalorder %s37, 0
      %p304 = por %p302, %p303
      %p305 = scmp.ne.s32.totalorder %s291, %s292
      %p306 = scmp.eq.s32.totalorder %s38, 5
      %p307 = por %p305, %p306
      %p309 = scmp.ne.s32.totalorder %s292, %s308
      %p310 = scmp.eq.s32.totalorder %s38, 0
      %p311 = por %p309, %p310
      %s312 = ssub.s32 %s40, %s47
      %p313 = scmp.eq.s32.totalorder %s312, 0
      %s315 = sadd.s32 %s314, 1
      %s316 = scalar_select %p313, %s314, %s315
      %p319 = pneg %p313
      %p320 = scmp.eq.s32.totalorder %s32, 5
      %p321 = por %p319, %p320
      %p322 = scmp.ne.s32.totalorder %s314, %s317
      %p323 = scmp.eq.s32.totalorder %s32, 0
      %p324 = por %p322, %p323
      %p325 = scmp.ne.s32.totalorder %s314, %s317
      %p326 = scmp.eq.s32.totalorder %s37, 5
      %p327 = por %p325, %p326
      %p328 = scmp.ne.s32.totalorder %s317, %s318
      %p329 = scmp.eq.s32.totalorder %s37, 0
      %p330 = por %p328, %p329
      %p331 = scmp.ne.s32.totalorder %s317, %s318
      %p332 = scmp.eq.s32.totalorder %s38, 5
      %p333 = por %p331, %p332
      %p335 = scmp.ne.s32.totalorder %s318, %s334
      %p336 = scmp.eq.s32.totalorder %s38, 0
      %p337 = por %p335, %p336
      %s338 = ssub.s32 %s40, %s47
      %p339 = scmp.eq.s32.totalorder %s338, 0
      %s341 = sadd.s32 %s340, 1
      %s342 = scalar_select %p339, %s340, %s341
      %p345 = pneg %p339
      %p346 = scmp.eq.s32.totalorder %s32, 5
      %p347 = por %p345, %p346
      %p348 = scmp.ne.s32.totalorder %s340, %s343
      %p349 = scmp.eq.s32.totalorder %s32, 0
      %p350 = por %p348, %p349
      %p351 = scmp.ne.s32.totalorder %s340, %s343
      %p352 = scmp.eq.s32.totalorder %s37, 5
      %p353 = por %p351, %p352
      %p354 = scmp.ne.s32.totalorder %s343, %s344
      %p355 = scmp.eq.s32.totalorder %s37, 0
      %p356 = por %p354, %p355
      %p357 = scmp.ne.s32.totalorder %s343, %s344
      %p358 = scmp.eq.s32.totalorder %s38, 5
      %p359 = por %p357, %p358
      %p361 = scmp.ne.s32.totalorder %s344, %s360
      %p362 = scmp.eq.s32.totalorder %s38, 0
      %p363 = por %p361, %p362
      %s364 = ssub.s32 %s40, %s47
      %p365 = scmp.eq.s32.totalorder %s364, 0
      %s367 = sadd.s32 %s366, 1
      %s368 = scalar_select %p365, %s366, %s367
      %p371 = pneg %p365
      %p372 = scmp.eq.s32.totalorder %s32, 5
      %p373 = por %p371, %p372
      %p374 = scmp.ne.s32.totalorder %s366, %s369
      %p375 = scmp.eq.s32.totalorder %s32, 0
      %p376 = por %p374, %p375
      %p377 = scmp.ne.s32.totalorder %s366, %s369
      %p378 = scmp.eq.s32.totalorder %s37, 5
      %p379 = por %p377, %p378
      %p380 = scmp.ne.s32.totalorder %s369, %s370
      %p381 = scmp.eq.s32.totalorder %s37, 0
      %p382 = por %p380, %p381
      %p383 = scmp.ne.s32.totalorder %s369, %s370
      %p384 = scmp.eq.s32.totalorder %s38, 5
      %p385 = por %p383, %p384
      %p387 = scmp.ne.s32.totalorder %s370, %s386
      %p388 = scmp.eq.s32.totalorder %s38, 0
      %p389 = por %p387, %p388
      %s390 = ssub.s32 %s40, %s47
      %p391 = scmp.eq.s32.totalorder %s390, 0
      %s393 = sadd.s32 %s392, 1
      %s394 = scalar_select %p391, %s392, %s393
      %p397 = pneg %p391
      %p398 = scmp.eq.s32.totalorder %s32, 5
      %p399 = por %p397, %p398
      %p400 = scmp.ne.s32.totalorder %s392, %s395
      %p401 = scmp.eq.s32.totalorder %s32, 0
      %p402 = por %p400, %p401
      %p403 = scmp.ne.s32.totalorder %s392, %s395
      %p404 = scmp.eq.s32.totalorder %s37, 5
      %p405 = por %p403, %p404
      %p406 = scmp.ne.s32.totalorder %s395, %s396
      %p407 = scmp.eq.s32.totalorder %s37, 0
      %p408 = por %p406, %p407
      %p409 = scmp.ne.s32.totalorder %s395, %s396
      %p410 = scmp.eq.s32.totalorder %s38, 5
      %p411 = por %p409, %p410
      %p413 = scmp.ne.s32.totalorder %s396, %s412
      %p414 = scmp.eq.s32.totalorder %s38, 0
      %p415 = por %p413, %p414
      %s416 = ssub.s32 %s39, %s51
      %p417 = scmp.eq.s32.totalorder %s416, 0
      %s419 = sadd.s32 %s418, 1
      %s420 = scalar_select %p417, %s418, %s419
      %p423 = pneg %p417
      %p424 = scmp.eq.s32.totalorder %s32, 5
      %p425 = por %p423, %p424
      %p426 = scmp.ne.s32.totalorder %s418, %s421
      %p427 = scmp.eq.s32.totalorder %s32, 0
      %p428 = por %p426, %p427
      %p429 = scmp.ne.s32.totalorder %s418, %s421
      %p430 = scmp.eq.s32.totalorder %s37, 5
      %p431 = por %p429, %p430
      %p432 = scmp.ne.s32.totalorder %s421, %s422
      %p433 = scmp.eq.s32.totalorder %s37, 0
      %p434 = por %p432, %p433
      %p435 = scmp.ne.s32.totalorder %s421, %s422
      %p436 = scmp.eq.s32.totalorder %s38, 5
      %p437 = por %p435, %p436
      %p439 = scmp.ne.s32.totalorder %s422, %s438
      %p440 = scmp.eq.s32.totalorder %s38, 0
      %p441 = por %p439, %p440
      %p442 = scmp.le.s32.totalorder 1, %s32
      %p443 = scmp.lt.s32.totalorder %s32, 7
      %p444 = pnand %p442, %p443
      %p445 = pneg %p444
      // Predicated region
      $region9: #{tpu_custom_call.1} parent=5 // pred_check
        _
      $region10: #{tpu_custom_call.1} parent=5 // pred_check_branch
        %447 = sbr.rel (%p444) target = $region12
      $region11: #{tpu_custom_call.1} parent=5 // pred_region
        %s448 = ssub.s32 %s32, 1
      $region12: #{tpu_custom_call.1} parent=5 // pred_fallthru
        _
      %p449 = scmp.lt.s32.totalorder %s32, 6
      // Predicated region
      $region13: #{tpu_custom_call.1} parent=5 // pred_check
        %p450 = pneg %p449
      $region14: #{tpu_custom_call.1} parent=5 // pred_check_branch
        %452 = sbr.rel (%p450) target = $region16
      $region15: #{tpu_custom_call.1} parent=5 // pred_region
        // Predicated region
        $region17: #{tpu_custom_call.1} parent=15 // pred_check
          %p453 = pneg %p64
        $region18: #{tpu_custom_call.1} parent=15 // pred_check_branch
          %455 = sbr.rel (%p453) target = $region20
        $region19: #{tpu_custom_call.1} parent=15 // pred_region
          %p456 = scmp.lt.s32.totalorder %s39, 1
          %s457 = scalar_select %p456, %s39, 1
          %s458 = smul.addr %s457, 16
          %s459 = smul.addr %s458, 8
          %s460 = scalar_lea.vmem %s0, %s459
        $region20: #{tpu_custom_call.1} parent=15 // pred_fallthru
          _
        // Predicated region
        $region21: #{tpu_custom_call.1} parent=15 // pred_check
          %p461 = pneg %p90
        $region22: #{tpu_custom_call.1} parent=15 // pred_check_branch
          %463 = sbr.rel (%p461) target = $region24
        $region23: #{tpu_custom_call.1} parent=15 // pred_region
          %p464 = scmp.lt.s32.totalorder %s39, 1
          %s465 = scalar_select %p464, %s39, 1
          %s466 = smul.addr %s465, 32
          %s467 = smul.addr %s466, 8
          %s468 = scalar_lea.vmem %s1, %s467
        $region24: #{tpu_custom_call.1} parent=15 // pred_fallthru
          _
        // Predicated region
        $region25: #{tpu_custom_call.1} parent=15 // pred_check
          %p469 = pneg %p116
        $region26: #{tpu_custom_call.1} parent=15 // pred_check_branch
          %471 = sbr.rel (%p469) target = $region28
        $region27: #{tpu_custom_call.1} parent=15 // pred_region
          %p472 = scmp.lt.s32.totalorder %s39, 1
          %s473 = scalar_select %p472, %s39, 1
          %s474 = smul.addr %s473, 2
          %s475 = scalar_lea.vmem %s2, %s474
        $region28: #{tpu_custom_call.1} parent=15 // pred_fallthru
          _
        // Predicated region
        $region29: #{tpu_custom_call.1} parent=15 // pred_check
          %p476 = pneg %p142
        $region30: #{tpu_custom_call.1} parent=15 // pred_check_branch
          %478 = sbr.rel (%p476) target = $region32
        $region31: #{tpu_custom_call.1} parent=15 // pred_region
          %p479 = scmp.lt.s32.totalorder %s39, 1
          %s480 = scalar_select %p479, %s39, 1
          %s481 = smul.addr %s480, 32
          %s482 = smul.addr %s481, 8
          %s483 = scalar_lea.vmem %s3, %s482
        $region32: #{tpu_custom_call.1} parent=15 // pred_fallthru
          _
        // Predicated region
        $region33: #{tpu_custom_call.1} parent=15 // pred_check
          %p484 = pneg %p168
        $region34: #{tpu_custom_call.1} parent=15 // pred_check_branch
          %486 = sbr.rel (%p484) target = $region36
        $region35: #{tpu_custom_call.1} parent=15 // pred_region
          %p487 = scmp.lt.s32.totalorder %s39, 1
          %s488 = scalar_select %p487, %s39, 1
          %s489 = smul.addr %s488, 32
          %s490 = smul.addr %s489, 8
          %s491 = scalar_lea.vmem %s4, %s490
        $region36: #{tpu_custom_call.1} parent=15 // pred_fallthru
          _
        // Predicated region
        $region37: #{tpu_custom_call.1} parent=15 // pred_check
          %p492 = pneg %p194
        $region38: #{tpu_custom_call.1} parent=15 // pred_check_branch
          %494 = sbr.rel (%p492) target = $region40
        $region39: #{tpu_custom_call.1} parent=15 // pred_region
          %p495 = scmp.lt.s32.totalorder %s40, 2
          %s496 = scalar_select %p495, %s40, 2
          %s497 = smul.addr %s496, 16
          %s498 = smul.addr %s497, 4
          %s499 = scalar_lea.vmem %s5, %s498
        $region40: #{tpu_custom_call.1} parent=15 // pred_fallthru
          _
        // Predicated region
        $region41: #{tpu_custom_call.1} parent=15 // pred_check
          %p500 = pneg %p220
        $region42: #{tpu_custom_call.1} parent=15 // pred_check_branch
          %502 = sbr.rel (%p500) target = $region44
        $region43: #{tpu_custom_call.1} parent=15 // pred_region
          %p503 = scmp.lt.s32.totalorder %s40, 2
          %s504 = scalar_select %p503, %s40, 2
          %s505 = scalar_lea.vmem %s6, %s504
        $region44: #{tpu_custom_call.1} parent=15 // pred_fallthru
          _
        // Predicated region
        $region45: #{tpu_custom_call.1} parent=15 // pred_check
          %p506 = pneg %p246
        $region46: #{tpu_custom_call.1} parent=15 // pred_check_branch
          %508 = sbr.rel (%p506) target = $region48
        $region47: #{tpu_custom_call.1} parent=15 // pred_region
          %s509 = sand.u32 %s236, 1
          %s510 = scalar_lea.sflag [#allocation6], %s509
          %s511 = sand.u32 %s236, 1
          %s512 = smul.addr %s511, 64
          %s513 = scalar_lea.vmem [#allocation5], %s512
          %s515 = ssub.s32 1024, 1024
          %516 = vsyncadd %s510, %s515
          %s517 = smul.addr %s40, 16
          %s518 = smul.addr %s517, 64
          %s519 = scalar_lea.hbm %s7, %s518
          %s520 = sshll.u32 %s513, 4
          %s521 = int_to_ptr.vmem [resolvable:$true] %s520
          %526 = dma.hbm_to_vmem [thread:$0]  %s519, 1024, %s521, %s510, 64, 64, 4
        $region48: #{tpu_custom_call.1} parent=15 // pred_fallthru
          _
        // Predicated region
        $region49: #{tpu_custom_call.1} parent=15 // pred_check
          %p527 = pneg %p272
        $region50: #{tpu_custom_call.1} parent=15 // pred_check_branch
          %529 = sbr.rel (%p527) target = $region52
        $region51: #{tpu_custom_call.1} parent=15 // pred_region
          %p530 = scmp.lt.s32.totalorder %s40, 2
          %s531 = scalar_select %p530, %s40, 2
          %s532 = scalar_lea.vmem %s8, %s531
        $region52: #{tpu_custom_call.1} parent=15 // pred_fallthru
          _
        // Predicated region
        $region53: #{tpu_custom_call.1} parent=15 // pred_check
          %p533 = pneg %p298
        $region54: #{tpu_custom_call.1} parent=15 // pred_check_branch
          %535 = sbr.rel (%p533) target = $region56
        $region55: #{tpu_custom_call.1} parent=15 // pred_region
          %s536 = sand.u32 %s32, 1
          %s537 = scalar_lea.sflag [#allocation9], %s536
          %s538 = sand.u32 %s288, 1
          %s539 = smul.addr %s538, 64
          %s540 = scalar_lea.vmem [#allocation8], %s539
          %s542 = ssub.s32 1024, 1024
          %543 = vsyncadd %s537, %s542
          %s544 = smul.addr %s40, 16
          %s545 = smul.addr %s544, 64
          %s546 = scalar_lea.hbm %s9, %s545
          %s547 = sshll.u32 %s540, 4
          %s548 = int_to_ptr.vmem [resolvable:$true] %s547
          %553 = dma.hbm_to_vmem [thread:$0]  %s546, 1024, %s548, %s537, 64, 64, 4
        $region56: #{tpu_custom_call.1} parent=15 // pred_fallthru
          _
        // Predicated region
        $region57: #{tpu_custom_call.1} parent=15 // pred_check
          %p554 = pneg %p324
        $region58: #{tpu_custom_call.1} parent=15 // pred_check_branch
          %556 = sbr.rel (%p554) target = $region60
        $region59: #{tpu_custom_call.1} parent=15 // pred_region
          %s557 = sand.u32 %s32, 1
          %s558 = scalar_lea.sflag [#allocation9], %s557
          %s559 = sand.u32 %s314, 1
          %s560 = smul.addr %s559, 64
          %s561 = scalar_lea.vmem [#allocation10], %s560
          %s563 = ssub.s32 1024, 1024
          %564 = vsyncadd %s558, %s563
          %s565 = smul.addr %s40, 16
          %s566 = smul.addr %s565, 64
          %s567 = scalar_lea.hbm %s10, %s566
          %s568 = sshll.u32 %s561, 4
          %s569 = int_to_ptr.vmem [resolvable:$true] %s568
          %574 = dma.hbm_to_vmem [thread:$0]  %s567, 1024, %s569, %s558, 64, 64, 4
        $region60: #{tpu_custom_call.1} parent=15 // pred_fallthru
          _
        // Predicated region
        $region61: #{tpu_custom_call.1} parent=15 // pred_check
          %p575 = pneg %p350
        $region62: #{tpu_custom_call.1} parent=15 // pred_check_branch
          %577 = sbr.rel (%p575) target = $region64
        $region63: #{tpu_custom_call.1} parent=15 // pred_region
          %p578 = scmp.lt.s32.totalorder %s40, 2
          %s579 = scalar_select %p578, %s40, 2
          %s580 = scalar_lea.vmem %s11, %s579
        $region64: #{tpu_custom_call.1} parent=15 // pred_fallthru
          _
        // Predicated region
        $region65: #{tpu_custom_call.1} parent=15 // pred_check
          %p581 = pneg %p376
        $region66: #{tpu_custom_call.1} parent=15 // pred_check_branch
          %583 = sbr.rel (%p581) target = $region68
        $region67: #{tpu_custom_call.1} parent=15 // pred_region
          %s584 = sand.u32 %s366, 1
          %s585 = scalar_lea.sflag [#allocation12], %s584
          %s586 = sand.u32 %s366, 1
          %s587 = smul.addr %s586, 64
          %s588 = scalar_lea.vmem [#allocation11], %s587
          %s590 = ssub.s32 1024, 1024
          %591 = vsyncadd %s585, %s590
          %s592 = smul.addr %s40, 16
          %s593 = smul.addr %s592, 64
          %s594 = scalar_lea.hbm %s12, %s593
          %s595 = sshll.u32 %s588, 4
          %s596 = int_to_ptr.vmem [resolvable:$true] %s595
          %601 = dma.hbm_to_vmem [thread:$0]  %s594, 1024, %s596, %s585, 64, 64, 4
        $region68: #{tpu_custom_call.1} parent=15 // pred_fallthru
          _
        // Predicated region
        $region69: #{tpu_custom_call.1} parent=15 // pred_check
          %p602 = pneg %p402
        $region70: #{tpu_custom_call.1} parent=15 // pred_check_branch
          %604 = sbr.rel (%p602) target = $region72
        $region71: #{tpu_custom_call.1} parent=15 // pred_region
          %p605 = scmp.lt.s32.totalorder %s40, 2
          %s606 = scalar_select %p605, %s40, 2
          %s607 = scalar_lea.vmem %s13, %s606
        $region72: #{tpu_custom_call.1} parent=15 // pred_fallthru
          _
      $region16: #{tpu_custom_call.1} parent=5 // pred_fallthru
        _
      %p608 = scmp.le.s32.totalorder 1, %s32
      %p609 = scmp.lt.s32.totalorder %s32, 7
      %p610 = pnand %p608, %p609
      %p611 = pneg %p610
      // Predicated region
      $region73: #{tpu_custom_call.1} parent=5 // pred_check
        _
      $region74: #{tpu_custom_call.1} parent=5 // pred_check_branch
        %613 = sbr.rel (%p610) target = $region76
      $region75: #{tpu_custom_call.1} parent=5 // pred_region
        %s614 = ssub.s32 %s32, 1
        %s615 = sand.u32 %s239, 1
        %s616 = scalar_lea.sflag [#allocation6], %s615
        %s617 = sand.u32 %s239, 1
        %s618 = smul.addr %s617, 64
        %s619 = scalar_lea.vmem [#allocation5], %s618
        // Predicated region
        $region77: #{tpu_custom_call.1} parent=75 // pred_check
          %p620 = pneg %p252
        $region78: #{tpu_custom_call.1} parent=75 // pred_check_branch
          %622 = sbr.rel (%p620) target = $region80
        $region79: #{tpu_custom_call.1} parent=75 // pred_region
          %623 = dma.done %s616, 1024
        $region80: #{tpu_custom_call.1} parent=75 // pred_fallthru
          _
        %s624 = sand.u32 %s37, 1
        %s625 = scalar_lea.sflag [#allocation9], %s624
        %s626 = sand.u32 %s291, 1
        %s627 = smul.addr %s626, 64
        %s628 = scalar_lea.vmem [#allocation8], %s627
        // Predicated region
        $region81: #{tpu_custom_call.1} parent=75 // pred_check
          %p629 = pneg %p304
        $region82: #{tpu_custom_call.1} parent=75 // pred_check_branch
          %631 = sbr.rel (%p629) target = $region84
        $region83: #{tpu_custom_call.1} parent=75 // pred_region
          %632 = dma.done %s625, 1024
        $region84: #{tpu_custom_call.1} parent=75 // pred_fallthru
          _
        %s633 = sand.u32 %s37, 1
        %s634 = scalar_lea.sflag [#allocation9], %s633
        %s635 = sand.u32 %s317, 1
        %s636 = smul.addr %s635, 64
        %s637 = scalar_lea.vmem [#allocation10], %s636
        // Predicated region
        $region85: #{tpu_custom_call.1} parent=75 // pred_check
          %p638 = pneg %p330
        $region86: #{tpu_custom_call.1} parent=75 // pred_check_branch
          %640 = sbr.rel (%p638) target = $region88
        $region87: #{tpu_custom_call.1} parent=75 // pred_region
          %641 = dma.done %s634, 1024
        $region88: #{tpu_custom_call.1} parent=75 // pred_fallthru
          _
        %s642 = sand.u32 %s369, 1
        %s643 = scalar_lea.sflag [#allocation12], %s642
        %s644 = sand.u32 %s369, 1
        %s645 = smul.addr %s644, 64
        %s646 = scalar_lea.vmem [#allocation11], %s645
        // Predicated region
        $region89: #{tpu_custom_call.1} parent=75 // pred_check
          %p647 = pneg %p382
        $region90: #{tpu_custom_call.1} parent=75 // pred_check_branch
          %649 = sbr.rel (%p647) target = $region92
        $region91: #{tpu_custom_call.1} parent=75 // pred_region
          %650 = dma.done %s643, 1024
        $region92: #{tpu_custom_call.1} parent=75 // pred_fallthru
          _
        %p651 = scmp.lt.s32.totalorder %s41, 1
        %s652 = scalar_select %p651, %s41, 1
        %s653 = smul.addr %s652, 16
        %s654 = smul.addr %s653, 8
        %s655 = scalar_lea.vmem %s0, %s654
        %p656 = pneg %p70
        %p657 = pneg %p67
        %p658 = scmp.lt.s32.totalorder %s41, 1
        %s659 = scalar_select %p658, %s41, 1
        %s660 = smul.addr %s659, 32
        %s661 = smul.addr %s660, 8
        %s662 = scalar_lea.vmem %s1, %s661
        %p663 = pneg %p96
        %p664 = pneg %p93
        %p665 = scmp.lt.s32.totalorder %s41, 1
        %s666 = scalar_select %p665, %s41, 1
        %s667 = smul.addr %s666, 2
        %s668 = scalar_lea.vmem %s2, %s667
        %p669 = pneg %p122
        %p670 = pneg %p119
        %p671 = scmp.lt.s32.totalorder %s41, 1
        %s672 = scalar_select %p671, %s41, 1
        %s673 = smul.addr %s672, 32
        %s674 = smul.addr %s673, 8
        %s675 = scalar_lea.vmem %s3, %s674
        %p676 = pneg %p148
        %p677 = pneg %p145
        %p678 = scmp.lt.s32.totalorder %s41, 1
        %s679 = scalar_select %p678, %s41, 1
        %s680 = smul.addr %s679, 32
        %s681 = smul.addr %s680, 8
        %s682 = scalar_lea.vmem %s4, %s681
        %p683 = pneg %p174
        %p684 = pneg %p171
        %p685 = scmp.lt.s32.totalorder %s42, 2
        %s686 = scalar_select %p685, %s42, 2
        %s687 = smul.addr %s686, 16
        %s688 = smul.addr %s687, 4
        %s689 = scalar_lea.vmem %s5, %s688
        %p690 = pneg %p200
        %p691 = pneg %p197
        %p692 = scmp.lt.s32.totalorder %s42, 2
        %s693 = scalar_select %p692, %s42, 2
        %s694 = scalar_lea.vmem %s6, %s693
        %p695 = pneg %p226
        %p696 = pneg %p223
        %s697 = sand.u32 %s239, 1
        %s698 = scalar_lea.sflag [#allocation6], %s697
        %s699 = sand.u32 %s239, 1
        %s700 = smul.addr %s699, 64
        %s701 = scalar_lea.vmem [#allocation5], %s700
        %p702 = pneg %p252
        %p703 = pneg %p249
        %p704 = scmp.lt.s32.totalorder %s42, 2
        %s705 = scalar_select %p704, %s42, 2
        %s706 = scalar_lea.vmem %s8, %s705
        %p707 = pneg %p278
        %p708 = pneg %p275
        %s709 = sand.u32 %s37, 1
        %s710 = scalar_lea.sflag [#allocation9], %s709
        %s711 = sand.u32 %s291, 1
        %s712 = smul.addr %s711, 64
        %s713 = scalar_lea.vmem [#allocation8], %s712
        %p714 = pneg %p304
        %p715 = pneg %p301
        %s716 = sand.u32 %s37, 1
        %s717 = scalar_lea.sflag [#allocation9], %s716
        %s718 = sand.u32 %s317, 1
        %s719 = smul.addr %s718, 64
        %s720 = scalar_lea.vmem [#allocation10], %s719
        %p721 = pneg %p330
        %p722 = pneg %p327
        %p723 = scmp.lt.s32.totalorder %s42, 2
        %s724 = scalar_select %p723, %s42, 2
        %s725 = scalar_lea.vmem %s11, %s724
        %p726 = pneg %p356
        %p727 = pneg %p353
        %s728 = sand.u32 %s369, 1
        %s729 = scalar_lea.sflag [#allocation12], %s728
        %s730 = sand.u32 %s369, 1
        %s731 = smul.addr %s730, 64
        %s732 = scalar_lea.vmem [#allocation11], %s731
        %p733 = pneg %p382
        %p734 = pneg %p379
        %p735 = scmp.lt.s32.totalorder %s42, 2
        %s736 = scalar_select %p735, %s42, 2
        %s737 = scalar_lea.vmem %s13, %s736
        %p738 = pneg %p408
        %p739 = pneg %p405
        %p740 = pneg %p434
        %p741 = pneg %p431
        %s742 = sand.u32 %s421, 1
        %s743 = scalar_lea.sflag [#allocation7], %s742
        %s744 = sand.u32 %s421, 1
        %s745 = smul.addr %s744, 128
        %s746 = scalar_lea.vmem [#allocation13], %s745
        %p747 = scmp.lt.s32.totalorder %s41, 1
        %s748 = scalar_select %p747, %s41, 1
        %s749 = smul.addr %s748, 16
        %s750 = smul.addr %s749, 8
        %s751 = scalar_lea.vmem %s0, %s750
        %p752 = scmp.lt.s32.totalorder %s41, 1
        %s753 = scalar_select %p752, %s41, 1
        %s754 = smul.addr %s753, 32
        %s755 = smul.addr %s754, 8
        %s756 = scalar_lea.vmem %s1, %s755
        %p757 = scmp.lt.s32.totalorder %s41, 1
        %s758 = scalar_select %p757, %s41, 1
        %s759 = smul.addr %s758, 2
        %s760 = scalar_lea.vmem %s2, %s759
        %p761 = scmp.lt.s32.totalorder %s41, 1
        %s762 = scalar_select %p761, %s41, 1
        %s763 = smul.addr %s762, 32
        %s764 = smul.addr %s763, 8
        %s765 = scalar_lea.vmem %s3, %s764
        %p766 = scmp.lt.s32.totalorder %s41, 1
        %s767 = scalar_select %p766, %s41, 1
        %s768 = smul.addr %s767, 32
        %s769 = smul.addr %s768, 8
        %s770 = scalar_lea.vmem %s4, %s769
        %p771 = scmp.lt.s32.totalorder %s42, 2
        %s772 = scalar_select %p771, %s42, 2
        %s773 = smul.addr %s772, 16
        %s774 = smul.addr %s773, 4
        %s775 = scalar_lea.vmem %s5, %s774
        %p776 = scmp.lt.s32.totalorder %s42, 2
        %s777 = scalar_select %p776, %s42, 2
        %s778 = scalar_lea.vmem %s6, %s777
        %p779 = scmp.lt.s32.totalorder %s42, 2
        %s780 = scalar_select %p779, %s42, 2
        %s781 = scalar_lea.vmem %s8, %s780
        %p782 = scmp.lt.s32.totalorder %s42, 2
        %s783 = scalar_select %p782, %s42, 2
        %s784 = scalar_lea.vmem %s11, %s783
        %p785 = scmp.lt.s32.totalorder %s42, 2
        %s786 = scalar_select %p785, %s42, 2
        %s787 = scalar_lea.vmem %s13, %s786
        %p789 = scmp.eq.s32.totalorder %s42, 0
        // Predicated region
        $region93: #{tpu_custom_call.1} parent=75 // pred_check
          %p790 = pneg %p789
        $region94: #{tpu_custom_call.1} parent=75 // pred_check_branch
          %792 = sbr.rel (%p790) target = $region96
        $region95: #{tpu_custom_call.1} parent=75 // pred_region
          %v793 = vld [vmem:[%s751] sm:$0xff]
          %v794 = vld [vmem:[%s751 + $0x8] sm:$0xff]
          %v795 = vld [vmem:[%s751 + $0x10] sm:$0xff]
          %v796 = vld [vmem:[%s751 + $0x18] sm:$0xff]
          %v797 = vld [vmem:[%s751 + $0x20] sm:$0xff]
          %v798 = vld [vmem:[%s751 + $0x28] sm:$0xff]
          %v799 = vld [vmem:[%s751 + $0x30] sm:$0xff]
          %v800 = vld [vmem:[%s751 + $0x38] sm:$0xff]
          %v801 = vld [vmem:[%s751 + $0x40] sm:$0xff]
          %v802 = vld [vmem:[%s751 + $0x48] sm:$0xff]
          %v803 = vld [vmem:[%s751 + $0x50] sm:$0xff]
          %v804 = vld [vmem:[%s751 + $0x58] sm:$0xff]
          %v805 = vld [vmem:[%s751 + $0x60] sm:$0xff]
          %v806 = vld [vmem:[%s751 + $0x68] sm:$0xff]
          %v807 = vld [vmem:[%s751 + $0x70] sm:$0xff]
          %v808 = vld [vmem:[%s751 + $0x78] sm:$0xff]
          %809 = vst [vmem:[#allocation2] sm:$0xff] %v793
          %810 = vst [vmem:[#allocation2 + $0x8] sm:$0xff] %v794
          %811 = vst [vmem:[#allocation2 + $0x10] sm:$0xff] %v795
          %812 = vst [vmem:[#allocation2 + $0x18] sm:$0xff] %v796
          %813 = vst [vmem:[#allocation2 + $0x20] sm:$0xff] %v797
          %814 = vst [vmem:[#allocation2 + $0x28] sm:$0xff] %v798
          %815 = vst [vmem:[#allocation2 + $0x30] sm:$0xff] %v799
          %816 = vst [vmem:[#allocation2 + $0x38] sm:$0xff] %v800
          %817 = vst [vmem:[#allocation2 + $0x40] sm:$0xff] %v801
          %818 = vst [vmem:[#allocation2 + $0x48] sm:$0xff] %v802
          %819 = vst [vmem:[#allocation2 + $0x50] sm:$0xff] %v803
          %820 = vst [vmem:[#allocation2 + $0x58] sm:$0xff] %v804
          %821 = vst [vmem:[#allocation2 + $0x60] sm:$0xff] %v805
          %822 = vst [vmem:[#allocation2 + $0x68] sm:$0xff] %v806
          %823 = vst [vmem:[#allocation2 + $0x70] sm:$0xff] %v807
          %824 = vst [vmem:[#allocation2 + $0x78] sm:$0xff] %v808
          %v825 = vld [vmem:[%s756] sm:$0xff]
          %v826 = vld [vmem:[%s756 + $0x8] sm:$0xff]
          %v827 = vld [vmem:[%s756 + $0x10] sm:$0xff]
          %v828 = vld [vmem:[%s756 + $0x18] sm:$0xff]
          %v829 = vld [vmem:[%s756 + $0x20] sm:$0xff]
          %v830 = vld [vmem:[%s756 + $0x28] sm:$0xff]
          %v831 = vld [vmem:[%s756 + $0x30] sm:$0xff]
          %v832 = vld [vmem:[%s756 + $0x38] sm:$0xff]
          %v833 = vld [vmem:[%s756 + $0x40] sm:$0xff]
          %v834 = vld [vmem:[%s756 + $0x48] sm:$0xff]
          %v835 = vld [vmem:[%s756 + $0x50] sm:$0xff]
          %v836 = vld [vmem:[%s756 + $0x58] sm:$0xff]
          %v837 = vld [vmem:[%s756 + $0x60] sm:$0xff]
          %v838 = vld [vmem:[%s756 + $0x68] sm:$0xff]
          %v839 = vld [vmem:[%s756 + $0x70] sm:$0xff]
          %v840 = vld [vmem:[%s756 + $0x78] sm:$0xff]
          %v841 = vld [vmem:[%s756 + $0x80] sm:$0xff]
          %v842 = vld [vmem:[%s756 + $0x88] sm:$0xff]
          %v843 = vld [vmem:[%s756 + $0x90] sm:$0xff]
          %v844 = vld [vmem:[%s756 + $0x98] sm:$0xff]
          %v845 = vld [vmem:[%s756 + $0xa0] sm:$0xff]
          %v846 = vld [vmem:[%s756 + $0xa8] sm:$0xff]
          %v847 = vld [vmem:[%s756 + $0xb0] sm:$0xff]
          %v848 = vld [vmem:[%s756 + $0xb8] sm:$0xff]
          %v849 = vld [vmem:[%s756 + $0xc0] sm:$0xff]
          %v850 = vld [vmem:[%s756 + $0xc8] sm:$0xff]
          %v851 = vld [vmem:[%s756 + $0xd0] sm:$0xff]
          %v852 = vld [vmem:[%s756 + $0xd8] sm:$0xff]
          %v853 = vld [vmem:[%s756 + $0xe0] sm:$0xff]
          %v854 = vld [vmem:[%s756 + $0xe8] sm:$0xff]
          %v855 = vld [vmem:[%s756 + $0xf0] sm:$0xff]
          %v856 = vld [vmem:[%s756 + $0xf8] sm:$0xff]
          %v857 = vld [vmem:[%s760] sm:$0x3]
          %v858 = vlaneseq
          %v859 = vand.u32 %v858, 127
          %860 = vset.pattern.permute.xlu0 0
          %861 = vperm.xlu0 %860, %v825
          %v862 = vpop.permute.xlu0 %861
          %863 = vset.pattern.permute.xlu0 0
          %864 = vperm.xlu0 %863, %v826
          %v865 = vpop.permute.xlu0 %864
          %866 = vset.pattern.permute.xlu0 0
          %867 = vperm.xlu0 %866, %v827
          %v868 = vpop.permute.xlu0 %867
          %869 = vset.pattern.permute.xlu0 0
          %870 = vperm.xlu0 %869, %v828
          %v871 = vpop.permute.xlu0 %870
          %872 = vset.pattern.permute.xlu0 0
          %873 = vperm.xlu0 %872, %v829
          %v874 = vpop.permute.xlu0 %873
          %875 = vset.pattern.permute.xlu0 0
          %876 = vperm.xlu0 %875, %v830
          %v877 = vpop.permute.xlu0 %876
          %878 = vset.pattern.permute.xlu0 0
          %879 = vperm.xlu0 %878, %v831
          %v880 = vpop.permute.xlu0 %879
          %881 = vset.pattern.permute.xlu0 0
          %882 = vperm.xlu0 %881, %v832
          %v883 = vpop.permute.xlu0 %882
          %884 = vset.pattern.permute.xlu0 0
          %885 = vperm.xlu0 %884, %v833
          %v886 = vpop.permute.xlu0 %885
          %887 = vset.pattern.permute.xlu0 0
          %888 = vperm.xlu0 %887, %v834
          %v889 = vpop.permute.xlu0 %888
          %890 = vset.pattern.permute.xlu0 0
          %891 = vperm.xlu0 %890, %v835
          %v892 = vpop.permute.xlu0 %891
          %893 = vset.pattern.permute.xlu0 0
          %894 = vperm.xlu0 %893, %v836
          %v895 = vpop.permute.xlu0 %894
          %896 = vset.pattern.permute.xlu0 0
          %897 = vperm.xlu0 %896, %v837
          %v898 = vpop.permute.xlu0 %897
          %899 = vset.pattern.permute.xlu0 0
          %900 = vperm.xlu0 %899, %v838
          %v901 = vpop.permute.xlu0 %900
          %902 = vset.pattern.permute.xlu0 0
          %903 = vperm.xlu0 %902, %v839
          %v904 = vpop.permute.xlu0 %903
          %905 = vset.pattern.permute.xlu0 0
          %906 = vperm.xlu0 %905, %v840
          %v907 = vpop.permute.xlu0 %906
          %908 = vset.pattern.permute.xlu0 0
          %909 = vperm.xlu0 %908, %v841
          %v910 = vpop.permute.xlu0 %909
          %911 = vset.pattern.permute.xlu0 0
          %912 = vperm.xlu0 %911, %v842
          %v913 = vpop.permute.xlu0 %912
          %914 = vset.pattern.permute.xlu0 0
          %915 = vperm.xlu0 %914, %v843
          %v916 = vpop.permute.xlu0 %915
          %917 = vset.pattern.permute.xlu0 0
          %918 = vperm.xlu0 %917, %v844
          %v919 = vpop.permute.xlu0 %918
          %920 = vset.pattern.permute.xlu0 0
          %921 = vperm.xlu0 %920, %v845
          %v922 = vpop.permute.xlu0 %921
          %923 = vset.pattern.permute.xlu0 0
          %924 = vperm.xlu0 %923, %v846
          %v925 = vpop.permute.xlu0 %924
          %926 = vset.pattern.permute.xlu0 0
          %927 = vperm.xlu0 %926, %v847
          %v928 = vpop.permute.xlu0 %927
          %929 = vset.pattern.permute.xlu0 0
          %930 = vperm.xlu0 %929, %v848
          %v931 = vpop.permute.xlu0 %930
          %932 = vset.pattern.permute.xlu0 0
          %933 = vperm.xlu0 %932, %v849
          %v934 = vpop.permute.xlu0 %933
          %935 = vset.pattern.permute.xlu0 0
          %936 = vperm.xlu0 %935, %v850
          %v937 = vpop.permute.xlu0 %936
          %938 = vset.pattern.permute.xlu0 0
          %939 = vperm.xlu0 %938, %v851
          %v940 = vpop.permute.xlu0 %939
          %941 = vset.pattern.permute.xlu0 0
          %942 = vperm.xlu0 %941, %v852
          %v943 = vpop.permute.xlu0 %942
          %944 = vset.pattern.permute.xlu0 0
          %945 = vperm.xlu0 %944, %v853
          %v946 = vpop.permute.xlu0 %945
          %947 = vset.pattern.permute.xlu0 0
          %948 = vperm.xlu0 %947, %v854
          %v949 = vpop.permute.xlu0 %948
          %950 = vset.pattern.permute.xlu0 0
          %951 = vperm.xlu0 %950, %v855
          %v952 = vpop.permute.xlu0 %951
          %953 = vset.pattern.permute.xlu0 0
          %954 = vperm.xlu0 %953, %v856
          %v955 = vpop.permute.xlu0 %954
          %vm956 = vcmp.eq.s32.totalorder %v859, %v862
          %vm957 = vcmp.eq.s32.totalorder %v859, %v865
          %vm958 = vcmp.eq.s32.totalorder %v859, %v868
          %vm959 = vcmp.eq.s32.totalorder %v859, %v871
          %vm960 = vcmp.eq.s32.totalorder %v859, %v874
          %vm961 = vcmp.eq.s32.totalorder %v859, %v877
          %vm962 = vcmp.eq.s32.totalorder %v859, %v880
          %vm963 = vcmp.eq.s32.totalorder %v859, %v883
          %vm964 = vcmp.eq.s32.totalorder %v859, %v886
          %vm965 = vcmp.eq.s32.totalorder %v859, %v889
          %vm966 = vcmp.eq.s32.totalorder %v859, %v892
          %vm967 = vcmp.eq.s32.totalorder %v859, %v895
          %vm968 = vcmp.eq.s32.totalorder %v859, %v898
          %vm969 = vcmp.eq.s32.totalorder %v859, %v901
          %vm970 = vcmp.eq.s32.totalorder %v859, %v904
          %vm971 = vcmp.eq.s32.totalorder %v859, %v907
          %vm972 = vcmp.eq.s32.totalorder %v859, %v910
          %vm973 = vcmp.eq.s32.totalorder %v859, %v913
          %vm974 = vcmp.eq.s32.totalorder %v859, %v916
          %vm975 = vcmp.eq.s32.totalorder %v859, %v919
          %vm976 = vcmp.eq.s32.totalorder %v859, %v922
          %vm977 = vcmp.eq.s32.totalorder %v859, %v925
          %vm978 = vcmp.eq.s32.totalorder %v859, %v928
          %vm979 = vcmp.eq.s32.totalorder %v859, %v931
          %vm980 = vcmp.eq.s32.totalorder %v859, %v934
          %vm981 = vcmp.eq.s32.totalorder %v859, %v937
          %vm982 = vcmp.eq.s32.totalorder %v859, %v940
          %vm983 = vcmp.eq.s32.totalorder %v859, %v943
          %vm984 = vcmp.eq.s32.totalorder %v859, %v946
          %vm985 = vcmp.eq.s32.totalorder %v859, %v949
          %vm986 = vcmp.eq.s32.totalorder %v859, %v952
          %vm987 = vcmp.eq.s32.totalorder %v859, %v955
          %v988 = vsel %vm956, 1, 0
          %v989 = vsel %vm957, 1, 0
          %v990 = vsel %vm958, 1, 0
          %v991 = vsel %vm959, 1, 0
          %v992 = vsel %vm960, 1, 0
          %v993 = vsel %vm961, 1, 0
          %v994 = vsel %vm962, 1, 0
          %v995 = vsel %vm963, 1, 0
          %v996 = vsel %vm964, 1, 0
          %v997 = vsel %vm965, 1, 0
          %v998 = vsel %vm966, 1, 0
          %v999 = vsel %vm967, 1, 0
          %v1000 = vsel %vm968, 1, 0
          %v1001 = vsel %vm969, 1, 0
          %v1002 = vsel %vm970, 1, 0
          %v1003 = vsel %vm971, 1, 0
          %v1004 = vsel %vm972, 1, 0
          %v1005 = vsel %vm973, 1, 0
          %v1006 = vsel %vm974, 1, 0
          %v1007 = vsel %vm975, 1, 0
          %v1008 = vsel %vm976, 1, 0
          %v1009 = vsel %vm977, 1, 0
          %v1010 = vsel %vm978, 1, 0
          %v1011 = vsel %vm979, 1, 0
          %v1012 = vsel %vm980, 1, 0
          %v1013 = vsel %vm981, 1, 0
          %v1014 = vsel %vm982, 1, 0
          %v1015 = vsel %vm983, 1, 0
          %v1016 = vsel %vm984, 1, 0
          %v1017 = vsel %vm985, 1, 0
          %v1018 = vsel %vm986, 1, 0
          %v1019 = vsel %vm987, 1, 0
          %v1020 = vcvt.s32.f32 %v988
          %v1021 = vcvt.s32.f32 %v989
          %v1022 = vcvt.s32.f32 %v990
          %v1023 = vcvt.s32.f32 %v991
          %v1024 = vcvt.s32.f32 %v992
          %v1025 = vcvt.s32.f32 %v993
          %v1026 = vcvt.s32.f32 %v994
          %v1027 = vcvt.s32.f32 %v995
          %v1028 = vcvt.s32.f32 %v996
          %v1029 = vcvt.s32.f32 %v997
          %v1030 = vcvt.s32.f32 %v998
          %v1031 = vcvt.s32.f32 %v999
          %v1032 = vcvt.s32.f32 %v1000
          %v1033 = vcvt.s32.f32 %v1001
          %v1034 = vcvt.s32.f32 %v1002
          %v1035 = vcvt.s32.f32 %v1003
          %v1036 = vcvt.s32.f32 %v1004
          %v1037 = vcvt.s32.f32 %v1005
          %v1038 = vcvt.s32.f32 %v1006
          %v1039 = vcvt.s32.f32 %v1007
          %v1040 = vcvt.s32.f32 %v1008
          %v1041 = vcvt.s32.f32 %v1009
          %v1042 = vcvt.s32.f32 %v1010
          %v1043 = vcvt.s32.f32 %v1011
          %v1044 = vcvt.s32.f32 %v1012
          %v1045 = vcvt.s32.f32 %v1013
          %v1046 = vcvt.s32.f32 %v1014
          %v1047 = vcvt.s32.f32 %v1015
          %v1048 = vcvt.s32.f32 %v1016
          %v1049 = vcvt.s32.f32 %v1017
          %v1050 = vcvt.s32.f32 %v1018
          %v1051 = vcvt.s32.f32 %v1019
          %1052 = vst [vmem:[#allocation3] sm:$0xff] %v1020
          %1053 = vst [vmem:[#allocation3 + $0x8] sm:$0xff] %v1021
          %1054 = vst [vmem:[#allocation3 + $0x10] sm:$0xff] %v1022
          %1055 = vst [vmem:[#allocation3 + $0x18] sm:$0xff] %v1023
          %1056 = vst [vmem:[#allocation3 + $0x20] sm:$0xff] %v1024
          %1057 = vst [vmem:[#allocation3 + $0x28] sm:$0xff] %v1025
          %1058 = vst [vmem:[#allocation3 + $0x30] sm:$0xff] %v1026
          %1059 = vst [vmem:[#allocation3 + $0x38] sm:$0xff] %v1027
          %1060 = vst [vmem:[#allocation3 + $0x40] sm:$0xff] %v1028
          %1061 = vst [vmem:[#allocation3 + $0x48] sm:$0xff] %v1029
          %1062 = vst [vmem:[#allocation3 + $0x50] sm:$0xff] %v1030
          %1063 = vst [vmem:[#allocation3 + $0x58] sm:$0xff] %v1031
          %1064 = vst [vmem:[#allocation3 + $0x60] sm:$0xff] %v1032
          %1065 = vst [vmem:[#allocation3 + $0x68] sm:$0xff] %v1033
          %1066 = vst [vmem:[#allocation3 + $0x70] sm:$0xff] %v1034
          %1067 = vst [vmem:[#allocation3 + $0x78] sm:$0xff] %v1035
          %1068 = vst [vmem:[#allocation3 + $0x80] sm:$0xff] %v1036
          %1069 = vst [vmem:[#allocation3 + $0x88] sm:$0xff] %v1037
          %1070 = vst [vmem:[#allocation3 + $0x90] sm:$0xff] %v1038
          %1071 = vst [vmem:[#allocation3 + $0x98] sm:$0xff] %v1039
          %1072 = vst [vmem:[#allocation3 + $0xa0] sm:$0xff] %v1040
          %1073 = vst [vmem:[#allocation3 + $0xa8] sm:$0xff] %v1041
          %1074 = vst [vmem:[#allocation3 + $0xb0] sm:$0xff] %v1042
          %1075 = vst [vmem:[#allocation3 + $0xb8] sm:$0xff] %v1043
          %1076 = vst [vmem:[#allocation3 + $0xc0] sm:$0xff] %v1044
          %1077 = vst [vmem:[#allocation3 + $0xc8] sm:$0xff] %v1045
          %1078 = vst [vmem:[#allocation3 + $0xd0] sm:$0xff] %v1046
          %1079 = vst [vmem:[#allocation3 + $0xd8] sm:$0xff] %v1047
          %1080 = vst [vmem:[#allocation3 + $0xe0] sm:$0xff] %v1048
          %1081 = vst [vmem:[#allocation3 + $0xe8] sm:$0xff] %v1049
          %1082 = vst [vmem:[#allocation3 + $0xf0] sm:$0xff] %v1050
          %1083 = vst [vmem:[#allocation3 + $0xf8] sm:$0xff] %v1051
          %v1084 = vlaneseq
          %v1085 = vshrl.u32 %v1084, 7
          %v1086 = vadd.s32 %v1085, 8
          %v1087 = vadd.s32 %v1085, 16
          %v1088 = vadd.s32 %v1085, 24
          %v1089 = vadd.s32 %v1085, 32
          %v1090 = vadd.s32 %v1085, 40
          %v1091 = vadd.s32 %v1085, 48
          %v1092 = vadd.s32 %v1085, 56
          %v1093 = vadd.s32 %v1085, 64
          %v1094 = vadd.s32 %v1085, 72
          %v1095 = vadd.s32 %v1085, 80
          %v1096 = vadd.s32 %v1085, 88
          %v1097 = vadd.s32 %v1085, 96
          %v1098 = vadd.s32 %v1085, 104
          %v1099 = vadd.s32 %v1085, 112
          %v1100 = vadd.s32 %v1085, 120
          %v1101 = vlaneseq
          %v1102 = vshrl.u32 %v1101, 7
          %v1103 = vsub.s32 0, %v1102
          %v1104 = vrot.slane %v857, %v1103
          %v1105 = vlaneseq
          %v1106 = vshrl.u32 %v1105, 7
          %v1107 = vsub.s32 1, %v1106
          %v1108 = vrot.slane %v857, %v1107
          %vm1109 = vcmp.eq.s32.totalorder %v1085, %v1104
          %vm1110 = vcmp.eq.s32.totalorder %v1085, %v1108
          %vm1111 = vcmp.eq.s32.totalorder %v1086, %v1104
          %vm1112 = vcmp.eq.s32.totalorder %v1086, %v1108
          %vm1113 = vcmp.eq.s32.totalorder %v1087, %v1104
          %vm1114 = vcmp.eq.s32.totalorder %v1087, %v1108
          %vm1115 = vcmp.eq.s32.totalorder %v1088, %v1104
          %vm1116 = vcmp.eq.s32.totalorder %v1088, %v1108
          %vm1117 = vcmp.eq.s32.totalorder %v1089, %v1104
          %vm1118 = vcmp.eq.s32.totalorder %v1089, %v1108
          %vm1119 = vcmp.eq.s32.totalorder %v1090, %v1104
          %vm1120 = vcmp.eq.s32.totalorder %v1090, %v1108
          %vm1121 = vcmp.eq.s32.totalorder %v1091, %v1104
          %vm1122 = vcmp.eq.s32.totalorder %v1091, %v1108
          %vm1123 = vcmp.eq.s32.totalorder %v1092, %v1104
          %vm1124 = vcmp.eq.s32.totalorder %v1092, %v1108
          %vm1125 = vcmp.eq.s32.totalorder %v1093, %v1104
          %vm1126 = vcmp.eq.s32.totalorder %v1093, %v1108
          %vm1127 = vcmp.eq.s32.totalorder %v1094, %v1104
          %vm1128 = vcmp.eq.s32.totalorder %v1094, %v1108
          %vm1129 = vcmp.eq.s32.totalorder %v1095, %v1104
          %vm1130 = vcmp.eq.s32.totalorder %v1095, %v1108
          %vm1131 = vcmp.eq.s32.totalorder %v1096, %v1104
          %vm1132 = vcmp.eq.s32.totalorder %v1096, %v1108
          %vm1133 = vcmp.eq.s32.totalorder %v1097, %v1104
          %vm1134 = vcmp.eq.s32.totalorder %v1097, %v1108
          %vm1135 = vcmp.eq.s32.totalorder %v1098, %v1104
          %vm1136 = vcmp.eq.s32.totalorder %v1098, %v1108
          %vm1137 = vcmp.eq.s32.totalorder %v1099, %v1104
          %vm1138 = vcmp.eq.s32.totalorder %v1099, %v1108
          %vm1139 = vcmp.eq.s32.totalorder %v1100, %v1104
          %vm1140 = vcmp.eq.s32.totalorder %v1100, %v1108
          %v1141 = vsel %vm1109, 1, 0
          %v1142 = vsel %vm1110, 1, 0
          %v1143 = vsel %vm1111, 1, 0
          %v1144 = vsel %vm1112, 1, 0
          %v1145 = vsel %vm1113, 1, 0
          %v1146 = vsel %vm1114, 1, 0
          %v1147 = vsel %vm1115, 1, 0
          %v1148 = vsel %vm1116, 1, 0
          %v1149 = vsel %vm1117, 1, 0
          %v1150 = vsel %vm1118, 1, 0
          %v1151 = vsel %vm1119, 1, 0
          %v1152 = vsel %vm1120, 1, 0
          %v1153 = vsel %vm1121, 1, 0
          %v1154 = vsel %vm1122, 1, 0
          %v1155 = vsel %vm1123, 1, 0
          %v1156 = vsel %vm1124, 1, 0
          %v1157 = vsel %vm1125, 1, 0
          %v1158 = vsel %vm1126, 1, 0
          %v1159 = vsel %vm1127, 1, 0
          %v1160 = vsel %vm1128, 1, 0
          %v1161 = vsel %vm1129, 1, 0
          %v1162 = vsel %vm1130, 1, 0
          %v1163 = vsel %vm1131, 1, 0
          %v1164 = vsel %vm1132, 1, 0
          %v1165 = vsel %vm1133, 1, 0
          %v1166 = vsel %vm1134, 1, 0
          %v1167 = vsel %vm1135, 1, 0
          %v1168 = vsel %vm1136, 1, 0
          %v1169 = vsel %vm1137, 1, 0
          %v1170 = vsel %vm1138, 1, 0
          %v1171 = vsel %vm1139, 1, 0
          %v1172 = vsel %vm1140, 1, 0
          %v1173 = vcvt.s32.f32 %v1141
          %v1174 = vcvt.s32.f32 %v1142
          %v1175 = vcvt.s32.f32 %v1143
          %v1176 = vcvt.s32.f32 %v1144
          %v1177 = vcvt.s32.f32 %v1145
          %v1178 = vcvt.s32.f32 %v1146
          %v1179 = vcvt.s32.f32 %v1147
          %v1180 = vcvt.s32.f32 %v1148
          %v1181 = vcvt.s32.f32 %v1149
          %v1182 = vcvt.s32.f32 %v1150
          %v1183 = vcvt.s32.f32 %v1151
          %v1184 = vcvt.s32.f32 %v1152
          %v1185 = vcvt.s32.f32 %v1153
          %v1186 = vcvt.s32.f32 %v1154
          %v1187 = vcvt.s32.f32 %v1155
          %v1188 = vcvt.s32.f32 %v1156
          %v1189 = vcvt.s32.f32 %v1157
          %v1190 = vcvt.s32.f32 %v1158
          %v1191 = vcvt.s32.f32 %v1159
          %v1192 = vcvt.s32.f32 %v1160
          %v1193 = vcvt.s32.f32 %v1161
          %v1194 = vcvt.s32.f32 %v1162
          %v1195 = vcvt.s32.f32 %v1163
          %v1196 = vcvt.s32.f32 %v1164
          %v1197 = vcvt.s32.f32 %v1165
          %v1198 = vcvt.s32.f32 %v1166
          %v1199 = vcvt.s32.f32 %v1167
          %v1200 = vcvt.s32.f32 %v1168
          %v1201 = vcvt.s32.f32 %v1169
          %v1202 = vcvt.s32.f32 %v1170
          %v1203 = vcvt.s32.f32 %v1171
          %v1204 = vcvt.s32.f32 %v1172
          %1205 = vst [vmem:[#allocation4] sm:$0xff] %v1173
          %1206 = vst [vmem:[#allocation4 + $0x8] sm:$0xff] %v1174
          %1207 = vst [vmem:[#allocation4 + $0x10] sm:$0xff] %v1175
          %1208 = vst [vmem:[#allocation4 + $0x18] sm:$0xff] %v1176
          %1209 = vst [vmem:[#allocation4 + $0x20] sm:$0xff] %v1177
          %1210 = vst [vmem:[#allocation4 + $0x28] sm:$0xff] %v1178
          %1211 = vst [vmem:[#allocation4 + $0x30] sm:$0xff] %v1179
          %1212 = vst [vmem:[#allocation4 + $0x38] sm:$0xff] %v1180
          %1213 = vst [vmem:[#allocation4 + $0x40] sm:$0xff] %v1181
          %1214 = vst [vmem:[#allocation4 + $0x48] sm:$0xff] %v1182
          %1215 = vst [vmem:[#allocation4 + $0x50] sm:$0xff] %v1183
          %1216 = vst [vmem:[#allocation4 + $0x58] sm:$0xff] %v1184
          %1217 = vst [vmem:[#allocation4 + $0x60] sm:$0xff] %v1185
          %1218 = vst [vmem:[#allocation4 + $0x68] sm:$0xff] %v1186
          %1219 = vst [vmem:[#allocation4 + $0x70] sm:$0xff] %v1187
          %1220 = vst [vmem:[#allocation4 + $0x78] sm:$0xff] %v1188
          %1221 = vst [vmem:[#allocation4 + $0x80] sm:$0xff] %v1189
          %1222 = vst [vmem:[#allocation4 + $0x88] sm:$0xff] %v1190
          %1223 = vst [vmem:[#allocation4 + $0x90] sm:$0xff] %v1191
          %1224 = vst [vmem:[#allocation4 + $0x98] sm:$0xff] %v1192
          %1225 = vst [vmem:[#allocation4 + $0xa0] sm:$0xff] %v1193
          %1226 = vst [vmem:[#allocation4 + $0xa8] sm:$0xff] %v1194
          %1227 = vst [vmem:[#allocation4 + $0xb0] sm:$0xff] %v1195
          %1228 = vst [vmem:[#allocation4 + $0xb8] sm:$0xff] %v1196
          %1229 = vst [vmem:[#allocation4 + $0xc0] sm:$0xff] %v1197
          %1230 = vst [vmem:[#allocation4 + $0xc8] sm:$0xff] %v1198
          %1231 = vst [vmem:[#allocation4 + $0xd0] sm:$0xff] %v1199
          %1232 = vst [vmem:[#allocation4 + $0xd8] sm:$0xff] %v1200
          %1233 = vst [vmem:[#allocation4 + $0xe0] sm:$0xff] %v1201
          %1234 = vst [vmem:[#allocation4 + $0xe8] sm:$0xff] %v1202
          %1235 = vst [vmem:[#allocation4 + $0xf0] sm:$0xff] %v1203
          %1236 = vst [vmem:[#allocation4 + $0xf8] sm:$0xff] %v1204
        $region96: #{tpu_custom_call.1} parent=75 // pred_fallthru
          _
        %v1237 = vld [vmem:[#allocation2] sm:$0xff]
        %v1238 = vld [vmem:[#allocation2 + $0x8] sm:$0xff]
        %v1239 = vld [vmem:[#allocation2 + $0x10] sm:$0xff]
        %v1240 = vld [vmem:[#allocation2 + $0x18] sm:$0xff]
        %v1241 = vld [vmem:[#allocation2 + $0x20] sm:$0xff]
        %v1242 = vld [vmem:[#allocation2 + $0x28] sm:$0xff]
        %v1243 = vld [vmem:[#allocation2 + $0x30] sm:$0xff]
        %v1244 = vld [vmem:[#allocation2 + $0x38] sm:$0xff]
        %v1245 = vld [vmem:[#allocation2 + $0x40] sm:$0xff]
        %v1246 = vld [vmem:[#allocation2 + $0x48] sm:$0xff]
        %v1247 = vld [vmem:[#allocation2 + $0x50] sm:$0xff]
        %v1248 = vld [vmem:[#allocation2 + $0x58] sm:$0xff]
        %v1249 = vld [vmem:[#allocation2 + $0x60] sm:$0xff]
        %v1250 = vld [vmem:[#allocation2 + $0x68] sm:$0xff]
        %v1251 = vld [vmem:[#allocation2 + $0x70] sm:$0xff]
        %v1252 = vld [vmem:[#allocation2 + $0x78] sm:$0xff]
        %v1253 = vld [vmem:[%s765] sm:$0xff]
        %v1254 = vld [vmem:[%s765 + $0x8] sm:$0xff]
        %v1255 = vld [vmem:[%s765 + $0x10] sm:$0xff]
        %v1256 = vld [vmem:[%s765 + $0x18] sm:$0xff]
        %v1257 = vld [vmem:[%s765 + $0x20] sm:$0xff]
        %v1258 = vld [vmem:[%s765 + $0x28] sm:$0xff]
        %v1259 = vld [vmem:[%s765 + $0x30] sm:$0xff]
        %v1260 = vld [vmem:[%s765 + $0x38] sm:$0xff]
        %v1261 = vld [vmem:[%s765 + $0x40] sm:$0xff]
        %v1262 = vld [vmem:[%s765 + $0x48] sm:$0xff]
        %v1263 = vld [vmem:[%s765 + $0x50] sm:$0xff]
        %v1264 = vld [vmem:[%s765 + $0x58] sm:$0xff]
        %v1265 = vld [vmem:[%s765 + $0x60] sm:$0xff]
        %v1266 = vld [vmem:[%s765 + $0x68] sm:$0xff]
        %v1267 = vld [vmem:[%s765 + $0x70] sm:$0xff]
        %v1268 = vld [vmem:[%s765 + $0x78] sm:$0xff]
        %v1269 = vld [vmem:[%s765 + $0x80] sm:$0xff]
        %v1270 = vld [vmem:[%s765 + $0x88] sm:$0xff]
        %v1271 = vld [vmem:[%s765 + $0x90] sm:$0xff]
        %v1272 = vld [vmem:[%s765 + $0x98] sm:$0xff]
        %v1273 = vld [vmem:[%s765 + $0xa0] sm:$0xff]
        %v1274 = vld [vmem:[%s765 + $0xa8] sm:$0xff]
        %v1275 = vld [vmem:[%s765 + $0xb0] sm:$0xff]
        %v1276 = vld [vmem:[%s765 + $0xb8] sm:$0xff]
        %v1277 = vld [vmem:[%s765 + $0xc0] sm:$0xff]
        %v1278 = vld [vmem:[%s765 + $0xc8] sm:$0xff]
        %v1279 = vld [vmem:[%s765 + $0xd0] sm:$0xff]
        %v1280 = vld [vmem:[%s765 + $0xd8] sm:$0xff]
        %v1281 = vld [vmem:[%s765 + $0xe0] sm:$0xff]
        %v1282 = vld [vmem:[%s765 + $0xe8] sm:$0xff]
        %v1283 = vld [vmem:[%s765 + $0xf0] sm:$0xff]
        %v1284 = vld [vmem:[%s765 + $0xf8] sm:$0xff]
        %v1285 = vld [vmem:[%s770] sm:$0xff]
        %v1286 = vld [vmem:[%s770 + $0x8] sm:$0xff]
        %v1287 = vld [vmem:[%s770 + $0x10] sm:$0xff]
        %v1288 = vld [vmem:[%s770 + $0x18] sm:$0xff]
        %v1289 = vld [vmem:[%s770 + $0x20] sm:$0xff]
        %v1290 = vld [vmem:[%s770 + $0x28] sm:$0xff]
        %v1291 = vld [vmem:[%s770 + $0x30] sm:$0xff]
        %v1292 = vld [vmem:[%s770 + $0x38] sm:$0xff]
        %v1293 = vld [vmem:[%s770 + $0x40] sm:$0xff]
        %v1294 = vld [vmem:[%s770 + $0x48] sm:$0xff]
        %v1295 = vld [vmem:[%s770 + $0x50] sm:$0xff]
        %v1296 = vld [vmem:[%s770 + $0x58] sm:$0xff]
        %v1297 = vld [vmem:[%s770 + $0x60] sm:$0xff]
        %v1298 = vld [vmem:[%s770 + $0x68] sm:$0xff]
        %v1299 = vld [vmem:[%s770 + $0x70] sm:$0xff]
        %v1300 = vld [vmem:[%s770 + $0x78] sm:$0xff]
        %v1301 = vld [vmem:[%s770 + $0x80] sm:$0xff]
        %v1302 = vld [vmem:[%s770 + $0x88] sm:$0xff]
        %v1303 = vld [vmem:[%s770 + $0x90] sm:$0xff]
        %v1304 = vld [vmem:[%s770 + $0x98] sm:$0xff]
        %v1305 = vld [vmem:[%s770 + $0xa0] sm:$0xff]
        %v1306 = vld [vmem:[%s770 + $0xa8] sm:$0xff]
        %v1307 = vld [vmem:[%s770 + $0xb0] sm:$0xff]
        %v1308 = vld [vmem:[%s770 + $0xb8] sm:$0xff]
        %v1309 = vld [vmem:[%s770 + $0xc0] sm:$0xff]
        %v1310 = vld [vmem:[%s770 + $0xc8] sm:$0xff]
        %v1311 = vld [vmem:[%s770 + $0xd0] sm:$0xff]
        %v1312 = vld [vmem:[%s770 + $0xd8] sm:$0xff]
        %v1313 = vld [vmem:[%s770 + $0xe0] sm:$0xff]
        %v1314 = vld [vmem:[%s770 + $0xe8] sm:$0xff]
        %v1315 = vld [vmem:[%s770 + $0xf0] sm:$0xff]
        %v1316 = vld [vmem:[%s770 + $0xf8] sm:$0xff]
        %v1317 = vld [vmem:[%s775] sm:$0xf]
        %v1318 = vld [vmem:[%s775 + $0x4] sm:$0xf]
        %v1319 = vld [vmem:[%s775 + $0x8] sm:$0xf]
        %v1320 = vld [vmem:[%s775 + $0xc] sm:$0xf]
        %v1321 = vld [vmem:[%s775 + $0x10] sm:$0xf]
        %v1322 = vld [vmem:[%s775 + $0x14] sm:$0xf]
        %v1323 = vld [vmem:[%s775 + $0x18] sm:$0xf]
        %v1324 = vld [vmem:[%s775 + $0x1c] sm:$0xf]
        %v1325 = vld [vmem:[%s775 + $0x20] sm:$0xf]
        %v1326 = vld [vmem:[%s775 + $0x24] sm:$0xf]
        %v1327 = vld [vmem:[%s775 + $0x28] sm:$0xf]
        %v1328 = vld [vmem:[%s775 + $0x2c] sm:$0xf]
        %v1329 = vld [vmem:[%s775 + $0x30] sm:$0xf]
        %v1330 = vld [vmem:[%s775 + $0x34] sm:$0xf]
        %v1331 = vld [vmem:[%s775 + $0x38] sm:$0xf]
        %v1332 = vld [vmem:[%s775 + $0x3c] sm:$0xf]
        %v1333 = vpack.c.bf16 %v1286, %v1285
        %v1334 = vpack.c.bf16 %v1288, %v1287
        %v1335 = vpack.c.bf16 %v1290, %v1289
        %v1336 = vpack.c.bf16 %v1292, %v1291
        %v1337 = vpack.c.bf16 %v1294, %v1293
        %v1338 = vpack.c.bf16 %v1296, %v1295
        %v1339 = vpack.c.bf16 %v1298, %v1297
        %v1340 = vpack.c.bf16 %v1300, %v1299
        %v1341 = vpack.c.bf16 %v1302, %v1301
        %v1342 = vpack.c.bf16 %v1304, %v1303
        %v1343 = vpack.c.bf16 %v1306, %v1305
        %v1344 = vpack.c.bf16 %v1308, %v1307
        %v1345 = vpack.c.bf16 %v1310, %v1309
        %v1346 = vpack.c.bf16 %v1312, %v1311
        %v1347 = vpack.c.bf16 %v1314, %v1313
        %v1348 = vpack.c.bf16 %v1316, %v1315
        %v1349 = vld [vmem:[%s778] sm:$0x1]
        %v1351 = vlaneseq
        %v1352 = vshrl.u32 %v1351, 7
        %v1353 = vsub.s32 0, %v1352
        %v1354 = vrot.slane %v1349, %v1353
        %v1372 = vunpack.c.l.b16 %v1317
        %v1373 = vunpack.c.l.b16 %v1318
        %v1374 = vunpack.c.l.b16 %v1319
        %v1375 = vunpack.c.l.b16 %v1320
        %v1376 = vunpack.c.l.b16 %v1321
        %v1377 = vunpack.c.l.b16 %v1322
        %v1378 = vunpack.c.l.b16 %v1323
        %v1379 = vunpack.c.l.b16 %v1324
        %v1380 = vunpack.c.l.b16 %v1325
        %v1381 = vunpack.c.l.b16 %v1326
        %v1382 = vunpack.c.l.b16 %v1327
        %v1383 = vunpack.c.l.b16 %v1328
        %v1384 = vunpack.c.l.b16 %v1329
        %v1385 = vunpack.c.l.b16 %v1330
        %v1386 = vunpack.c.l.b16 %v1331
        %v1387 = vunpack.c.l.b16 %v1332
        %v1388 = vpack.c.b16 %v1373, %v1372
        %v1389 = vpack.c.b16 %v1375, %v1374
        %v1390 = vpack.c.b16 %v1377, %v1376
        %v1391 = vpack.c.b16 %v1379, %v1378
        %v1392 = vpack.c.b16 %v1381, %v1380
        %v1393 = vpack.c.b16 %v1383, %v1382
        %v1394 = vpack.c.b16 %v1385, %v1384
        %v1395 = vpack.c.b16 %v1387, %v1386
        %1404 = vmatprep.subr.bf16.mxu0 0
        %1405 = vmatpush1.bf16.msra.mxu0 %v1388
        %1406 = vmatprep.subr.bf16.mxu0 0
        %1407 = vmatpush1.bf16.msra.mxu0 %v1389
        %1408 = vmatprep.subr.bf16.mxu0 0
        %1409 = vmatpush1.bf16.msra.mxu0 %v1390
        %1410 = vmatprep.subr.bf16.mxu0 0
        %1411 = vmatpush1.bf16.msra.mxu0 %v1391
        %1412 = vmatprep.subr.bf16.mxu0 0
        %1413 = vmatpush1.bf16.msra.mxu0 %v1392
        %1414 = vmatprep.subr.bf16.mxu0 0
        %1415 = vmatpush1.bf16.msra.mxu0 %v1393
        %1416 = vmatprep.subr.bf16.mxu0 0
        %1417 = vmatpush1.bf16.msra.mxu0 %v1394
        %1418 = vmatprep.subr.bf16.mxu0 0
        %1419 = vmatpush1.bf16.msra.mxu0 %v1395
        %1420 = vmatprep.subr.bf16.mxu0 0
        %1421 = vmatpush1.bf16.msra.mxu0 0
        %1422 = vmatprep.subr.bf16.mxu0 0
        %1423 = vmatpush1.bf16.msra.mxu0 0
        %1424 = vmatprep.subr.bf16.mxu0 0
        %1425 = vmatpush1.bf16.msra.mxu0 0
        %1426 = vmatprep.subr.bf16.mxu0 0
        %1427 = vmatpush1.bf16.msra.mxu0 0
        %1428 = vmatprep.subr.bf16.mxu0 0
        %1429 = vmatpush1.bf16.msra.mxu0 0
        %1430 = vmatprep.subr.bf16.mxu0 0
        %1431 = vmatpush1.bf16.msra.mxu0 0
        %1432 = vmatprep.subr.bf16.mxu0 0
        %1433 = vmatpush1.bf16.msra.mxu0 0
        %1434 = vmatprep.subr.bf16.mxu0 0
        %1435 = vmatpush1.bf16.msra.mxu0 0
        %1436 = vmatprep.mubr.bf16.mxu0 0
        %1437 = vmatmul.mubr.bf16.gmra.mrb[0].mxu0 %v1333
        %v1438 = vpop.f32.mrb[0].mxu0
        %v1439 = vadd.f32 %v1354, %v1438
        %v1440 = vpop.f32.mrb[0].mxu0
        %v1441 = vpop.f32.mrb[0].mxu0
        %v1442 = vadd.f32 %v1354, %v1441
        %v1443 = vpop.f32.mrb[0].mxu0
        %1444 = vmatprep.mubr.bf16.mxu0 0
        %1445 = vmatmul.mubr.bf16.gmra.mrb[0].mxu0 %v1334
        %v1446 = vpop.f32.mrb[0].mxu0
        %v1447 = vadd.f32 %v1354, %v1446
        %v1448 = vpop.f32.mrb[0].mxu0
        %v1449 = vpop.f32.mrb[0].mxu0
        %v1450 = vadd.f32 %v1354, %v1449
        %v1451 = vpop.f32.mrb[0].mxu0
        %1452 = vmatprep.mubr.bf16.mxu0 0
        %1453 = vmatmul.mubr.bf16.gmra.mrb[0].mxu0 %v1335
        %v1454 = vpop.f32.mrb[0].mxu0
        %v1455 = vadd.f32 %v1354, %v1454
        %v1456 = vpop.f32.mrb[0].mxu0
        %v1457 = vpop.f32.mrb[0].mxu0
        %v1458 = vadd.f32 %v1354, %v1457
        %v1459 = vpop.f32.mrb[0].mxu0
        %1460 = vmatprep.mubr.bf16.mxu0 0
        %1461 = vmatmul.mubr.bf16.gmra.mrb[0].mxu0 %v1336
        %v1462 = vpop.f32.mrb[0].mxu0
        %v1463 = vadd.f32 %v1354, %v1462
        %v1464 = vpop.f32.mrb[0].mxu0
        %v1465 = vpop.f32.mrb[0].mxu0
        %v1466 = vadd.f32 %v1354, %v1465
        %v1467 = vpop.f32.mrb[0].mxu0
        %1468 = vmatprep.mubr.bf16.mxu0 0
        %1469 = vmatmul.mubr.bf16.gmra.mrb[0].mxu0 %v1337
        %v1470 = vpop.f32.mrb[0].mxu0
        %v1471 = vadd.f32 %v1354, %v1470
        %v1472 = vpop.f32.mrb[0].mxu0
        %v1473 = vpop.f32.mrb[0].mxu0
        %v1474 = vadd.f32 %v1354, %v1473
        %v1475 = vpop.f32.mrb[0].mxu0
        %1476 = vmatprep.mubr.bf16.mxu0 0
        %1477 = vmatmul.mubr.bf16.gmra.mrb[0].mxu0 %v1338
        %v1478 = vpop.f32.mrb[0].mxu0
        %v1479 = vadd.f32 %v1354, %v1478
        %v1480 = vpop.f32.mrb[0].mxu0
        %v1481 = vpop.f32.mrb[0].mxu0
        %v1482 = vadd.f32 %v1354, %v1481
        %v1483 = vpop.f32.mrb[0].mxu0
        %1484 = vmatprep.mubr.bf16.mxu0 0
        %1485 = vmatmul.mubr.bf16.gmra.mrb[0].mxu0 %v1339
        %v1486 = vpop.f32.mrb[0].mxu0
        %v1487 = vadd.f32 %v1354, %v1486
        %v1488 = vpop.f32.mrb[0].mxu0
        %v1489 = vpop.f32.mrb[0].mxu0
        %v1490 = vadd.f32 %v1354, %v1489
        %v1491 = vpop.f32.mrb[0].mxu0
        %1492 = vmatprep.mubr.bf16.mxu0 0
        %1493 = vmatmul.mubr.bf16.gmra.mrb[0].mxu0 %v1340
        %v1494 = vpop.f32.mrb[0].mxu0
        %v1495 = vadd.f32 %v1354, %v1494
        %v1496 = vpop.f32.mrb[0].mxu0
        %v1497 = vpop.f32.mrb[0].mxu0
        %v1498 = vadd.f32 %v1354, %v1497
        %v1499 = vpop.f32.mrb[0].mxu0
        %1500 = vmatprep.mubr.bf16.mxu0 0
        %1501 = vmatmul.mubr.bf16.gmra.mrb[0].mxu0 %v1341
        %v1502 = vpop.f32.mrb[0].mxu0
        %v1503 = vadd.f32 %v1354, %v1502
        %v1504 = vpop.f32.mrb[0].mxu0
        %v1505 = vpop.f32.mrb[0].mxu0
        %v1506 = vadd.f32 %v1354, %v1505
        %v1507 = vpop.f32.mrb[0].mxu0
        %1508 = vmatprep.mubr.bf16.mxu0 0
        %1509 = vmatmul.mubr.bf16.gmra.mrb[0].mxu0 %v1342
        %v1510 = vpop.f32.mrb[0].mxu0
        %v1511 = vadd.f32 %v1354, %v1510
        %v1512 = vpop.f32.mrb[0].mxu0
        %v1513 = vpop.f32.mrb[0].mxu0
        %v1514 = vadd.f32 %v1354, %v1513
        %v1515 = vpop.f32.mrb[0].mxu0
        %1516 = vmatprep.mubr.bf16.mxu0 0
        %1517 = vmatmul.mubr.bf16.gmra.mrb[0].mxu0 %v1343
        %v1518 = vpop.f32.mrb[0].mxu0
        %v1519 = vadd.f32 %v1354, %v1518
        %v1520 = vpop.f32.mrb[0].mxu0
        %v1521 = vpop.f32.mrb[0].mxu0
        %v1522 = vadd.f32 %v1354, %v1521
        %v1523 = vpop.f32.mrb[0].mxu0
        %1524 = vmatprep.mubr.bf16.mxu0 0
        %1525 = vmatmul.mubr.bf16.gmra.mrb[0].mxu0 %v1344
        %v1526 = vpop.f32.mrb[0].mxu0
        %v1527 = vadd.f32 %v1354, %v1526
        %v1528 = vpop.f32.mrb[0].mxu0
        %v1529 = vpop.f32.mrb[0].mxu0
        %v1530 = vadd.f32 %v1354, %v1529
        %v1531 = vpop.f32.mrb[0].mxu0
        %1532 = vmatprep.mubr.bf16.mxu0 0
        %1533 = vmatmul.mubr.bf16.gmra.mrb[0].mxu0 %v1345
        %v1534 = vpop.f32.mrb[0].mxu0
        %v1535 = vadd.f32 %v1354, %v1534
        %v1536 = vpop.f32.mrb[0].mxu0
        %v1537 = vpop.f32.mrb[0].mxu0
        %v1538 = vadd.f32 %v1354, %v1537
        %v1539 = vpop.f32.mrb[0].mxu0
        %1540 = vmatprep.mubr.bf16.mxu0 0
        %1541 = vmatmul.mubr.bf16.gmra.mrb[0].mxu0 %v1346
        %v1542 = vpop.f32.mrb[0].mxu0
        %v1543 = vadd.f32 %v1354, %v1542
        %v1544 = vpop.f32.mrb[0].mxu0
        %v1545 = vpop.f32.mrb[0].mxu0
        %v1546 = vadd.f32 %v1354, %v1545
        %v1547 = vpop.f32.mrb[0].mxu0
        %1548 = vmatprep.mubr.bf16.mxu0 0
        %1549 = vmatmul.mubr.bf16.gmra.mrb[0].mxu0 %v1347
        %v1550 = vpop.f32.mrb[0].mxu0
        %v1551 = vadd.f32 %v1354, %v1550
        %v1552 = vpop.f32.mrb[0].mxu0
        %v1553 = vpop.f32.mrb[0].mxu0
        %v1554 = vadd.f32 %v1354, %v1553
        %v1555 = vpop.f32.mrb[0].mxu0
        %1556 = vmatprep.mubr.bf16.mxu0 0
        %1557 = vmatmul.mubr.bf16.gmra.mrb[0].mxu0 %v1348
        %v1558 = vpop.f32.mrb[0].mxu0
        %v1559 = vadd.f32 %v1354, %v1558
        %v1560 = vpop.f32.mrb[0].mxu0
        %v1561 = vpop.f32.mrb[0].mxu0
        %v1562 = vadd.f32 %v1354, %v1561
        %v1563 = vpop.f32.mrb[0].mxu0
        %1564 = vdwg.mxu0
        %v1565 = vmax.f32 %v1439, 0.0
        %v1566 = vmax.f32 %v1442, 0.0
        %v1567 = vmax.f32 %v1447, 0.0
        %v1568 = vmax.f32 %v1450, 0.0
        %v1569 = vmax.f32 %v1455, 0.0
        %v1570 = vmax.f32 %v1458, 0.0
        %v1571 = vmax.f32 %v1463, 0.0
        %v1572 = vmax.f32 %v1466, 0.0
        %v1573 = vmax.f32 %v1471, 0.0
        %v1574 = vmax.f32 %v1474, 0.0
        %v1575 = vmax.f32 %v1479, 0.0
        %v1576 = vmax.f32 %v1482, 0.0
        %v1577 = vmax.f32 %v1487, 0.0
        %v1578 = vmax.f32 %v1490, 0.0
        %v1579 = vmax.f32 %v1495, 0.0
        %v1580 = vmax.f32 %v1498, 0.0
        %v1581 = vmax.f32 %v1503, 0.0
        %v1582 = vmax.f32 %v1506, 0.0
        %v1583 = vmax.f32 %v1511, 0.0
        %v1584 = vmax.f32 %v1514, 0.0
        %v1585 = vmax.f32 %v1519, 0.0
        %v1586 = vmax.f32 %v1522, 0.0
        %v1587 = vmax.f32 %v1527, 0.0
        %v1588 = vmax.f32 %v1530, 0.0
        %v1589 = vmax.f32 %v1535, 0.0
        %v1590 = vmax.f32 %v1538, 0.0
        %v1591 = vmax.f32 %v1543, 0.0
        %v1592 = vmax.f32 %v1546, 0.0
        %v1593 = vmax.f32 %v1551, 0.0
        %v1594 = vmax.f32 %v1554, 0.0
        %v1595 = vmax.f32 %v1559, 0.0
        %v1596 = vmax.f32 %v1562, 0.0
        %v1597 = vand.u32 2147483647, %v1439
        %v1598 = vand.u32 2147483647, %v1442
        %v1599 = vand.u32 2147483647, %v1447
        %v1600 = vand.u32 2147483647, %v1450
        %v1601 = vand.u32 2147483647, %v1455
        %v1602 = vand.u32 2147483647, %v1458
        %v1603 = vand.u32 2147483647, %v1463
        %v1604 = vand.u32 2147483647, %v1466
        %v1605 = vand.u32 2147483647, %v1471
        %v1606 = vand.u32 2147483647, %v1474
        %v1607 = vand.u32 2147483647, %v1479
        %v1608 = vand.u32 2147483647, %v1482
        %v1609 = vand.u32 2147483647, %v1487
        %v1610 = vand.u32 2147483647, %v1490
        %v1611 = vand.u32 2147483647, %v1495
        %v1612 = vand.u32 2147483647, %v1498
        %v1613 = vand.u32 2147483647, %v1503
        %v1614 = vand.u32 2147483647, %v1506
        %v1615 = vand.u32 2147483647, %v1511
        %v1616 = vand.u32 2147483647, %v1514
        %v1617 = vand.u32 2147483647, %v1519
        %v1618 = vand.u32 2147483647, %v1522
        %v1619 = vand.u32 2147483647, %v1527
        %v1620 = vand.u32 2147483647, %v1530
        %v1621 = vand.u32 2147483647, %v1535
        %v1622 = vand.u32 2147483647, %v1538
        %v1623 = vand.u32 2147483647, %v1543
        %v1624 = vand.u32 2147483647, %v1546
        %v1625 = vand.u32 2147483647, %v1551
        %v1626 = vand.u32 2147483647, %v1554
        %v1627 = vand.u32 2147483647, %v1559
        %v1628 = vand.u32 2147483647, %v1562
        %v1629 = vsub.f32 0.0, %v1597
        %v1630 = vsub.f32 0.0, %v1598
        %v1631 = vsub.f32 0.0, %v1599
        %v1632 = vsub.f32 0.0, %v1600
        %v1633 = vsub.f32 0.0, %v1601
        %v1634 = vsub.f32 0.0, %v1602
        %v1635 = vsub.f32 0.0, %v1603
        %v1636 = vsub.f32 0.0, %v1604
        %v1637 = vsub.f32 0.0, %v1605
        %v1638 = vsub.f32 0.0, %v1606
        %v1639 = vsub.f32 0.0, %v1607
        %v1640 = vsub.f32 0.0, %v1608
        %v1641 = vsub.f32 0.0, %v1609
        %v1642 = vsub.f32 0.0, %v1610
        %v1643 = vsub.f32 0.0, %v1611
        %v1644 = vsub.f32 0.0, %v1612
        %v1645 = vsub.f32 0.0, %v1613
        %v1646 = vsub.f32 0.0, %v1614
        %v1647 = vsub.f32 0.0, %v1615
        %v1648 = vsub.f32 0.0, %v1616
        %v1649 = vsub.f32 0.0, %v1617
        %v1650 = vsub.f32 0.0, %v1618
        %v1651 = vsub.f32 0.0, %v1619
        %v1652 = vsub.f32 0.0, %v1620
        %v1653 = vsub.f32 0.0, %v1621
        %v1654 = vsub.f32 0.0, %v1622
        %v1655 = vsub.f32 0.0, %v1623
        %v1656 = vsub.f32 0.0, %v1624
        %v1657 = vsub.f32 0.0, %v1625
        %v1658 = vsub.f32 0.0, %v1626
        %v1659 = vsub.f32 0.0, %v1627
        %v1660 = vsub.f32 0.0, %v1628
        %v1661 = vmul.f32 %v1629, 1.442695
        %v1662 = vpow.pop %v1661
        %v1663 = vmul.f32 %v1630, 1.442695
        %v1664 = vpow.pop %v1663
        %v1665 = vmul.f32 %v1631, 1.442695
        %v1666 = vpow.pop %v1665
        %v1667 = vmul.f32 %v1632, 1.442695
        %v1668 = vpow.pop %v1667
        %v1669 = vmul.f32 %v1633, 1.442695
        %v1670 = vpow.pop %v1669
        %v1671 = vmul.f32 %v1634, 1.442695
        %v1672 = vpow.pop %v1671
        %v1673 = vmul.f32 %v1635, 1.442695
        %v1674 = vpow.pop %v1673
        %v1675 = vmul.f32 %v1636, 1.442695
        %v1676 = vpow.pop %v1675
        %v1677 = vmul.f32 %v1637, 1.442695
        %v1678 = vpow.pop %v1677
        %v1679 = vmul.f32 %v1638, 1.442695
        %v1680 = vpow.pop %v1679
        %v1681 = vmul.f32 %v1639, 1.442695
        %v1682 = vpow.pop %v1681
        %v1683 = vmul.f32 %v1640, 1.442695
        %v1684 = vpow.pop %v1683
        %v1685 = vmul.f32 %v1641, 1.442695
        %v1686 = vpow.pop %v1685
        %v1687 = vmul.f32 %v1642, 1.442695
        %v1688 = vpow.pop %v1687
        %v1689 = vmul.f32 %v1643, 1.442695
        %v1690 = vpow.pop %v1689
        %v1691 = vmul.f32 %v1644, 1.442695
        %v1692 = vpow.pop %v1691
        %v1693 = vmul.f32 %v1645, 1.442695
        %v1694 = vpow.pop %v1693
        %v1695 = vmul.f32 %v1646, 1.442695
        %v1696 = vpow.pop %v1695
        %v1697 = vmul.f32 %v1647, 1.442695
        %v1698 = vpow.pop %v1697
        %v1699 = vmul.f32 %v1648, 1.442695
        %v1700 = vpow.pop %v1699
        %v1701 = vmul.f32 %v1649, 1.442695
        %v1702 = vpow.pop %v1701
        %v1703 = vmul.f32 %v1650, 1.442695
        %v1704 = vpow.pop %v1703
        %v1705 = vmul.f32 %v1651, 1.442695
        %v1706 = vpow.pop %v1705
        %v1707 = vmul.f32 %v1652, 1.442695
        %v1708 = vpow.pop %v1707
        %v1709 = vmul.f32 %v1653, 1.442695
        %v1710 = vpow.pop %v1709
        %v1711 = vmul.f32 %v1654, 1.442695
        %v1712 = vpow.pop %v1711
        %v1713 = vmul.f32 %v1655, 1.442695
        %v1714 = vpow.pop %v1713
        %v1715 = vmul.f32 %v1656, 1.442695
        %v1716 = vpow.pop %v1715
        %v1717 = vmul.f32 %v1657, 1.442695
        %v1718 = vpow.pop %v1717
        %v1719 = vmul.f32 %v1658, 1.442695
        %v1720 = vpow.pop %v1719
        %v1721 = vmul.f32 %v1659, 1.442695
        %v1722 = vpow.pop %v1721
        %v1723 = vmul.f32 %v1660, 1.442695
        %v1724 = vpow.pop %v1723
        %v1725 = vadd.f32 %v1662, 1.0
        %v1726 = vadd.f32 %v1664, 1.0
        %v1727 = vadd.f32 %v1666, 1.0
        %v1728 = vadd.f32 %v1668, 1.0
        %v1729 = vadd.f32 %v1670, 1.0
        %v1730 = vadd.f32 %v1672, 1.0
        %v1731 = vadd.f32 %v1674, 1.0
        %v1732 = vadd.f32 %v1676, 1.0
        %v1733 = vadd.f32 %v1678, 1.0
        %v1734 = vadd.f32 %v1680, 1.0
        %v1735 = vadd.f32 %v1682, 1.0
        %v1736 = vadd.f32 %v1684, 1.0
        %v1737 = vadd.f32 %v1686, 1.0
        %v1738 = vadd.f32 %v1688, 1.0
        %v1739 = vadd.f32 %v1690, 1.0
        %v1740 = vadd.f32 %v1692, 1.0
        %v1741 = vadd.f32 %v1694, 1.0
        %v1742 = vadd.f32 %v1696, 1.0
        %v1743 = vadd.f32 %v1698, 1.0
        %v1744 = vadd.f32 %v1700, 1.0
        %v1745 = vadd.f32 %v1702, 1.0
        %v1746 = vadd.f32 %v1704, 1.0
        %v1747 = vadd.f32 %v1706, 1.0
        %v1748 = vadd.f32 %v1708, 1.0
        %v1749 = vadd.f32 %v1710, 1.0
        %v1750 = vadd.f32 %v1712, 1.0
        %v1751 = vadd.f32 %v1714, 1.0
        %v1752 = vadd.f32 %v1716, 1.0
        %v1753 = vadd.f32 %v1718, 1.0
        %v1754 = vadd.f32 %v1720, 1.0
        %v1755 = vadd.f32 %v1722, 1.0
        %v1756 = vadd.f32 %v1724, 1.0
        %v1757 = vlog2.pop %v1725
        %v1758 = vmul.f32 %v1757, 0.6931472
        %v1759 = vlog2.pop %v1726
        %v1760 = vmul.f32 %v1759, 0.6931472
        %v1761 = vlog2.pop %v1727
        %v1762 = vmul.f32 %v1761, 0.6931472
        %v1763 = vlog2.pop %v1728
        %v1764 = vmul.f32 %v1763, 0.6931472
        %v1765 = vlog2.pop %v1729
        %v1766 = vmul.f32 %v1765, 0.6931472
        %v1767 = vlog2.pop %v1730
        %v1768 = vmul.f32 %v1767, 0.6931472
        %v1769 = vlog2.pop %v1731
        %v1770 = vmul.f32 %v1769, 0.6931472
        %v1771 = vlog2.pop %v1732
        %v1772 = vmul.f32 %v1771, 0.6931472
        %v1773 = vlog2.pop %v1733
        %v1774 = vmul.f32 %v1773, 0.6931472
        %v1775 = vlog2.pop %v1734
        %v1776 = vmul.f32 %v1775, 0.6931472
        %v1777 = vlog2.pop %v1735
        %v1778 = vmul.f32 %v1777, 0.6931472
        %v1779 = vlog2.pop %v1736
        %v1780 = vmul.f32 %v1779, 0.6931472
        %v1781 = vlog2.pop %v1737
        %v1782 = vmul.f32 %v1781, 0.6931472
        %v1783 = vlog2.pop %v1738
        %v1784 = vmul.f32 %v1783, 0.6931472
        %v1785 = vlog2.pop %v1739
        %v1786 = vmul.f32 %v1785, 0.6931472
        %v1787 = vlog2.pop %v1740
        %v1788 = vmul.f32 %v1787, 0.6931472
        %v1789 = vlog2.pop %v1741
        %v1790 = vmul.f32 %v1789, 0.6931472
        %v1791 = vlog2.pop %v1742
        %v1792 = vmul.f32 %v1791, 0.6931472
        %v1793 = vlog2.pop %v1743
        %v1794 = vmul.f32 %v1793, 0.6931472
        %v1795 = vlog2.pop %v1744
        %v1796 = vmul.f32 %v1795, 0.6931472
        %v1797 = vlog2.pop %v1745
        %v1798 = vmul.f32 %v1797, 0.6931472
        %v1799 = vlog2.pop %v1746
        %v1800 = vmul.f32 %v1799, 0.6931472
        %v1801 = vlog2.pop %v1747
        %v1802 = vmul.f32 %v1801, 0.6931472
        %v1803 = vlog2.pop %v1748
        %v1804 = vmul.f32 %v1803, 0.6931472
        %v1805 = vlog2.pop %v1749
        %v1806 = vmul.f32 %v1805, 0.6931472
        %v1807 = vlog2.pop %v1750
        %v1808 = vmul.f32 %v1807, 0.6931472
        %v1809 = vlog2.pop %v1751
        %v1810 = vmul.f32 %v1809, 0.6931472
        %v1811 = vlog2.pop %v1752
        %v1812 = vmul.f32 %v1811, 0.6931472
        %v1813 = vlog2.pop %v1753
        %v1814 = vmul.f32 %v1813, 0.6931472
        %v1815 = vlog2.pop %v1754
        %v1816 = vmul.f32 %v1815, 0.6931472
        %v1817 = vlog2.pop %v1755
        %v1818 = vmul.f32 %v1817, 0.6931472
        %v1819 = vlog2.pop %v1756
        %v1820 = vmul.f32 %v1819, 0.6931472
        %v1821 = vadd.f32 %v1565, %v1758
        %v1822 = vadd.f32 %v1566, %v1760
        %v1823 = vadd.f32 %v1567, %v1762
        %v1824 = vadd.f32 %v1568, %v1764
        %v1825 = vadd.f32 %v1569, %v1766
        %v1826 = vadd.f32 %v1570, %v1768
        %v1827 = vadd.f32 %v1571, %v1770
        %v1828 = vadd.f32 %v1572, %v1772
        %v1829 = vadd.f32 %v1573, %v1774
        %v1830 = vadd.f32 %v1574, %v1776
        %v1831 = vadd.f32 %v1575, %v1778
        %v1832 = vadd.f32 %v1576, %v1780
        %v1833 = vadd.f32 %v1577, %v1782
        %v1834 = vadd.f32 %v1578, %v1784
        %v1835 = vadd.f32 %v1579, %v1786
        %v1836 = vadd.f32 %v1580, %v1788
        %v1837 = vadd.f32 %v1581, %v1790
        %v1838 = vadd.f32 %v1582, %v1792
        %v1839 = vadd.f32 %v1583, %v1794
        %v1840 = vadd.f32 %v1584, %v1796
        %v1841 = vadd.f32 %v1585, %v1798
        %v1842 = vadd.f32 %v1586, %v1800
        %v1843 = vadd.f32 %v1587, %v1802
        %v1844 = vadd.f32 %v1588, %v1804
        %v1845 = vadd.f32 %v1589, %v1806
        %v1846 = vadd.f32 %v1590, %v1808
        %v1847 = vadd.f32 %v1591, %v1810
        %v1848 = vadd.f32 %v1592, %v1812
        %v1849 = vadd.f32 %v1593, %v1814
        %v1850 = vadd.f32 %v1594, %v1816
        %v1851 = vadd.f32 %v1595, %v1818
        %v1852 = vadd.f32 %v1596, %v1820
        %v1853 = vsub.f32 %v1821, 0.6931472
        %v1854 = vsub.f32 %v1822, 0.6931472
        %v1855 = vsub.f32 %v1823, 0.6931472
        %v1856 = vsub.f32 %v1824, 0.6931472
        %v1857 = vsub.f32 %v1825, 0.6931472
        %v1858 = vsub.f32 %v1826, 0.6931472
        %v1859 = vsub.f32 %v1827, 0.6931472
        %v1860 = vsub.f32 %v1828, 0.6931472
        %v1861 = vsub.f32 %v1829, 0.6931472
        %v1862 = vsub.f32 %v1830, 0.6931472
        %v1863 = vsub.f32 %v1831, 0.6931472
        %v1864 = vsub.f32 %v1832, 0.6931472
        %v1865 = vsub.f32 %v1833, 0.6931472
        %v1866 = vsub.f32 %v1834, 0.6931472
        %v1867 = vsub.f32 %v1835, 0.6931472
        %v1868 = vsub.f32 %v1836, 0.6931472
        %v1869 = vsub.f32 %v1837, 0.6931472
        %v1870 = vsub.f32 %v1838, 0.6931472
        %v1871 = vsub.f32 %v1839, 0.6931472
        %v1872 = vsub.f32 %v1840, 0.6931472
        %v1873 = vsub.f32 %v1841, 0.6931472
        %v1874 = vsub.f32 %v1842, 0.6931472
        %v1875 = vsub.f32 %v1843, 0.6931472
        %v1876 = vsub.f32 %v1844, 0.6931472
        %v1877 = vsub.f32 %v1845, 0.6931472
        %v1878 = vsub.f32 %v1846, 0.6931472
        %v1879 = vsub.f32 %v1847, 0.6931472
        %v1880 = vsub.f32 %v1848, 0.6931472
        %v1881 = vsub.f32 %v1849, 0.6931472
        %v1882 = vsub.f32 %v1850, 0.6931472
        %v1883 = vsub.f32 %v1851, 0.6931472
        %v1884 = vsub.f32 %v1852, 0.6931472
        %v1885 = vld [vmem:[%s619] sm:$0xf]
        %v1886 = vld [vmem:[%s619 + $0x4] sm:$0xf]
        %v1887 = vld [vmem:[%s619 + $0x8] sm:$0xf]
        %v1888 = vld [vmem:[%s619 + $0xc] sm:$0xf]
        %v1889 = vld [vmem:[%s619 + $0x10] sm:$0xf]
        %v1890 = vld [vmem:[%s619 + $0x14] sm:$0xf]
        %v1891 = vld [vmem:[%s619 + $0x18] sm:$0xf]
        %v1892 = vld [vmem:[%s619 + $0x1c] sm:$0xf]
        %v1893 = vld [vmem:[%s619 + $0x20] sm:$0xf]
        %v1894 = vld [vmem:[%s619 + $0x24] sm:$0xf]
        %v1895 = vld [vmem:[%s619 + $0x28] sm:$0xf]
        %v1896 = vld [vmem:[%s619 + $0x2c] sm:$0xf]
        %v1897 = vld [vmem:[%s619 + $0x30] sm:$0xf]
        %v1898 = vld [vmem:[%s619 + $0x34] sm:$0xf]
        %v1899 = vld [vmem:[%s619 + $0x38] sm:$0xf]
        %v1900 = vld [vmem:[%s619 + $0x3c] sm:$0xf]
        %v1901 = vpack.c.bf16 %v1854, %v1853
        %v1902 = vpack.c.bf16 %v1856, %v1855
        %v1903 = vpack.c.bf16 %v1858, %v1857
        %v1904 = vpack.c.bf16 %v1860, %v1859
        %v1905 = vpack.c.bf16 %v1862, %v1861
        %v1906 = vpack.c.bf16 %v1864, %v1863
        %v1907 = vpack.c.bf16 %v1866, %v1865
        %v1908 = vpack.c.bf16 %v1868, %v1867
        %v1909 = vpack.c.bf16 %v1870, %v1869
        %v1910 = vpack.c.bf16 %v1872, %v1871
        %v1911 = vpack.c.bf16 %v1874, %v1873
        %v1912 = vpack.c.bf16 %v1876, %v1875
        %v1913 = vpack.c.bf16 %v1878, %v1877
        %v1914 = vpack.c.bf16 %v1880, %v1879
        %v1915 = vpack.c.bf16 %v1882, %v1881
        %v1916 = vpack.c.bf16 %v1884, %v1883
        %v1917 = vld [vmem:[%s781] sm:$0x1]
        %v1919 = vlaneseq
        %v1920 = vshrl.u32 %v1919, 7
        %v1921 = vsub.s32 0, %v1920
        %v1922 = vrot.slane %v1917, %v1921
        %v1940 = vunpack.c.l.b16 %v1885
        %v1941 = vunpack.c.l.b16 %v1886
        %v1942 = vunpack.c.l.b16 %v1887
        %v1943 = vunpack.c.l.b16 %v1888
        %v1944 = vunpack.c.l.b16 %v1889
        %v1945 = vunpack.c.l.b16 %v1890
        %v1946 = vunpack.c.l.b16 %v1891
        %v1947 = vunpack.c.l.b16 %v1892
        %v1948 = vunpack.c.l.b16 %v1893
        %v1949 = vunpack.c.l.b16 %v1894
        %v1950 = vunpack.c.l.b16 %v1895
        %v1951 = vunpack.c.l.b16 %v1896
        %v1952 = vunpack.c.l.b16 %v1897
        %v1953 = vunpack.c.l.b16 %v1898
        %v1954 = vunpack.c.l.b16 %v1899
        %v1955 = vunpack.c.l.b16 %v1900
        %v1956 = vpack.c.b16 %v1941, %v1940
        %v1957 = vpack.c.b16 %v1943, %v1942
        %v1958 = vpack.c.b16 %v1945, %v1944
        %v1959 = vpack.c.b16 %v1947, %v1946
        %v1960 = vpack.c.b16 %v1949, %v1948
        %v1961 = vpack.c.b16 %v1951, %v1950
        %v1962 = vpack.c.b16 %v1953, %v1952
        %v1963 = vpack.c.b16 %v1955, %v1954
        %1972 = vmatprep.subr.bf16.mxu0 0
        %1973 = vmatpush1.bf16.msra.mxu0 %v1956
        %1974 = vmatprep.subr.bf16.mxu0 0
        %1975 = vmatpush1.bf16.msra.mxu0 %v1957
        %1976 = vmatprep.subr.bf16.mxu0 0
        %1977 = vmatpush1.bf16.msra.mxu0 %v1958
        %1978 = vmatprep.subr.bf16.mxu0 0
        %1979 = vmatpush1.bf16.msra.mxu0 %v1959
        %1980 = vmatprep.subr.bf16.mxu0 0
        %1981 = vmatpush1.bf16.msra.mxu0 %v1960
        %1982 = vmatprep.subr.bf16.mxu0 0
        %1983 = vmatpush1.bf16.msra.mxu0 %v1961
        %1984 = vmatprep.subr.bf16.mxu0 0
        %1985 = vmatpush1.bf16.msra.mxu0 %v1962
        %1986 = vmatprep.subr.bf16.mxu0 0
        %1987 = vmatpush1.bf16.msra.mxu0 %v1963
        %1988 = vmatprep.subr.bf16.mxu0 0
        %1989 = vmatpush1.bf16.msra.mxu0 0
        %1990 = vmatprep.subr.bf16.mxu0 0
        %1991 = vmatpush1.bf16.msra.mxu0 0
        %1992 = vmatprep.subr.bf16.mxu0 0
        %1993 = vmatpush1.bf16.msra.mxu0 0
        %1994 = vmatprep.subr.bf16.mxu0 0
        %1995 = vmatpush1.bf16.msra.mxu0 0
        %1996 = vmatprep.subr.bf16.mxu0 0
        %1997 = vmatpush1.bf16.msra.mxu0 0
        %1998 = vmatprep.subr.bf16.mxu0 0
        %1999 = vmatpush1.bf16.msra.mxu0 0
        %2000 = vmatprep.subr.bf16.mxu0 0
        %2001 = vmatpush1.bf16.msra.mxu0 0
        %2002 = vmatprep.subr.bf16.mxu0 0
        %2003 = vmatpush1.bf16.msra.mxu0 0
        %2004 = vmatprep.mubr.bf16.mxu0 0
        %2005 = vmatmul.mubr.bf16.gmra.mrb[0].mxu0 %v1901
        %v2006 = vpop.f32.mrb[0].mxu0
        %v2007 = vadd.f32 %v1922, %v2006
        %v2008 = vpop.f32.mrb[0].mxu0
        %v2009 = vpop.f32.mrb[0].mxu0
        %v2010 = vadd.f32 %v1922, %v2009
        %v2011 = vpop.f32.mrb[0].mxu0
        %2012 = vmatprep.mubr.bf16.mxu0 0
        %2013 = vmatmul.mubr.bf16.gmra.mrb[0].mxu0 %v1902
        %v2014 = vpop.f32.mrb[0].mxu0
        %v2015 = vadd.f32 %v1922, %v2014
        %v2016 = vpop.f32.mrb[0].mxu0
        %v2017 = vpop.f32.mrb[0].mxu0
        %v2018 = vadd.f32 %v1922, %v2017
        %v2019 = vpop.f32.mrb[0].mxu0
        %2020 = vmatprep.mubr.bf16.mxu0 0
        %2021 = vmatmul.mubr.bf16.gmra.mrb[0].mxu0 %v1903
        %v2022 = vpop.f32.mrb[0].mxu0
        %v2023 = vadd.f32 %v1922, %v2022
        %v2024 = vpop.f32.mrb[0].mxu0
        %v2025 = vpop.f32.mrb[0].mxu0
        %v2026 = vadd.f32 %v1922, %v2025
        %v2027 = vpop.f32.mrb[0].mxu0
        %2028 = vmatprep.mubr.bf16.mxu0 0
        %2029 = vmatmul.mubr.bf16.gmra.mrb[0].mxu0 %v1904
        %v2030 = vpop.f32.mrb[0].mxu0
        %v2031 = vadd.f32 %v1922, %v2030
        %v2032 = vpop.f32.mrb[0].mxu0
        %v2033 = vpop.f32.mrb[0].mxu0
        %v2034 = vadd.f32 %v1922, %v2033
        %v2035 = vpop.f32.mrb[0].mxu0
        %2036 = vmatprep.mubr.bf16.mxu0 0
        %2037 = vmatmul.mubr.bf16.gmra.mrb[0].mxu0 %v1905
        %v2038 = vpop.f32.mrb[0].mxu0
        %v2039 = vadd.f32 %v1922, %v2038
        %v2040 = vpop.f32.mrb[0].mxu0
        %v2041 = vpop.f32.mrb[0].mxu0
        %v2042 = vadd.f32 %v1922, %v2041
        %v2043 = vpop.f32.mrb[0].mxu0
        %2044 = vmatprep.mubr.bf16.mxu0 0
        %2045 = vmatmul.mubr.bf16.gmra.mrb[0].mxu0 %v1906
        %v2046 = vpop.f32.mrb[0].mxu0
        %v2047 = vadd.f32 %v1922, %v2046
        %v2048 = vpop.f32.mrb[0].mxu0
        %v2049 = vpop.f32.mrb[0].mxu0
        %v2050 = vadd.f32 %v1922, %v2049
        %v2051 = vpop.f32.mrb[0].mxu0
        %2052 = vmatprep.mubr.bf16.mxu0 0
        %2053 = vmatmul.mubr.bf16.gmra.mrb[0].mxu0 %v1907
        %v2054 = vpop.f32.mrb[0].mxu0
        %v2055 = vadd.f32 %v1922, %v2054
        %v2056 = vpop.f32.mrb[0].mxu0
        %v2057 = vpop.f32.mrb[0].mxu0
        %v2058 = vadd.f32 %v1922, %v2057
        %v2059 = vpop.f32.mrb[0].mxu0
        %2060 = vmatprep.mubr.bf16.mxu0 0
        %2061 = vmatmul.mubr.bf16.gmra.mrb[0].mxu0 %v1908
        %v2062 = vpop.f32.mrb[0].mxu0
        %v2063 = vadd.f32 %v1922, %v2062
        %v2064 = vpop.f32.mrb[0].mxu0
        %v2065 = vpop.f32.mrb[0].mxu0
        %v2066 = vadd.f32 %v1922, %v2065
        %v2067 = vpop.f32.mrb[0].mxu0
        %2068 = vmatprep.mubr.bf16.mxu0 0
        %2069 = vmatmul.mubr.bf16.gmra.mrb[0].mxu0 %v1909
        %v2070 = vpop.f32.mrb[0].mxu0
        %v2071 = vadd.f32 %v1922, %v2070
        %v2072 = vpop.f32.mrb[0].mxu0
        %v2073 = vpop.f32.mrb[0].mxu0
        %v2074 = vadd.f32 %v1922, %v2073
        %v2075 = vpop.f32.mrb[0].mxu0
        %2076 = vmatprep.mubr.bf16.mxu0 0
        %2077 = vmatmul.mubr.bf16.gmra.mrb[0].mxu0 %v1910
        %v2078 = vpop.f32.mrb[0].mxu0
        %v2079 = vadd.f32 %v1922, %v2078
        %v2080 = vpop.f32.mrb[0].mxu0
        %v2081 = vpop.f32.mrb[0].mxu0
        %v2082 = vadd.f32 %v1922, %v2081
        %v2083 = vpop.f32.mrb[0].mxu0
        %2084 = vmatprep.mubr.bf16.mxu0 0
        %2085 = vmatmul.mubr.bf16.gmra.mrb[0].mxu0 %v1911
        %v2086 = vpop.f32.mrb[0].mxu0
        %v2087 = vadd.f32 %v1922, %v2086
        %v2088 = vpop.f32.mrb[0].mxu0
        %v2089 = vpop.f32.mrb[0].mxu0
        %v2090 = vadd.f32 %v1922, %v2089
        %v2091 = vpop.f32.mrb[0].mxu0
        %2092 = vmatprep.mubr.bf16.mxu0 0
        %2093 = vmatmul.mubr.bf16.gmra.mrb[0].mxu0 %v1912
        %v2094 = vpop.f32.mrb[0].mxu0
        %v2095 = vadd.f32 %v1922, %v2094
        %v2096 = vpop.f32.mrb[0].mxu0
        %v2097 = vpop.f32.mrb[0].mxu0
        %v2098 = vadd.f32 %v1922, %v2097
        %v2099 = vpop.f32.mrb[0].mxu0
        %2100 = vmatprep.mubr.bf16.mxu0 0
        %2101 = vmatmul.mubr.bf16.gmra.mrb[0].mxu0 %v1913
        %v2102 = vpop.f32.mrb[0].mxu0
        %v2103 = vadd.f32 %v1922, %v2102
        %v2104 = vpop.f32.mrb[0].mxu0
        %v2105 = vpop.f32.mrb[0].mxu0
        %v2106 = vadd.f32 %v1922, %v2105
        %v2107 = vpop.f32.mrb[0].mxu0
        %2108 = vmatprep.mubr.bf16.mxu0 0
        %2109 = vmatmul.mubr.bf16.gmra.mrb[0].mxu0 %v1914
        %v2110 = vpop.f32.mrb[0].mxu0
        %v2111 = vadd.f32 %v1922, %v2110
        %v2112 = vpop.f32.mrb[0].mxu0
        %v2113 = vpop.f32.mrb[0].mxu0
        %v2114 = vadd.f32 %v1922, %v2113
        %v2115 = vpop.f32.mrb[0].mxu0
        %2116 = vmatprep.mubr.bf16.mxu0 0
        %2117 = vmatmul.mubr.bf16.gmra.mrb[0].mxu0 %v1915
        %v2118 = vpop.f32.mrb[0].mxu0
        %v2119 = vadd.f32 %v1922, %v2118
        %v2120 = vpop.f32.mrb[0].mxu0
        %v2121 = vpop.f32.mrb[0].mxu0
        %v2122 = vadd.f32 %v1922, %v2121
        %v2123 = vpop.f32.mrb[0].mxu0
        %2124 = vmatprep.mubr.bf16.mxu0 0
        %2125 = vmatmul.mubr.bf16.gmra.mrb[0].mxu0 %v1916
        %v2126 = vpop.f32.mrb[0].mxu0
        %v2127 = vadd.f32 %v1922, %v2126
        %v2128 = vpop.f32.mrb[0].mxu0
        %v2129 = vpop.f32.mrb[0].mxu0
        %v2130 = vadd.f32 %v1922, %v2129
        %v2131 = vpop.f32.mrb[0].mxu0
        %2132 = vdwg.mxu0
        %2134 = vset.pattern.permute.xlu0 0
        %2135 = vperm.xlu0 %2134, %v1253
        %v2136 = vpop.permute.xlu0 %2135
        %2139 = vset.pattern.permute.xlu0 0
        %2140 = vperm.xlu0 %2139, %v1254
        %v2141 = vpop.permute.xlu0 %2140
        %2144 = vset.pattern.permute.xlu0 0
        %2145 = vperm.xlu0 %2144, %v1255
        %v2146 = vpop.permute.xlu0 %2145
        %2149 = vset.pattern.permute.xlu0 0
        %2150 = vperm.xlu0 %2149, %v1256
        %v2151 = vpop.permute.xlu0 %2150
        %2154 = vset.pattern.permute.xlu0 0
        %2155 = vperm.xlu0 %2154, %v1257
        %v2156 = vpop.permute.xlu0 %2155
        %2159 = vset.pattern.permute.xlu0 0
        %2160 = vperm.xlu0 %2159, %v1258
        %v2161 = vpop.permute.xlu0 %2160
        %2164 = vset.pattern.permute.xlu0 0
        %2165 = vperm.xlu0 %2164, %v1259
        %v2166 = vpop.permute.xlu0 %2165
        %2169 = vset.pattern.permute.xlu0 0
        %2170 = vperm.xlu0 %2169, %v1260
        %v2171 = vpop.permute.xlu0 %2170
        %2174 = vset.pattern.permute.xlu0 0
        %2175 = vperm.xlu0 %2174, %v1261
        %v2176 = vpop.permute.xlu0 %2175
        %2179 = vset.pattern.permute.xlu0 0
        %2180 = vperm.xlu0 %2179, %v1262
        %v2181 = vpop.permute.xlu0 %2180
        %2184 = vset.pattern.permute.xlu0 0
        %2185 = vperm.xlu0 %2184, %v1263
        %v2186 = vpop.permute.xlu0 %2185
        %2189 = vset.pattern.permute.xlu0 0
        %2190 = vperm.xlu0 %2189, %v1264
        %v2191 = vpop.permute.xlu0 %2190
        %2194 = vset.pattern.permute.xlu0 0
        %2195 = vperm.xlu0 %2194, %v1265
        %v2196 = vpop.permute.xlu0 %2195
        %2199 = vset.pattern.permute.xlu0 0
        %2200 = vperm.xlu0 %2199, %v1266
        %v2201 = vpop.permute.xlu0 %2200
        %2204 = vset.pattern.permute.xlu0 0
        %2205 = vperm.xlu0 %2204, %v1267
        %v2206 = vpop.permute.xlu0 %2205
        %2209 = vset.pattern.permute.xlu0 0
        %2210 = vperm.xlu0 %2209, %v1268
        %v2211 = vpop.permute.xlu0 %2210
        %2214 = vset.pattern.permute.xlu0 0
        %2215 = vperm.xlu0 %2214, %v1269
        %v2216 = vpop.permute.xlu0 %2215
        %2219 = vset.pattern.permute.xlu0 0
        %2220 = vperm.xlu0 %2219, %v1270
        %v2221 = vpop.permute.xlu0 %2220
        %2224 = vset.pattern.permute.xlu0 0
        %2225 = vperm.xlu0 %2224, %v1271
        %v2226 = vpop.permute.xlu0 %2225
        %2229 = vset.pattern.permute.xlu0 0
        %2230 = vperm.xlu0 %2229, %v1272
        %v2231 = vpop.permute.xlu0 %2230
        %2234 = vset.pattern.permute.xlu0 0
        %2235 = vperm.xlu0 %2234, %v1273
        %v2236 = vpop.permute.xlu0 %2235
        %2239 = vset.pattern.permute.xlu0 0
        %2240 = vperm.xlu0 %2239, %v1274
        %v2241 = vpop.permute.xlu0 %2240
        %2244 = vset.pattern.permute.xlu0 0
        %2245 = vperm.xlu0 %2244, %v1275
        %v2246 = vpop.permute.xlu0 %2245
        %2249 = vset.pattern.permute.xlu0 0
        %2250 = vperm.xlu0 %2249, %v1276
        %v2251 = vpop.permute.xlu0 %2250
        %2254 = vset.pattern.permute.xlu0 0
        %2255 = vperm.xlu0 %2254, %v1277
        %v2256 = vpop.permute.xlu0 %2255
        %2259 = vset.pattern.permute.xlu0 0
        %2260 = vperm.xlu0 %2259, %v1278
        %v2261 = vpop.permute.xlu0 %2260
        %2264 = vset.pattern.permute.xlu0 0
        %2265 = vperm.xlu0 %2264, %v1279
        %v2266 = vpop.permute.xlu0 %2265
        %2269 = vset.pattern.permute.xlu0 0
        %2270 = vperm.xlu0 %2269, %v1280
        %v2271 = vpop.permute.xlu0 %2270
        %2274 = vset.pattern.permute.xlu0 0
        %2275 = vperm.xlu0 %2274, %v1281
        %v2276 = vpop.permute.xlu0 %2275
        %2279 = vset.pattern.permute.xlu0 0
        %2280 = vperm.xlu0 %2279, %v1282
        %v2281 = vpop.permute.xlu0 %2280
        %2284 = vset.pattern.permute.xlu0 0
        %2285 = vperm.xlu0 %2284, %v1283
        %v2286 = vpop.permute.xlu0 %2285
        %2289 = vset.pattern.permute.xlu0 0
        %2290 = vperm.xlu0 %2289, %v1284
        %v2291 = vpop.permute.xlu0 %2290
        %v2293 = vmul.f32 %v2007, %v2136
        %v2294 = vmul.f32 %v2010, %v2141
        %v2295 = vmul.f32 %v2015, %v2146
        %v2296 = vmul.f32 %v2018, %v2151
        %v2297 = vmul.f32 %v2023, %v2156
        %v2298 = vmul.f32 %v2026, %v2161
        %v2299 = vmul.f32 %v2031, %v2166
        %v2300 = vmul.f32 %v2034, %v2171
        %v2301 = vmul.f32 %v2039, %v2176
        %v2302 = vmul.f32 %v2042, %v2181
        %v2303 = vmul.f32 %v2047, %v2186
        %v2304 = vmul.f32 %v2050, %v2191
        %v2305 = vmul.f32 %v2055, %v2196
        %v2306 = vmul.f32 %v2058, %v2201
        %v2307 = vmul.f32 %v2063, %v2206
        %v2308 = vmul.f32 %v2066, %v2211
        %v2309 = vmul.f32 %v2071, %v2216
        %v2310 = vmul.f32 %v2074, %v2221
        %v2311 = vmul.f32 %v2079, %v2226
        %v2312 = vmul.f32 %v2082, %v2231
        %v2313 = vmul.f32 %v2087, %v2236
        %v2314 = vmul.f32 %v2090, %v2241
        %v2315 = vmul.f32 %v2095, %v2246
        %v2316 = vmul.f32 %v2098, %v2251
        %v2317 = vmul.f32 %v2103, %v2256
        %v2318 = vmul.f32 %v2106, %v2261
        %v2319 = vmul.f32 %v2111, %v2266
        %v2320 = vmul.f32 %v2114, %v2271
        %v2321 = vmul.f32 %v2119, %v2276
        %v2322 = vmul.f32 %v2122, %v2281
        %v2323 = vmul.f32 %v2127, %v2286
        %v2324 = vmul.f32 %v2130, %v2291
        %v2325 = vld [vmem:[%s628] sm:$0xf]
        %v2326 = vld [vmem:[%s628 + $0x4] sm:$0xf]
        %v2327 = vld [vmem:[%s628 + $0x8] sm:$0xf]
        %v2328 = vld [vmem:[%s628 + $0xc] sm:$0xf]
        %v2329 = vld [vmem:[%s628 + $0x10] sm:$0xf]
        %v2330 = vld [vmem:[%s628 + $0x14] sm:$0xf]
        %v2331 = vld [vmem:[%s628 + $0x18] sm:$0xf]
        %v2332 = vld [vmem:[%s628 + $0x1c] sm:$0xf]
        %v2333 = vld [vmem:[%s628 + $0x20] sm:$0xf]
        %v2334 = vld [vmem:[%s628 + $0x24] sm:$0xf]
        %v2335 = vld [vmem:[%s628 + $0x28] sm:$0xf]
        %v2336 = vld [vmem:[%s628 + $0x2c] sm:$0xf]
        %v2337 = vld [vmem:[%s628 + $0x30] sm:$0xf]
        %v2338 = vld [vmem:[%s628 + $0x34] sm:$0xf]
        %v2339 = vld [vmem:[%s628 + $0x38] sm:$0xf]
        %v2340 = vld [vmem:[%s628 + $0x3c] sm:$0xf]
        %v2341 = vpack.c.bf16 %v1238, %v1237
        %v2342 = vpack.c.bf16 %v1240, %v1239
        %v2343 = vpack.c.bf16 %v1242, %v1241
        %v2344 = vpack.c.bf16 %v1244, %v1243
        %v2345 = vpack.c.bf16 %v1246, %v1245
        %v2346 = vpack.c.bf16 %v1248, %v1247
        %v2347 = vpack.c.bf16 %v1250, %v1249
        %v2348 = vpack.c.bf16 %v1252, %v1251
        %v2365 = vunpack.c.l.b16 %v2325
        %v2366 = vunpack.c.l.b16 %v2326
        %v2367 = vunpack.c.l.b16 %v2327
        %v2368 = vunpack.c.l.b16 %v2328
        %v2369 = vunpack.c.l.b16 %v2329
        %v2370 = vunpack.c.l.b16 %v2330
        %v2371 = vunpack.c.l.b16 %v2331
        %v2372 = vunpack.c.l.b16 %v2332
        %v2373 = vunpack.c.l.b16 %v2333
        %v2374 = vunpack.c.l.b16 %v2334
        %v2375 = vunpack.c.l.b16 %v2335
        %v2376 = vunpack.c.l.b16 %v2336
        %v2377 = vunpack.c.l.b16 %v2337
        %v2378 = vunpack.c.l.b16 %v2338
        %v2379 = vunpack.c.l.b16 %v2339
        %v2380 = vunpack.c.l.b16 %v2340
        %v2381 = vpack.c.b16 %v2366, %v2365
        %v2382 = vpack.c.b16 %v2368, %v2367
        %v2383 = vpack.c.b16 %v2370, %v2369
        %v2384 = vpack.c.b16 %v2372, %v2371
        %v2385 = vpack.c.b16 %v2374, %v2373
        %v2386 = vpack.c.b16 %v2376, %v2375
        %v2387 = vpack.c.b16 %v2378, %v2377
        %v2388 = vpack.c.b16 %v2380, %v2379
        %2397 = vmatprep.subr.bf16.mxu0 0
        %2398 = vmatpush1.bf16.msra.mxu0 %v2381
        %2399 = vmatprep.subr.bf16.mxu0 0
        %2400 = vmatpush1.bf16.msra.mxu0 %v2382
        %2401 = vmatprep.subr.bf16.mxu0 0
        %2402 = vmatpush1.bf16.msra.mxu0 %v2383
        %2403 = vmatprep.subr.bf16.mxu0 0
        %2404 = vmatpush1.bf16.msra.mxu0 %v2384
        %2405 = vmatprep.subr.bf16.mxu0 0
        %2406 = vmatpush1.bf16.msra.mxu0 %v2385
        %2407 = vmatprep.subr.bf16.mxu0 0
        %2408 = vmatpush1.bf16.msra.mxu0 %v2386
        %2409 = vmatprep.subr.bf16.mxu0 0
        %2410 = vmatpush1.bf16.msra.mxu0 %v2387
        %2411 = vmatprep.subr.bf16.mxu0 0
        %2412 = vmatpush1.bf16.msra.mxu0 %v2388
        %2413 = vmatprep.subr.bf16.mxu0 0
        %2414 = vmatpush1.bf16.msra.mxu0 0
        %2415 = vmatprep.subr.bf16.mxu0 0
        %2416 = vmatpush1.bf16.msra.mxu0 0
        %2417 = vmatprep.subr.bf16.mxu0 0
        %2418 = vmatpush1.bf16.msra.mxu0 0
        %2419 = vmatprep.subr.bf16.mxu0 0
        %2420 = vmatpush1.bf16.msra.mxu0 0
        %2421 = vmatprep.subr.bf16.mxu0 0
        %2422 = vmatpush1.bf16.msra.mxu0 0
        %2423 = vmatprep.subr.bf16.mxu0 0
        %2424 = vmatpush1.bf16.msra.mxu0 0
        %2425 = vmatprep.subr.bf16.mxu0 0
        %2426 = vmatpush1.bf16.msra.mxu0 0
        %2427 = vmatprep.subr.bf16.mxu0 0
        %2428 = vmatpush1.bf16.msra.mxu0 0
        %2429 = vmatprep.mubr.bf16.mxu0 0
        %2430 = vmatmul.mubr.bf16.gmra.mrb[0].mxu0 %v2341
        %v2431 = vpop.f32.mrb[0].mxu0
        %v2432 = vadd.f32 0.0, %v2431
        %v2433 = vpop.f32.mrb[0].mxu0
        %v2434 = vpop.f32.mrb[0].mxu0
        %v2435 = vadd.f32 0.0, %v2434
        %v2436 = vpop.f32.mrb[0].mxu0
        %2437 = vmatprep.mubr.bf16.mxu0 0
        %2438 = vmatmul.mubr.bf16.gmra.mrb[0].mxu0 %v2342
        %v2439 = vpop.f32.mrb[0].mxu0
        %v2440 = vadd.f32 0.0, %v2439
        %v2441 = vpop.f32.mrb[0].mxu0
        %v2442 = vpop.f32.mrb[0].mxu0
        %v2443 = vadd.f32 0.0, %v2442
        %v2444 = vpop.f32.mrb[0].mxu0
        %2445 = vmatprep.mubr.bf16.mxu0 0
        %2446 = vmatmul.mubr.bf16.gmra.mrb[0].mxu0 %v2343
        %v2447 = vpop.f32.mrb[0].mxu0
        %v2448 = vadd.f32 0.0, %v2447
        %v2449 = vpop.f32.mrb[0].mxu0
        %v2450 = vpop.f32.mrb[0].mxu0
        %v2451 = vadd.f32 0.0, %v2450
        %v2452 = vpop.f32.mrb[0].mxu0
        %2453 = vmatprep.mubr.bf16.mxu0 0
        %2454 = vmatmul.mubr.bf16.gmra.mrb[0].mxu0 %v2344
        %v2455 = vpop.f32.mrb[0].mxu0
        %v2456 = vadd.f32 0.0, %v2455
        %v2457 = vpop.f32.mrb[0].mxu0
        %v2458 = vpop.f32.mrb[0].mxu0
        %v2459 = vadd.f32 0.0, %v2458
        %v2460 = vpop.f32.mrb[0].mxu0
        %2461 = vmatprep.mubr.bf16.mxu0 0
        %2462 = vmatmul.mubr.bf16.gmra.mrb[0].mxu0 %v2345
        %v2463 = vpop.f32.mrb[0].mxu0
        %v2464 = vadd.f32 0.0, %v2463
        %v2465 = vpop.f32.mrb[0].mxu0
        %v2466 = vpop.f32.mrb[0].mxu0
        %v2467 = vadd.f32 0.0, %v2466
        %v2468 = vpop.f32.mrb[0].mxu0
        %2469 = vmatprep.mubr.bf16.mxu0 0
        %2470 = vmatmul.mubr.bf16.gmra.mrb[0].mxu0 %v2346
        %v2471 = vpop.f32.mrb[0].mxu0
        %v2472 = vadd.f32 0.0, %v2471
        %v2473 = vpop.f32.mrb[0].mxu0
        %v2474 = vpop.f32.mrb[0].mxu0
        %v2475 = vadd.f32 0.0, %v2474
        %v2476 = vpop.f32.mrb[0].mxu0
        %2477 = vmatprep.mubr.bf16.mxu0 0
        %2478 = vmatmul.mubr.bf16.gmra.mrb[0].mxu0 %v2347
        %v2479 = vpop.f32.mrb[0].mxu0
        %v2480 = vadd.f32 0.0, %v2479
        %v2481 = vpop.f32.mrb[0].mxu0
        %v2482 = vpop.f32.mrb[0].mxu0
        %v2483 = vadd.f32 0.0, %v2482
        %v2484 = vpop.f32.mrb[0].mxu0
        %2485 = vmatprep.mubr.bf16.mxu0 0
        %2486 = vmatmul.mubr.bf16.gmra.mrb[0].mxu0 %v2348
        %v2487 = vpop.f32.mrb[0].mxu0
        %v2488 = vadd.f32 0.0, %v2487
        %v2489 = vpop.f32.mrb[0].mxu0
        %v2490 = vpop.f32.mrb[0].mxu0
        %v2491 = vadd.f32 0.0, %v2490
        %v2492 = vpop.f32.mrb[0].mxu0
        %2493 = vdwg.mxu0
        %v2494 = vld [vmem:[#allocation3] sm:$0xff]
        %v2495 = vld [vmem:[#allocation3 + $0x8] sm:$0xff]
        %v2496 = vld [vmem:[#allocation3 + $0x10] sm:$0xff]
        %v2497 = vld [vmem:[#allocation3 + $0x18] sm:$0xff]
        %v2498 = vld [vmem:[#allocation3 + $0x20] sm:$0xff]
        %v2499 = vld [vmem:[#allocation3 + $0x28] sm:$0xff]
        %v2500 = vld [vmem:[#allocation3 + $0x30] sm:$0xff]
        %v2501 = vld [vmem:[#allocation3 + $0x38] sm:$0xff]
        %v2502 = vld [vmem:[#allocation3 + $0x40] sm:$0xff]
        %v2503 = vld [vmem:[#allocation3 + $0x48] sm:$0xff]
        %v2504 = vld [vmem:[#allocation3 + $0x50] sm:$0xff]
        %v2505 = vld [vmem:[#allocation3 + $0x58] sm:$0xff]
        %v2506 = vld [vmem:[#allocation3 + $0x60] sm:$0xff]
        %v2507 = vld [vmem:[#allocation3 + $0x68] sm:$0xff]
        %v2508 = vld [vmem:[#allocation3 + $0x70] sm:$0xff]
        %v2509 = vld [vmem:[#allocation3 + $0x78] sm:$0xff]
        %v2510 = vld [vmem:[#allocation3 + $0x80] sm:$0xff]
        %v2511 = vld [vmem:[#allocation3 + $0x88] sm:$0xff]
        %v2512 = vld [vmem:[#allocation3 + $0x90] sm:$0xff]
        %v2513 = vld [vmem:[#allocation3 + $0x98] sm:$0xff]
        %v2514 = vld [vmem:[#allocation3 + $0xa0] sm:$0xff]
        %v2515 = vld [vmem:[#allocation3 + $0xa8] sm:$0xff]
        %v2516 = vld [vmem:[#allocation3 + $0xb0] sm:$0xff]
        %v2517 = vld [vmem:[#allocation3 + $0xb8] sm:$0xff]
        %v2518 = vld [vmem:[#allocation3 + $0xc0] sm:$0xff]
        %v2519 = vld [vmem:[#allocation3 + $0xc8] sm:$0xff]
        %v2520 = vld [vmem:[#allocation3 + $0xd0] sm:$0xff]
        %v2521 = vld [vmem:[#allocation3 + $0xd8] sm:$0xff]
        %v2522 = vld [vmem:[#allocation3 + $0xe0] sm:$0xff]
        %v2523 = vld [vmem:[#allocation3 + $0xe8] sm:$0xff]
        %v2524 = vld [vmem:[#allocation3 + $0xf0] sm:$0xff]
        %v2525 = vld [vmem:[#allocation3 + $0xf8] sm:$0xff]
        %2526 = vmatprep.subr.mxu0 0.0
        %2527 = vmatpush1.msra.mxu0 %v2432
        %2528 = vmatprep.subr.mxu0 0.0
        %2529 = vmatpush1.msra.mxu0 %v2435
        %2530 = vmatprep.subr.mxu0 0.0
        %2531 = vmatpush1.msra.mxu0 %v2440
        %2532 = vmatprep.subr.mxu0 0.0
        %2533 = vmatpush1.msra.mxu0 %v2443
        %2534 = vmatprep.subr.mxu0 0.0
        %2535 = vmatpush1.msra.mxu0 %v2448
        %2536 = vmatprep.subr.mxu0 0.0
        %2537 = vmatpush1.msra.mxu0 %v2451
        %2538 = vmatprep.subr.mxu0 0.0
        %2539 = vmatpush1.msra.mxu0 %v2456
        %2540 = vmatprep.subr.mxu0 0.0
        %2541 = vmatpush1.msra.mxu0 %v2459
        %2542 = vmatprep.subr.mxu0 0.0
        %2543 = vmatpush1.msra.mxu0 %v2464
        %2544 = vmatprep.subr.mxu0 0.0
        %2545 = vmatpush1.msra.mxu0 %v2467
        %2546 = vmatprep.subr.mxu0 0.0
        %2547 = vmatpush1.msra.mxu0 %v2472
        %2548 = vmatprep.subr.mxu0 0.0
        %2549 = vmatpush1.msra.mxu0 %v2475
        %2550 = vmatprep.subr.mxu0 0.0
        %2551 = vmatpush1.msra.mxu0 %v2480
        %2552 = vmatprep.subr.mxu0 0.0
        %2553 = vmatpush1.msra.mxu0 %v2483
        %2554 = vmatprep.subr.mxu0 0.0
        %2555 = vmatpush1.msra.mxu0 %v2488
        %2556 = vmatprep.subr.mxu0 0.0
        %2557 = vmatpush1.msra.mxu0 %v2491
        %2558 = vmatprep.subr.mxu0 0.0
        %2559 = vmatpush1.msra.mxu0 0.0
        %2560 = vmatprep.subr.mxu0 0.0
        %2561 = vmatpush1.msra.mxu0 0.0
        %2562 = vmatprep.subr.mxu0 0.0
        %2563 = vmatpush1.msra.mxu0 0.0
        %2564 = vmatprep.subr.mxu0 0.0
        %2565 = vmatpush1.msra.mxu0 0.0
        %2566 = vmatprep.subr.mxu0 0.0
        %2567 = vmatpush1.msra.mxu0 0.0
        %2568 = vmatprep.subr.mxu0 0.0
        %2569 = vmatpush1.msra.mxu0 0.0
        %2570 = vmatprep.subr.mxu0 0.0
        %2571 = vmatpush1.msra.mxu0 0.0
        %2572 = vmatprep.subr.mxu0 0.0
        %2573 = vmatpush1.msra.mxu0 0.0
        %2574 = vmatprep.subr.mxu0 0.0
        %2575 = vmatpush1.msra.mxu0 0.0
        %2576 = vmatprep.subr.mxu0 0.0
        %2577 = vmatpush1.msra.mxu0 0.0
        %2578 = vmatprep.subr.mxu0 0.0
        %2579 = vmatpush1.msra.mxu0 0.0
        %2580 = vmatprep.subr.mxu0 0.0
        %2581 = vmatpush1.msra.mxu0 0.0
        %2582 = vmatprep.subr.mxu0 0.0
        %2583 = vmatpush1.msra.mxu0 0.0
        %2584 = vmatprep.subr.mxu0 0.0
        %2585 = vmatpush1.msra.mxu0 0.0
        %2586 = vmatprep.subr.mxu0 0.0
        %2587 = vmatpush1.msra.mxu0 0.0
        %2588 = vmatprep.subr.mxu0 0.0
        %2589 = vmatpush1.msra.mxu0 0.0
        %2590 = vmatprep.mubr.f32.mxu0 0.0
        %2591 = vmatmul.mubr.f32.gmra.mrb[0].mxu0 %v2494
        %v2592 = vpop.f32.mrb[0].mxu0
        %v2593 = vadd.f32 0.0, %v2592
        %v2594 = vpop.f32.mrb[0].mxu0
        %2595 = vmatprep.mubr.f32.mxu0 0.0
        %2596 = vmatmul.mubr.f32.gmra.mrb[0].mxu0 %v2495
        %v2597 = vpop.f32.mrb[0].mxu0
        %v2598 = vadd.f32 0.0, %v2597
        %v2599 = vpop.f32.mrb[0].mxu0
        %2600 = vmatprep.mubr.f32.mxu0 0.0
        %2601 = vmatmul.mubr.f32.gmra.mrb[0].mxu0 %v2496
        %v2602 = vpop.f32.mrb[0].mxu0
        %v2603 = vadd.f32 0.0, %v2602
        %v2604 = vpop.f32.mrb[0].mxu0
        %2605 = vmatprep.mubr.f32.mxu0 0.0
        %2606 = vmatmul.mubr.f32.gmra.mrb[0].mxu0 %v2497
        %v2607 = vpop.f32.mrb[0].mxu0
        %v2608 = vadd.f32 0.0, %v2607
        %v2609 = vpop.f32.mrb[0].mxu0
        %2610 = vmatprep.mubr.f32.mxu0 0.0
        %2611 = vmatmul.mubr.f32.gmra.mrb[0].mxu0 %v2498
        %v2612 = vpop.f32.mrb[0].mxu0
        %v2613 = vadd.f32 0.0, %v2612
        %v2614 = vpop.f32.mrb[0].mxu0
        %2615 = vmatprep.mubr.f32.mxu0 0.0
        %2616 = vmatmul.mubr.f32.gmra.mrb[0].mxu0 %v2499
        %v2617 = vpop.f32.mrb[0].mxu0
        %v2618 = vadd.f32 0.0, %v2617
        %v2619 = vpop.f32.mrb[0].mxu0
        %2620 = vmatprep.mubr.f32.mxu0 0.0
        %2621 = vmatmul.mubr.f32.gmra.mrb[0].mxu0 %v2500
        %v2622 = vpop.f32.mrb[0].mxu0
        %v2623 = vadd.f32 0.0, %v2622
        %v2624 = vpop.f32.mrb[0].mxu0
        %2625 = vmatprep.mubr.f32.mxu0 0.0
        %2626 = vmatmul.mubr.f32.gmra.mrb[0].mxu0 %v2501
        %v2627 = vpop.f32.mrb[0].mxu0
        %v2628 = vadd.f32 0.0, %v2627
        %v2629 = vpop.f32.mrb[0].mxu0
        %2630 = vmatprep.mubr.f32.mxu0 0.0
        %2631 = vmatmul.mubr.f32.gmra.mrb[0].mxu0 %v2502
        %v2632 = vpop.f32.mrb[0].mxu0
        %v2633 = vadd.f32 0.0, %v2632
        %v2634 = vpop.f32.mrb[0].mxu0
        %2635 = vmatprep.mubr.f32.mxu0 0.0
        %2636 = vmatmul.mubr.f32.gmra.mrb[0].mxu0 %v2503
        %v2637 = vpop.f32.mrb[0].mxu0
        %v2638 = vadd.f32 0.0, %v2637
        %v2639 = vpop.f32.mrb[0].mxu0
        %2640 = vmatprep.mubr.f32.mxu0 0.0
        %2641 = vmatmul.mubr.f32.gmra.mrb[0].mxu0 %v2504
        %v2642 = vpop.f32.mrb[0].mxu0
        %v2643 = vadd.f32 0.0, %v2642
        %v2644 = vpop.f32.mrb[0].mxu0
        %2645 = vmatprep.mubr.f32.mxu0 0.0
        %2646 = vmatmul.mubr.f32.gmra.mrb[0].mxu0 %v2505
        %v2647 = vpop.f32.mrb[0].mxu0
        %v2648 = vadd.f32 0.0, %v2647
        %v2649 = vpop.f32.mrb[0].mxu0
        %2650 = vmatprep.mubr.f32.mxu0 0.0
        %2651 = vmatmul.mubr.f32.gmra.mrb[0].mxu0 %v2506
        %v2652 = vpop.f32.mrb[0].mxu0
        %v2653 = vadd.f32 0.0, %v2652
        %v2654 = vpop.f32.mrb[0].mxu0
        %2655 = vmatprep.mubr.f32.mxu0 0.0
        %2656 = vmatmul.mubr.f32.gmra.mrb[0].mxu0 %v2507
        %v2657 = vpop.f32.mrb[0].mxu0
        %v2658 = vadd.f32 0.0, %v2657
        %v2659 = vpop.f32.mrb[0].mxu0
        %2660 = vmatprep.mubr.f32.mxu0 0.0
        %2661 = vmatmul.mubr.f32.gmra.mrb[0].mxu0 %v2508
        %v2662 = vpop.f32.mrb[0].mxu0
        %v2663 = vadd.f32 0.0, %v2662
        %v2664 = vpop.f32.mrb[0].mxu0
        %2665 = vmatprep.mubr.f32.mxu0 0.0
        %2666 = vmatmul.mubr.f32.gmra.mrb[0].mxu0 %v2509
        %v2667 = vpop.f32.mrb[0].mxu0
        %v2668 = vadd.f32 0.0, %v2667
        %v2669 = vpop.f32.mrb[0].mxu0
        %2670 = vmatprep.mubr.f32.mxu0 0.0
        %2671 = vmatmul.mubr.f32.gmra.mrb[0].mxu0 %v2510
        %v2672 = vpop.f32.mrb[0].mxu0
        %v2673 = vadd.f32 0.0, %v2672
        %v2674 = vpop.f32.mrb[0].mxu0
        %2675 = vmatprep.mubr.f32.mxu0 0.0
        %2676 = vmatmul.mubr.f32.gmra.mrb[0].mxu0 %v2511
        %v2677 = vpop.f32.mrb[0].mxu0
        %v2678 = vadd.f32 0.0, %v2677
        %v2679 = vpop.f32.mrb[0].mxu0
        %2680 = vmatprep.mubr.f32.mxu0 0.0
        %2681 = vmatmul.mubr.f32.gmra.mrb[0].mxu0 %v2512
        %v2682 = vpop.f32.mrb[0].mxu0
        %v2683 = vadd.f32 0.0, %v2682
        %v2684 = vpop.f32.mrb[0].mxu0
        %2685 = vmatprep.mubr.f32.mxu0 0.0
        %2686 = vmatmul.mubr.f32.gmra.mrb[0].mxu0 %v2513
        %v2687 = vpop.f32.mrb[0].mxu0
        %v2688 = vadd.f32 0.0, %v2687
        %v2689 = vpop.f32.mrb[0].mxu0
        %2690 = vmatprep.mubr.f32.mxu0 0.0
        %2691 = vmatmul.mubr.f32.gmra.mrb[0].mxu0 %v2514
        %v2692 = vpop.f32.mrb[0].mxu0
        %v2693 = vadd.f32 0.0, %v2692
        %v2694 = vpop.f32.mrb[0].mxu0
        %2695 = vmatprep.mubr.f32.mxu0 0.0
        %2696 = vmatmul.mubr.f32.gmra.mrb[0].mxu0 %v2515
        %v2697 = vpop.f32.mrb[0].mxu0
        %v2698 = vadd.f32 0.0, %v2697
        %v2699 = vpop.f32.mrb[0].mxu0
        %2700 = vmatprep.mubr.f32.mxu0 0.0
        %2701 = vmatmul.mubr.f32.gmra.mrb[0].mxu0 %v2516
        %v2702 = vpop.f32.mrb[0].mxu0
        %v2703 = vadd.f32 0.0, %v2702
        %v2704 = vpop.f32.mrb[0].mxu0
        %2705 = vmatprep.mubr.f32.mxu0 0.0
        %2706 = vmatmul.mubr.f32.gmra.mrb[0].mxu0 %v2517
        %v2707 = vpop.f32.mrb[0].mxu0
        %v2708 = vadd.f32 0.0, %v2707
        %v2709 = vpop.f32.mrb[0].mxu0
        %2710 = vmatprep.mubr.f32.mxu0 0.0
        %2711 = vmatmul.mubr.f32.gmra.mrb[0].mxu0 %v2518
        %v2712 = vpop.f32.mrb[0].mxu0
        %v2713 = vadd.f32 0.0, %v2712
        %v2714 = vpop.f32.mrb[0].mxu0
        %2715 = vmatprep.mubr.f32.mxu0 0.0
        %2716 = vmatmul.mubr.f32.gmra.mrb[0].mxu0 %v2519
        %v2717 = vpop.f32.mrb[0].mxu0
        %v2718 = vadd.f32 0.0, %v2717
        %v2719 = vpop.f32.mrb[0].mxu0
        %2720 = vmatprep.mubr.f32.mxu0 0.0
        %2721 = vmatmul.mubr.f32.gmra.mrb[0].mxu0 %v2520
        %v2722 = vpop.f32.mrb[0].mxu0
        %v2723 = vadd.f32 0.0, %v2722
        %v2724 = vpop.f32.mrb[0].mxu0
        %2725 = vmatprep.mubr.f32.mxu0 0.0
        %2726 = vmatmul.mubr.f32.gmra.mrb[0].mxu0 %v2521
        %v2727 = vpop.f32.mrb[0].mxu0
        %v2728 = vadd.f32 0.0, %v2727
        %v2729 = vpop.f32.mrb[0].mxu0
        %2730 = vmatprep.mubr.f32.mxu0 0.0
        %2731 = vmatmul.mubr.f32.gmra.mrb[0].mxu0 %v2522
        %v2732 = vpop.f32.mrb[0].mxu0
        %v2733 = vadd.f32 0.0, %v2732
        %v2734 = vpop.f32.mrb[0].mxu0
        %2735 = vmatprep.mubr.f32.mxu0 0.0
        %2736 = vmatmul.mubr.f32.gmra.mrb[0].mxu0 %v2523
        %v2737 = vpop.f32.mrb[0].mxu0
        %v2738 = vadd.f32 0.0, %v2737
        %v2739 = vpop.f32.mrb[0].mxu0
        %2740 = vmatprep.mubr.f32.mxu0 0.0
        %2741 = vmatmul.mubr.f32.gmra.mrb[0].mxu0 %v2524
        %v2742 = vpop.f32.mrb[0].mxu0
        %v2743 = vadd.f32 0.0, %v2742
        %v2744 = vpop.f32.mrb[0].mxu0
        %2745 = vmatprep.mubr.f32.mxu0 0.0
        %2746 = vmatmul.mubr.f32.gmra.mrb[0].mxu0 %v2525
        %v2747 = vpop.f32.mrb[0].mxu0
        %v2748 = vadd.f32 0.0, %v2747
        %v2749 = vpop.f32.mrb[0].mxu0
        %2750 = vdwg.mxu0
        %v2751 = vmul.f32 %v2593, %v2293
        %v2752 = vmul.f32 %v2598, %v2294
        %v2753 = vmul.f32 %v2603, %v2295
        %v2754 = vmul.f32 %v2608, %v2296
        %v2755 = vmul.f32 %v2613, %v2297
        %v2756 = vmul.f32 %v2618, %v2298
        %v2757 = vmul.f32 %v2623, %v2299
        %v2758 = vmul.f32 %v2628, %v2300
        %v2759 = vmul.f32 %v2633, %v2301
        %v2760 = vmul.f32 %v2638, %v2302
        %v2761 = vmul.f32 %v2643, %v2303
        %v2762 = vmul.f32 %v2648, %v2304
        %v2763 = vmul.f32 %v2653, %v2305
        %v2764 = vmul.f32 %v2658, %v2306
        %v2765 = vmul.f32 %v2663, %v2307
        %v2766 = vmul.f32 %v2668, %v2308
        %v2767 = vmul.f32 %v2673, %v2309
        %v2768 = vmul.f32 %v2678, %v2310
        %v2769 = vmul.f32 %v2683, %v2311
        %v2770 = vmul.f32 %v2688, %v2312
        %v2771 = vmul.f32 %v2693, %v2313
        %v2772 = vmul.f32 %v2698, %v2314
        %v2773 = vmul.f32 %v2703, %v2315
        %v2774 = vmul.f32 %v2708, %v2316
        %v2775 = vmul.f32 %v2713, %v2317
        %v2776 = vmul.f32 %v2718, %v2318
        %v2777 = vmul.f32 %v2723, %v2319
        %v2778 = vmul.f32 %v2728, %v2320
        %v2779 = vmul.f32 %v2733, %v2321
        %v2780 = vmul.f32 %v2738, %v2322
        %v2781 = vmul.f32 %v2743, %v2323
        %v2782 = vmul.f32 %v2748, %v2324
        %v2783 = vld [vmem:[#allocation4] sm:$0xff]
        %v2784 = vld [vmem:[#allocation4 + $0x8] sm:$0xff]
        %v2785 = vld [vmem:[#allocation4 + $0x10] sm:$0xff]
        %v2786 = vld [vmem:[#allocation4 + $0x18] sm:$0xff]
        %v2787 = vld [vmem:[#allocation4 + $0x20] sm:$0xff]
        %v2788 = vld [vmem:[#allocation4 + $0x28] sm:$0xff]
        %v2789 = vld [vmem:[#allocation4 + $0x30] sm:$0xff]
        %v2790 = vld [vmem:[#allocation4 + $0x38] sm:$0xff]
        %v2791 = vld [vmem:[#allocation4 + $0x40] sm:$0xff]
        %v2792 = vld [vmem:[#allocation4 + $0x48] sm:$0xff]
        %v2793 = vld [vmem:[#allocation4 + $0x50] sm:$0xff]
        %v2794 = vld [vmem:[#allocation4 + $0x58] sm:$0xff]
        %v2795 = vld [vmem:[#allocation4 + $0x60] sm:$0xff]
        %v2796 = vld [vmem:[#allocation4 + $0x68] sm:$0xff]
        %v2797 = vld [vmem:[#allocation4 + $0x70] sm:$0xff]
        %v2798 = vld [vmem:[#allocation4 + $0x78] sm:$0xff]
        %v2799 = vld [vmem:[#allocation4 + $0x80] sm:$0xff]
        %v2800 = vld [vmem:[#allocation4 + $0x88] sm:$0xff]
        %v2801 = vld [vmem:[#allocation4 + $0x90] sm:$0xff]
        %v2802 = vld [vmem:[#allocation4 + $0x98] sm:$0xff]
        %v2803 = vld [vmem:[#allocation4 + $0xa0] sm:$0xff]
        %v2804 = vld [vmem:[#allocation4 + $0xa8] sm:$0xff]
        %v2805 = vld [vmem:[#allocation4 + $0xb0] sm:$0xff]
        %v2806 = vld [vmem:[#allocation4 + $0xb8] sm:$0xff]
        %v2807 = vld [vmem:[#allocation4 + $0xc0] sm:$0xff]
        %v2808 = vld [vmem:[#allocation4 + $0xc8] sm:$0xff]
        %v2809 = vld [vmem:[#allocation4 + $0xd0] sm:$0xff]
        %v2810 = vld [vmem:[#allocation4 + $0xd8] sm:$0xff]
        %v2811 = vld [vmem:[#allocation4 + $0xe0] sm:$0xff]
        %v2812 = vld [vmem:[#allocation4 + $0xe8] sm:$0xff]
        %v2813 = vld [vmem:[#allocation4 + $0xf0] sm:$0xff]
        %v2814 = vld [vmem:[#allocation4 + $0xf8] sm:$0xff]
        %2815 = vmatprep.subr.mxu0 0.0
        %2816 = vmatpush1.msra.mxu0 %v2751
        %2817 = vmatprep.subr.mxu0 0.0
        %2818 = vmatpush1.msra.mxu0 %v2752
        %2819 = vmatprep.subr.mxu0 0.0
        %2820 = vmatpush1.msra.mxu0 %v2753
        %2821 = vmatprep.subr.mxu0 0.0
        %2822 = vmatpush1.msra.mxu0 %v2754
        %2823 = vmatprep.subr.mxu0 0.0
        %2824 = vmatpush1.msra.mxu0 %v2755
        %2825 = vmatprep.subr.mxu0 0.0
        %2826 = vmatpush1.msra.mxu0 %v2756
        %2827 = vmatprep.subr.mxu0 0.0
        %2828 = vmatpush1.msra.mxu0 %v2757
        %2829 = vmatprep.subr.mxu0 0.0
        %2830 = vmatpush1.msra.mxu0 %v2758
        %2831 = vmatprep.subr.mxu0 0.0
        %2832 = vmatpush1.msra.mxu0 %v2759
        %2833 = vmatprep.subr.mxu0 0.0
        %2834 = vmatpush1.msra.mxu0 %v2760
        %2835 = vmatprep.subr.mxu0 0.0
        %2836 = vmatpush1.msra.mxu0 %v2761
        %2837 = vmatprep.subr.mxu0 0.0
        %2838 = vmatpush1.msra.mxu0 %v2762
        %2839 = vmatprep.subr.mxu0 0.0
        %2840 = vmatpush1.msra.mxu0 %v2763
        %2841 = vmatprep.subr.mxu0 0.0
        %2842 = vmatpush1.msra.mxu0 %v2764
        %2843 = vmatprep.subr.mxu0 0.0
        %2844 = vmatpush1.msra.mxu0 %v2765
        %2845 = vmatprep.subr.mxu0 0.0
        %2846 = vmatpush1.msra.mxu0 %v2766
        %2847 = vmatprep.subr.mxu0 0.0
        %2848 = vmatpush1.msra.mxu0 %v2767
        %2849 = vmatprep.subr.mxu0 0.0
        %2850 = vmatpush1.msra.mxu0 %v2768
        %2851 = vmatprep.subr.mxu0 0.0
        %2852 = vmatpush1.msra.mxu0 %v2769
        %2853 = vmatprep.subr.mxu0 0.0
        %2854 = vmatpush1.msra.mxu0 %v2770
        %2855 = vmatprep.subr.mxu0 0.0
        %2856 = vmatpush1.msra.mxu0 %v2771
        %2857 = vmatprep.subr.mxu0 0.0
        %2858 = vmatpush1.msra.mxu0 %v2772
        %2859 = vmatprep.subr.mxu0 0.0
        %2860 = vmatpush1.msra.mxu0 %v2773
        %2861 = vmatprep.subr.mxu0 0.0
        %2862 = vmatpush1.msra.mxu0 %v2774
        %2863 = vmatprep.subr.mxu0 0.0
        %2864 = vmatpush1.msra.mxu0 %v2775
        %2865 = vmatprep.subr.mxu0 0.0
        %2866 = vmatpush1.msra.mxu0 %v2776
        %2867 = vmatprep.subr.mxu0 0.0
        %2868 = vmatpush1.msra.mxu0 %v2777
        %2869 = vmatprep.subr.mxu0 0.0
        %2870 = vmatpush1.msra.mxu0 %v2778
        %2871 = vmatprep.subr.mxu0 0.0
        %2872 = vmatpush1.msra.mxu0 %v2779
        %2873 = vmatprep.subr.mxu0 0.0
        %2874 = vmatpush1.msra.mxu0 %v2780
        %2875 = vmatprep.subr.mxu0 0.0
        %2876 = vmatpush1.msra.mxu0 %v2781
        %2877 = vmatprep.subr.mxu0 0.0
        %2878 = vmatpush1.msra.mxu0 %v2782
        %2879 = vmatprep.mubr.f32.mxu0 %v2784
        %2880 = vmatmul.mubr.f32.gmra.mrb[0].mxu0 %v2783
        %v2881 = vpop.f32.mrb[0].mxu0
        %v2882 = vadd.f32 0.0, %v2881
        %v2883 = vpop.f32.mrb[0].mxu0
        %2884 = vmatprep.mubr.f32.mxu0 %v2786
        %2885 = vmatmul.mubr.f32.gmra.mrb[0].mxu0 %v2785
        %v2886 = vpop.f32.mrb[0].mxu0
        %v2887 = vadd.f32 0.0, %v2886
        %v2888 = vpop.f32.mrb[0].mxu0
        %2889 = vmatprep.mubr.f32.mxu0 %v2788
        %2890 = vmatmul.mubr.f32.gmra.mrb[0].mxu0 %v2787
        %v2891 = vpop.f32.mrb[0].mxu0
        %v2892 = vadd.f32 0.0, %v2891
        %v2893 = vpop.f32.mrb[0].mxu0
        %2894 = vmatprep.mubr.f32.mxu0 %v2790
        %2895 = vmatmul.mubr.f32.gmra.mrb[0].mxu0 %v2789
        %v2896 = vpop.f32.mrb[0].mxu0
        %v2897 = vadd.f32 0.0, %v2896
        %v2898 = vpop.f32.mrb[0].mxu0
        %2899 = vmatprep.mubr.f32.mxu0 %v2792
        %2900 = vmatmul.mubr.f32.gmra.mrb[0].mxu0 %v2791
        %v2901 = vpop.f32.mrb[0].mxu0
        %v2902 = vadd.f32 0.0, %v2901
        %v2903 = vpop.f32.mrb[0].mxu0
        %2904 = vmatprep.mubr.f32.mxu0 %v2794
        %2905 = vmatmul.mubr.f32.gmra.mrb[0].mxu0 %v2793
        %v2906 = vpop.f32.mrb[0].mxu0
        %v2907 = vadd.f32 0.0, %v2906
        %v2908 = vpop.f32.mrb[0].mxu0
        %2909 = vmatprep.mubr.f32.mxu0 %v2796
        %2910 = vmatmul.mubr.f32.gmra.mrb[0].mxu0 %v2795
        %v2911 = vpop.f32.mrb[0].mxu0
        %v2912 = vadd.f32 0.0, %v2911
        %v2913 = vpop.f32.mrb[0].mxu0
        %2914 = vmatprep.mubr.f32.mxu0 %v2798
        %2915 = vmatmul.mubr.f32.gmra.mrb[0].mxu0 %v2797
        %v2916 = vpop.f32.mrb[0].mxu0
        %v2917 = vadd.f32 0.0, %v2916
        %v2918 = vpop.f32.mrb[0].mxu0
        %2919 = vmatprep.mubr.f32.mxu0 %v2800
        %2920 = vmatmul.mubr.f32.gmra.mrb[0].mxu0 %v2799
        %v2921 = vpop.f32.mrb[0].mxu0
        %v2922 = vadd.f32 0.0, %v2921
        %v2923 = vpop.f32.mrb[0].mxu0
        %2924 = vmatprep.mubr.f32.mxu0 %v2802
        %2925 = vmatmul.mubr.f32.gmra.mrb[0].mxu0 %v2801
        %v2926 = vpop.f32.mrb[0].mxu0
        %v2927 = vadd.f32 0.0, %v2926
        %v2928 = vpop.f32.mrb[0].mxu0
        %2929 = vmatprep.mubr.f32.mxu0 %v2804
        %2930 = vmatmul.mubr.f32.gmra.mrb[0].mxu0 %v2803
        %v2931 = vpop.f32.mrb[0].mxu0
        %v2932 = vadd.f32 0.0, %v2931
        %v2933 = vpop.f32.mrb[0].mxu0
        %2934 = vmatprep.mubr.f32.mxu0 %v2806
        %2935 = vmatmul.mubr.f32.gmra.mrb[0].mxu0 %v2805
        %v2936 = vpop.f32.mrb[0].mxu0
        %v2937 = vadd.f32 0.0, %v2936
        %v2938 = vpop.f32.mrb[0].mxu0
        %2939 = vmatprep.mubr.f32.mxu0 %v2808
        %2940 = vmatmul.mubr.f32.gmra.mrb[0].mxu0 %v2807
        %v2941 = vpop.f32.mrb[0].mxu0
        %v2942 = vadd.f32 0.0, %v2941
        %v2943 = vpop.f32.mrb[0].mxu0
        %2944 = vmatprep.mubr.f32.mxu0 %v2810
        %2945 = vmatmul.mubr.f32.gmra.mrb[0].mxu0 %v2809
        %v2946 = vpop.f32.mrb[0].mxu0
        %v2947 = vadd.f32 0.0, %v2946
        %v2948 = vpop.f32.mrb[0].mxu0
        %2949 = vmatprep.mubr.f32.mxu0 %v2812
        %2950 = vmatmul.mubr.f32.gmra.mrb[0].mxu0 %v2811
        %v2951 = vpop.f32.mrb[0].mxu0
        %v2952 = vadd.f32 0.0, %v2951
        %v2953 = vpop.f32.mrb[0].mxu0
        %2954 = vmatprep.mubr.f32.mxu0 %v2814
        %2955 = vmatmul.mubr.f32.gmra.mrb[0].mxu0 %v2813
        %v2956 = vpop.f32.mrb[0].mxu0
        %v2957 = vadd.f32 0.0, %v2956
        %v2958 = vpop.f32.mrb[0].mxu0
        %2959 = vdwg.mxu0
        %v2960 = vld [vmem:[%s637] sm:$0xf]
        %v2961 = vld [vmem:[%s637 + $0x4] sm:$0xf]
        %v2962 = vld [vmem:[%s637 + $0x8] sm:$0xf]
        %v2963 = vld [vmem:[%s637 + $0xc] sm:$0xf]
        %v2964 = vld [vmem:[%s637 + $0x10] sm:$0xf]
        %v2965 = vld [vmem:[%s637 + $0x14] sm:$0xf]
        %v2966 = vld [vmem:[%s637 + $0x18] sm:$0xf]
        %v2967 = vld [vmem:[%s637 + $0x1c] sm:$0xf]
        %v2968 = vld [vmem:[%s637 + $0x20] sm:$0xf]
        %v2969 = vld [vmem:[%s637 + $0x24] sm:$0xf]
        %v2970 = vld [vmem:[%s637 + $0x28] sm:$0xf]
        %v2971 = vld [vmem:[%s637 + $0x2c] sm:$0xf]
        %v2972 = vld [vmem:[%s637 + $0x30] sm:$0xf]
        %v2973 = vld [vmem:[%s637 + $0x34] sm:$0xf]
        %v2974 = vld [vmem:[%s637 + $0x38] sm:$0xf]
        %v2975 = vld [vmem:[%s637 + $0x3c] sm:$0xf]
        %v2976 = vpack.c.bf16 %v2887, %v2882
        %v2977 = vpack.c.bf16 %v2897, %v2892
        %v2978 = vpack.c.bf16 %v2907, %v2902
        %v2979 = vpack.c.bf16 %v2917, %v2912
        %v2980 = vpack.c.bf16 %v2927, %v2922
        %v2981 = vpack.c.bf16 %v2937, %v2932
        %v2982 = vpack.c.bf16 %v2947, %v2942
        %v2983 = vpack.c.bf16 %v2957, %v2952
        %v2984 = vld [vmem:[%s784] sm:$0x1]
        %v2986 = vlaneseq
        %v2987 = vshrl.u32 %v2986, 7
        %v2988 = vsub.s32 0, %v2987
        %v2989 = vrot.slane %v2984, %v2988
        %v3007 = vunpack.c.l.b16 %v2960
        %v3008 = vunpack.c.l.b16 %v2961
        %v3009 = vunpack.c.l.b16 %v2962
        %v3010 = vunpack.c.l.b16 %v2963
        %v3011 = vunpack.c.l.b16 %v2964
        %v3012 = vunpack.c.l.b16 %v2965
        %v3013 = vunpack.c.l.b16 %v2966
        %v3014 = vunpack.c.l.b16 %v2967
        %v3015 = vunpack.c.l.b16 %v2968
        %v3016 = vunpack.c.l.b16 %v2969
        %v3017 = vunpack.c.l.b16 %v2970
        %v3018 = vunpack.c.l.b16 %v2971
        %v3019 = vunpack.c.l.b16 %v2972
        %v3020 = vunpack.c.l.b16 %v2973
        %v3021 = vunpack.c.l.b16 %v2974
        %v3022 = vunpack.c.l.b16 %v2975
        %v3023 = vpack.c.b16 %v3008, %v3007
        %v3024 = vpack.c.b16 %v3010, %v3009
        %v3025 = vpack.c.b16 %v3012, %v3011
        %v3026 = vpack.c.b16 %v3014, %v3013
        %v3027 = vpack.c.b16 %v3016, %v3015
        %v3028 = vpack.c.b16 %v3018, %v3017
        %v3029 = vpack.c.b16 %v3020, %v3019
        %v3030 = vpack.c.b16 %v3022, %v3021
        %3039 = vmatprep.subr.bf16.mxu0 0
        %3040 = vmatpush1.bf16.msra.mxu0 %v3023
        %3041 = vmatprep.subr.bf16.mxu0 0
        %3042 = vmatpush1.bf16.msra.mxu0 %v3024
        %3043 = vmatprep.subr.bf16.mxu0 0
        %3044 = vmatpush1.bf16.msra.mxu0 %v3025
        %3045 = vmatprep.subr.bf16.mxu0 0
        %3046 = vmatpush1.bf16.msra.mxu0 %v3026
        %3047 = vmatprep.subr.bf16.mxu0 0
        %3048 = vmatpush1.bf16.msra.mxu0 %v3027
        %3049 = vmatprep.subr.bf16.mxu0 0
        %3050 = vmatpush1.bf16.msra.mxu0 %v3028
        %3051 = vmatprep.subr.bf16.mxu0 0
        %3052 = vmatpush1.bf16.msra.mxu0 %v3029
        %3053 = vmatprep.subr.bf16.mxu0 0
        %3054 = vmatpush1.bf16.msra.mxu0 %v3030
        %3055 = vmatprep.subr.bf16.mxu0 0
        %3056 = vmatpush1.bf16.msra.mxu0 0
        %3057 = vmatprep.subr.bf16.mxu0 0
        %3058 = vmatpush1.bf16.msra.mxu0 0
        %3059 = vmatprep.subr.bf16.mxu0 0
        %3060 = vmatpush1.bf16.msra.mxu0 0
        %3061 = vmatprep.subr.bf16.mxu0 0
        %3062 = vmatpush1.bf16.msra.mxu0 0
        %3063 = vmatprep.subr.bf16.mxu0 0
        %3064 = vmatpush1.bf16.msra.mxu0 0
        %3065 = vmatprep.subr.bf16.mxu0 0
        %3066 = vmatpush1.bf16.msra.mxu0 0
        %3067 = vmatprep.subr.bf16.mxu0 0
        %3068 = vmatpush1.bf16.msra.mxu0 0
        %3069 = vmatprep.subr.bf16.mxu0 0
        %3070 = vmatpush1.bf16.msra.mxu0 0
        %3071 = vmatprep.mubr.bf16.mxu0 0
        %3072 = vmatmul.mubr.bf16.gmra.mrb[0].mxu0 %v2976
        %v3073 = vpop.f32.mrb[0].mxu0
        %v3074 = vadd.f32 %v2989, %v3073
        %v3075 = vpop.f32.mrb[0].mxu0
        %v3076 = vpop.f32.mrb[0].mxu0
        %v3077 = vadd.f32 %v2989, %v3076
        %v3078 = vpop.f32.mrb[0].mxu0
        %3079 = vmatprep.mubr.bf16.mxu0 0
        %3080 = vmatmul.mubr.bf16.gmra.mrb[0].mxu0 %v2977
        %v3081 = vpop.f32.mrb[0].mxu0
        %v3082 = vadd.f32 %v2989, %v3081
        %v3083 = vpop.f32.mrb[0].mxu0
        %v3084 = vpop.f32.mrb[0].mxu0
        %v3085 = vadd.f32 %v2989, %v3084
        %v3086 = vpop.f32.mrb[0].mxu0
        %3087 = vmatprep.mubr.bf16.mxu0 0
        %3088 = vmatmul.mubr.bf16.gmra.mrb[0].mxu0 %v2978
        %v3089 = vpop.f32.mrb[0].mxu0
        %v3090 = vadd.f32 %v2989, %v3089
        %v3091 = vpop.f32.mrb[0].mxu0
        %v3092 = vpop.f32.mrb[0].mxu0
        %v3093 = vadd.f32 %v2989, %v3092
        %v3094 = vpop.f32.mrb[0].mxu0
        %3095 = vmatprep.mubr.bf16.mxu0 0
        %3096 = vmatmul.mubr.bf16.gmra.mrb[0].mxu0 %v2979
        %v3097 = vpop.f32.mrb[0].mxu0
        %v3098 = vadd.f32 %v2989, %v3097
        %v3099 = vpop.f32.mrb[0].mxu0
        %v3100 = vpop.f32.mrb[0].mxu0
        %v3101 = vadd.f32 %v2989, %v3100
        %v3102 = vpop.f32.mrb[0].mxu0
        %3103 = vmatprep.mubr.bf16.mxu0 0
        %3104 = vmatmul.mubr.bf16.gmra.mrb[0].mxu0 %v2980
        %v3105 = vpop.f32.mrb[0].mxu0
        %v3106 = vadd.f32 %v2989, %v3105
        %v3107 = vpop.f32.mrb[0].mxu0
        %v3108 = vpop.f32.mrb[0].mxu0
        %v3109 = vadd.f32 %v2989, %v3108
        %v3110 = vpop.f32.mrb[0].mxu0
        %3111 = vmatprep.mubr.bf16.mxu0 0
        %3112 = vmatmul.mubr.bf16.gmra.mrb[0].mxu0 %v2981
        %v3113 = vpop.f32.mrb[0].mxu0
        %v3114 = vadd.f32 %v2989, %v3113
        %v3115 = vpop.f32.mrb[0].mxu0
        %v3116 = vpop.f32.mrb[0].mxu0
        %v3117 = vadd.f32 %v2989, %v3116
        %v3118 = vpop.f32.mrb[0].mxu0
        %3119 = vmatprep.mubr.bf16.mxu0 0
        %3120 = vmatmul.mubr.bf16.gmra.mrb[0].mxu0 %v2982
        %v3121 = vpop.f32.mrb[0].mxu0
        %v3122 = vadd.f32 %v2989, %v3121
        %v3123 = vpop.f32.mrb[0].mxu0
        %v3124 = vpop.f32.mrb[0].mxu0
        %v3125 = vadd.f32 %v2989, %v3124
        %v3126 = vpop.f32.mrb[0].mxu0
        %3127 = vmatprep.mubr.bf16.mxu0 0
        %3128 = vmatmul.mubr.bf16.gmra.mrb[0].mxu0 %v2983
        %v3129 = vpop.f32.mrb[0].mxu0
        %v3130 = vadd.f32 %v2989, %v3129
        %v3131 = vpop.f32.mrb[0].mxu0
        %v3132 = vpop.f32.mrb[0].mxu0
        %v3133 = vadd.f32 %v2989, %v3132
        %v3134 = vpop.f32.mrb[0].mxu0
        %3135 = vdwg.mxu0
        %v3136 = vmax.f32 %v3074, 0.0
        %v3137 = vmax.f32 %v3077, 0.0
        %v3138 = vmax.f32 %v3082, 0.0
        %v3139 = vmax.f32 %v3085, 0.0
        %v3140 = vmax.f32 %v3090, 0.0
        %v3141 = vmax.f32 %v3093, 0.0
        %v3142 = vmax.f32 %v3098, 0.0
        %v3143 = vmax.f32 %v3101, 0.0
        %v3144 = vmax.f32 %v3106, 0.0
        %v3145 = vmax.f32 %v3109, 0.0
        %v3146 = vmax.f32 %v3114, 0.0
        %v3147 = vmax.f32 %v3117, 0.0
        %v3148 = vmax.f32 %v3122, 0.0
        %v3149 = vmax.f32 %v3125, 0.0
        %v3150 = vmax.f32 %v3130, 0.0
        %v3151 = vmax.f32 %v3133, 0.0
        %v3152 = vand.u32 2147483647, %v3074
        %v3153 = vand.u32 2147483647, %v3077
        %v3154 = vand.u32 2147483647, %v3082
        %v3155 = vand.u32 2147483647, %v3085
        %v3156 = vand.u32 2147483647, %v3090
        %v3157 = vand.u32 2147483647, %v3093
        %v3158 = vand.u32 2147483647, %v3098
        %v3159 = vand.u32 2147483647, %v3101
        %v3160 = vand.u32 2147483647, %v3106
        %v3161 = vand.u32 2147483647, %v3109
        %v3162 = vand.u32 2147483647, %v3114
        %v3163 = vand.u32 2147483647, %v3117
        %v3164 = vand.u32 2147483647, %v3122
        %v3165 = vand.u32 2147483647, %v3125
        %v3166 = vand.u32 2147483647, %v3130
        %v3167 = vand.u32 2147483647, %v3133
        %v3168 = vsub.f32 0.0, %v3152
        %v3169 = vsub.f32 0.0, %v3153
        %v3170 = vsub.f32 0.0, %v3154
        %v3171 = vsub.f32 0.0, %v3155
        %v3172 = vsub.f32 0.0, %v3156
        %v3173 = vsub.f32 0.0, %v3157
        %v3174 = vsub.f32 0.0, %v3158
        %v3175 = vsub.f32 0.0, %v3159
        %v3176 = vsub.f32 0.0, %v3160
        %v3177 = vsub.f32 0.0, %v3161
        %v3178 = vsub.f32 0.0, %v3162
        %v3179 = vsub.f32 0.0, %v3163
        %v3180 = vsub.f32 0.0, %v3164
        %v3181 = vsub.f32 0.0, %v3165
        %v3182 = vsub.f32 0.0, %v3166
        %v3183 = vsub.f32 0.0, %v3167
        %v3184 = vmul.f32 %v3168, 1.442695
        %v3185 = vpow.pop %v3184
        %v3186 = vmul.f32 %v3169, 1.442695
        %v3187 = vpow.pop %v3186
        %v3188 = vmul.f32 %v3170, 1.442695
        %v3189 = vpow.pop %v3188
        %v3190 = vmul.f32 %v3171, 1.442695
        %v3191 = vpow.pop %v3190
        %v3192 = vmul.f32 %v3172, 1.442695
        %v3193 = vpow.pop %v3192
        %v3194 = vmul.f32 %v3173, 1.442695
        %v3195 = vpow.pop %v3194
        %v3196 = vmul.f32 %v3174, 1.442695
        %v3197 = vpow.pop %v3196
        %v3198 = vmul.f32 %v3175, 1.442695
        %v3199 = vpow.pop %v3198
        %v3200 = vmul.f32 %v3176, 1.442695
        %v3201 = vpow.pop %v3200
        %v3202 = vmul.f32 %v3177, 1.442695
        %v3203 = vpow.pop %v3202
        %v3204 = vmul.f32 %v3178, 1.442695
        %v3205 = vpow.pop %v3204
        %v3206 = vmul.f32 %v3179, 1.442695
        %v3207 = vpow.pop %v3206
        %v3208 = vmul.f32 %v3180, 1.442695
        %v3209 = vpow.pop %v3208
        %v3210 = vmul.f32 %v3181, 1.442695
        %v3211 = vpow.pop %v3210
        %v3212 = vmul.f32 %v3182, 1.442695
        %v3213 = vpow.pop %v3212
        %v3214 = vmul.f32 %v3183, 1.442695
        %v3215 = vpow.pop %v3214
        %v3216 = vadd.f32 %v3185, 1.0
        %v3217 = vadd.f32 %v3187, 1.0
        %v3218 = vadd.f32 %v3189, 1.0
        %v3219 = vadd.f32 %v3191, 1.0
        %v3220 = vadd.f32 %v3193, 1.0
        %v3221 = vadd.f32 %v3195, 1.0
        %v3222 = vadd.f32 %v3197, 1.0
        %v3223 = vadd.f32 %v3199, 1.0
        %v3224 = vadd.f32 %v3201, 1.0
        %v3225 = vadd.f32 %v3203, 1.0
        %v3226 = vadd.f32 %v3205, 1.0
        %v3227 = vadd.f32 %v3207, 1.0
        %v3228 = vadd.f32 %v3209, 1.0
        %v3229 = vadd.f32 %v3211, 1.0
        %v3230 = vadd.f32 %v3213, 1.0
        %v3231 = vadd.f32 %v3215, 1.0
        %v3232 = vlog2.pop %v3216
        %v3233 = vmul.f32 %v3232, 0.6931472
        %v3234 = vlog2.pop %v3217
        %v3235 = vmul.f32 %v3234, 0.6931472
        %v3236 = vlog2.pop %v3218
        %v3237 = vmul.f32 %v3236, 0.6931472
        %v3238 = vlog2.pop %v3219
        %v3239 = vmul.f32 %v3238, 0.6931472
        %v3240 = vlog2.pop %v3220
        %v3241 = vmul.f32 %v3240, 0.6931472
        %v3242 = vlog2.pop %v3221
        %v3243 = vmul.f32 %v3242, 0.6931472
        %v3244 = vlog2.pop %v3222
        %v3245 = vmul.f32 %v3244, 0.6931472
        %v3246 = vlog2.pop %v3223
        %v3247 = vmul.f32 %v3246, 0.6931472
        %v3248 = vlog2.pop %v3224
        %v3249 = vmul.f32 %v3248, 0.6931472
        %v3250 = vlog2.pop %v3225
        %v3251 = vmul.f32 %v3250, 0.6931472
        %v3252 = vlog2.pop %v3226
        %v3253 = vmul.f32 %v3252, 0.6931472
        %v3254 = vlog2.pop %v3227
        %v3255 = vmul.f32 %v3254, 0.6931472
        %v3256 = vlog2.pop %v3228
        %v3257 = vmul.f32 %v3256, 0.6931472
        %v3258 = vlog2.pop %v3229
        %v3259 = vmul.f32 %v3258, 0.6931472
        %v3260 = vlog2.pop %v3230
        %v3261 = vmul.f32 %v3260, 0.6931472
        %v3262 = vlog2.pop %v3231
        %v3263 = vmul.f32 %v3262, 0.6931472
        %v3264 = vadd.f32 %v3136, %v3233
        %v3265 = vadd.f32 %v3137, %v3235
        %v3266 = vadd.f32 %v3138, %v3237
        %v3267 = vadd.f32 %v3139, %v3239
        %v3268 = vadd.f32 %v3140, %v3241
        %v3269 = vadd.f32 %v3141, %v3243
        %v3270 = vadd.f32 %v3142, %v3245
        %v3271 = vadd.f32 %v3143, %v3247
        %v3272 = vadd.f32 %v3144, %v3249
        %v3273 = vadd.f32 %v3145, %v3251
        %v3274 = vadd.f32 %v3146, %v3253
        %v3275 = vadd.f32 %v3147, %v3255
        %v3276 = vadd.f32 %v3148, %v3257
        %v3277 = vadd.f32 %v3149, %v3259
        %v3278 = vadd.f32 %v3150, %v3261
        %v3279 = vadd.f32 %v3151, %v3263
        %v3280 = vsub.f32 %v3264, 0.6931472
        %v3281 = vsub.f32 %v3265, 0.6931472
        %v3282 = vsub.f32 %v3266, 0.6931472
        %v3283 = vsub.f32 %v3267, 0.6931472
        %v3284 = vsub.f32 %v3268, 0.6931472
        %v3285 = vsub.f32 %v3269, 0.6931472
        %v3286 = vsub.f32 %v3270, 0.6931472
        %v3287 = vsub.f32 %v3271, 0.6931472
        %v3288 = vsub.f32 %v3272, 0.6931472
        %v3289 = vsub.f32 %v3273, 0.6931472
        %v3290 = vsub.f32 %v3274, 0.6931472
        %v3291 = vsub.f32 %v3275, 0.6931472
        %v3292 = vsub.f32 %v3276, 0.6931472
        %v3293 = vsub.f32 %v3277, 0.6931472
        %v3294 = vsub.f32 %v3278, 0.6931472
        %v3295 = vsub.f32 %v3279, 0.6931472
        %v3296 = vld [vmem:[%s646] sm:$0xf]
        %v3297 = vld [vmem:[%s646 + $0x4] sm:$0xf]
        %v3298 = vld [vmem:[%s646 + $0x8] sm:$0xf]
        %v3299 = vld [vmem:[%s646 + $0xc] sm:$0xf]
        %v3300 = vld [vmem:[%s646 + $0x10] sm:$0xf]
        %v3301 = vld [vmem:[%s646 + $0x14] sm:$0xf]
        %v3302 = vld [vmem:[%s646 + $0x18] sm:$0xf]
        %v3303 = vld [vmem:[%s646 + $0x1c] sm:$0xf]
        %v3304 = vld [vmem:[%s646 + $0x20] sm:$0xf]
        %v3305 = vld [vmem:[%s646 + $0x24] sm:$0xf]
        %v3306 = vld [vmem:[%s646 + $0x28] sm:$0xf]
        %v3307 = vld [vmem:[%s646 + $0x2c] sm:$0xf]
        %v3308 = vld [vmem:[%s646 + $0x30] sm:$0xf]
        %v3309 = vld [vmem:[%s646 + $0x34] sm:$0xf]
        %v3310 = vld [vmem:[%s646 + $0x38] sm:$0xf]
        %v3311 = vld [vmem:[%s646 + $0x3c] sm:$0xf]
        %v3312 = vpack.c.bf16 %v3281, %v3280
        %v3313 = vpack.c.bf16 %v3283, %v3282
        %v3314 = vpack.c.bf16 %v3285, %v3284
        %v3315 = vpack.c.bf16 %v3287, %v3286
        %v3316 = vpack.c.bf16 %v3289, %v3288
        %v3317 = vpack.c.bf16 %v3291, %v3290
        %v3318 = vpack.c.bf16 %v3293, %v3292
        %v3319 = vpack.c.bf16 %v3295, %v3294
        %v3320 = vld [vmem:[%s787] sm:$0x1]
        %v3322 = vlaneseq
        %v3323 = vshrl.u32 %v3322, 7
        %v3324 = vsub.s32 0, %v3323
        %v3325 = vrot.slane %v3320, %v3324
        %v3343 = vunpack.c.l.b16 %v3296
        %v3344 = vunpack.c.l.b16 %v3297
        %v3345 = vunpack.c.l.b16 %v3298
        %v3346 = vunpack.c.l.b16 %v3299
        %v3347 = vunpack.c.l.b16 %v3300
        %v3348 = vunpack.c.l.b16 %v3301
        %v3349 = vunpack.c.l.b16 %v3302
        %v3350 = vunpack.c.l.b16 %v3303
        %v3351 = vunpack.c.l.b16 %v3304
        %v3352 = vunpack.c.l.b16 %v3305
        %v3353 = vunpack.c.l.b16 %v3306
        %v3354 = vunpack.c.l.b16 %v3307
        %v3355 = vunpack.c.l.b16 %v3308
        %v3356 = vunpack.c.l.b16 %v3309
        %v3357 = vunpack.c.l.b16 %v3310
        %v3358 = vunpack.c.l.b16 %v3311
        %v3359 = vpack.c.b16 %v3344, %v3343
        %v3360 = vpack.c.b16 %v3346, %v3345
        %v3361 = vpack.c.b16 %v3348, %v3347
        %v3362 = vpack.c.b16 %v3350, %v3349
        %v3363 = vpack.c.b16 %v3352, %v3351
        %v3364 = vpack.c.b16 %v3354, %v3353
        %v3365 = vpack.c.b16 %v3356, %v3355
        %v3366 = vpack.c.b16 %v3358, %v3357
        %3375 = vmatprep.subr.bf16.mxu0 0
        %3376 = vmatpush1.bf16.msra.mxu0 %v3359
        %3377 = vmatprep.subr.bf16.mxu0 0
        %3378 = vmatpush1.bf16.msra.mxu0 %v3360
        %3379 = vmatprep.subr.bf16.mxu0 0
        %3380 = vmatpush1.bf16.msra.mxu0 %v3361
        %3381 = vmatprep.subr.bf16.mxu0 0
        %3382 = vmatpush1.bf16.msra.mxu0 %v3362
        %3383 = vmatprep.subr.bf16.mxu0 0
        %3384 = vmatpush1.bf16.msra.mxu0 %v3363
        %3385 = vmatprep.subr.bf16.mxu0 0
        %3386 = vmatpush1.bf16.msra.mxu0 %v3364
        %3387 = vmatprep.subr.bf16.mxu0 0
        %3388 = vmatpush1.bf16.msra.mxu0 %v3365
        %3389 = vmatprep.subr.bf16.mxu0 0
        %3390 = vmatpush1.bf16.msra.mxu0 %v3366
        %3391 = vmatprep.subr.bf16.mxu0 0
        %3392 = vmatpush1.bf16.msra.mxu0 0
        %3393 = vmatprep.subr.bf16.mxu0 0
        %3394 = vmatpush1.bf16.msra.mxu0 0
        %3395 = vmatprep.subr.bf16.mxu0 0
        %3396 = vmatpush1.bf16.msra.mxu0 0
        %3397 = vmatprep.subr.bf16.mxu0 0
        %3398 = vmatpush1.bf16.msra.mxu0 0
        %3399 = vmatprep.subr.bf16.mxu0 0
        %3400 = vmatpush1.bf16.msra.mxu0 0
        %3401 = vmatprep.subr.bf16.mxu0 0
        %3402 = vmatpush1.bf16.msra.mxu0 0
        %3403 = vmatprep.subr.bf16.mxu0 0
        %3404 = vmatpush1.bf16.msra.mxu0 0
        %3405 = vmatprep.subr.bf16.mxu0 0
        %3406 = vmatpush1.bf16.msra.mxu0 0
        %3407 = vmatprep.mubr.bf16.mxu0 0
        %3408 = vmatmul.mubr.bf16.gmra.mrb[0].mxu0 %v3312
        %v3409 = vpop.f32.mrb[0].mxu0
        %v3410 = vadd.f32 %v3325, %v3409
        %v3411 = vpop.f32.mrb[0].mxu0
        %v3412 = vpop.f32.mrb[0].mxu0
        %v3413 = vadd.f32 %v3325, %v3412
        %v3414 = vpop.f32.mrb[0].mxu0
        %3415 = vmatprep.mubr.bf16.mxu0 0
        %3416 = vmatmul.mubr.bf16.gmra.mrb[0].mxu0 %v3313
        %v3417 = vpop.f32.mrb[0].mxu0
        %v3418 = vadd.f32 %v3325, %v3417
        %v3419 = vpop.f32.mrb[0].mxu0
        %v3420 = vpop.f32.mrb[0].mxu0
        %v3421 = vadd.f32 %v3325, %v3420
        %v3422 = vpop.f32.mrb[0].mxu0
        %3423 = vmatprep.mubr.bf16.mxu0 0
        %3424 = vmatmul.mubr.bf16.gmra.mrb[0].mxu0 %v3314
        %v3425 = vpop.f32.mrb[0].mxu0
        %v3426 = vadd.f32 %v3325, %v3425
        %v3427 = vpop.f32.mrb[0].mxu0
        %v3428 = vpop.f32.mrb[0].mxu0
        %v3429 = vadd.f32 %v3325, %v3428
        %v3430 = vpop.f32.mrb[0].mxu0
        %3431 = vmatprep.mubr.bf16.mxu0 0
        %3432 = vmatmul.mubr.bf16.gmra.mrb[0].mxu0 %v3315
        %v3433 = vpop.f32.mrb[0].mxu0
        %v3434 = vadd.f32 %v3325, %v3433
        %v3435 = vpop.f32.mrb[0].mxu0
        %v3436 = vpop.f32.mrb[0].mxu0
        %v3437 = vadd.f32 %v3325, %v3436
        %v3438 = vpop.f32.mrb[0].mxu0
        %3439 = vmatprep.mubr.bf16.mxu0 0
        %3440 = vmatmul.mubr.bf16.gmra.mrb[0].mxu0 %v3316
        %v3441 = vpop.f32.mrb[0].mxu0
        %v3442 = vadd.f32 %v3325, %v3441
        %v3443 = vpop.f32.mrb[0].mxu0
        %v3444 = vpop.f32.mrb[0].mxu0
        %v3445 = vadd.f32 %v3325, %v3444
        %v3446 = vpop.f32.mrb[0].mxu0
        %3447 = vmatprep.mubr.bf16.mxu0 0
        %3448 = vmatmul.mubr.bf16.gmra.mrb[0].mxu0 %v3317
        %v3449 = vpop.f32.mrb[0].mxu0
        %v3450 = vadd.f32 %v3325, %v3449
        %v3451 = vpop.f32.mrb[0].mxu0
        %v3452 = vpop.f32.mrb[0].mxu0
        %v3453 = vadd.f32 %v3325, %v3452
        %v3454 = vpop.f32.mrb[0].mxu0
        %3455 = vmatprep.mubr.bf16.mxu0 0
        %3456 = vmatmul.mubr.bf16.gmra.mrb[0].mxu0 %v3318
        %v3457 = vpop.f32.mrb[0].mxu0
        %v3458 = vadd.f32 %v3325, %v3457
        %v3459 = vpop.f32.mrb[0].mxu0
        %v3460 = vpop.f32.mrb[0].mxu0
        %v3461 = vadd.f32 %v3325, %v3460
        %v3462 = vpop.f32.mrb[0].mxu0
        %3463 = vmatprep.mubr.bf16.mxu0 0
        %3464 = vmatmul.mubr.bf16.gmra.mrb[0].mxu0 %v3319
        %v3465 = vpop.f32.mrb[0].mxu0
        %v3466 = vadd.f32 %v3325, %v3465
        %v3467 = vpop.f32.mrb[0].mxu0
        %v3468 = vpop.f32.mrb[0].mxu0
        %v3469 = vadd.f32 %v3325, %v3468
        %v3470 = vpop.f32.mrb[0].mxu0
        %3471 = vdwg.mxu0
        %v3472 = vadd.f32 %v1237, %v3410
        %v3473 = vadd.f32 %v1238, %v3413
        %v3474 = vadd.f32 %v1239, %v3418
        %v3475 = vadd.f32 %v1240, %v3421
        %v3476 = vadd.f32 %v1241, %v3426
        %v3477 = vadd.f32 %v1242, %v3429
        %v3478 = vadd.f32 %v1243, %v3434
        %v3479 = vadd.f32 %v1244, %v3437
        %v3480 = vadd.f32 %v1245, %v3442
        %v3481 = vadd.f32 %v1246, %v3445
        %v3482 = vadd.f32 %v1247, %v3450
        %v3483 = vadd.f32 %v1248, %v3453
        %v3484 = vadd.f32 %v1249, %v3458
        %v3485 = vadd.f32 %v1250, %v3461
        %v3486 = vadd.f32 %v1251, %v3466
        %v3487 = vadd.f32 %v1252, %v3469
        %3488 = vst [vmem:[#allocation2] sm:$0xff] %v3472
        %3489 = vst [vmem:[#allocation2 + $0x8] sm:$0xff] %v3473
        %3490 = vst [vmem:[#allocation2 + $0x10] sm:$0xff] %v3474
        %3491 = vst [vmem:[#allocation2 + $0x18] sm:$0xff] %v3475
        %3492 = vst [vmem:[#allocation2 + $0x20] sm:$0xff] %v3476
        %3493 = vst [vmem:[#allocation2 + $0x28] sm:$0xff] %v3477
        %3494 = vst [vmem:[#allocation2 + $0x30] sm:$0xff] %v3478
        %3495 = vst [vmem:[#allocation2 + $0x38] sm:$0xff] %v3479
        %3496 = vst [vmem:[#allocation2 + $0x40] sm:$0xff] %v3480
        %3497 = vst [vmem:[#allocation2 + $0x48] sm:$0xff] %v3481
        %3498 = vst [vmem:[#allocation2 + $0x50] sm:$0xff] %v3482
        %3499 = vst [vmem:[#allocation2 + $0x58] sm:$0xff] %v3483
        %3500 = vst [vmem:[#allocation2 + $0x60] sm:$0xff] %v3484
        %3501 = vst [vmem:[#allocation2 + $0x68] sm:$0xff] %v3485
        %3502 = vst [vmem:[#allocation2 + $0x70] sm:$0xff] %v3486
        %3503 = vst [vmem:[#allocation2 + $0x78] sm:$0xff] %v3487
        %p3504 = scmp.eq.s32.totalorder %s42, 2
        // Predicated region
        $region97: #{tpu_custom_call.1} parent=75 // pred_check
          %p3505 = pneg %p3504
        $region98: #{tpu_custom_call.1} parent=75 // pred_check_branch
          %3507 = sbr.rel (%p3505) target = $region100
        $region99: #{tpu_custom_call.1} parent=75 // pred_region
          %3508 = vst [vmem:[%s746] sm:$0xff] %v3472
          %3509 = vst [vmem:[%s746 + $0x8] sm:$0xff] %v3473
          %3510 = vst [vmem:[%s746 + $0x10] sm:$0xff] %v3474
          %3511 = vst [vmem:[%s746 + $0x18] sm:$0xff] %v3475
          %3512 = vst [vmem:[%s746 + $0x20] sm:$0xff] %v3476
          %3513 = vst [vmem:[%s746 + $0x28] sm:$0xff] %v3477
          %3514 = vst [vmem:[%s746 + $0x30] sm:$0xff] %v3478
          %3515 = vst [vmem:[%s746 + $0x38] sm:$0xff] %v3479
          %3516 = vst [vmem:[%s746 + $0x40] sm:$0xff] %v3480
          %3517 = vst [vmem:[%s746 + $0x48] sm:$0xff] %v3481
          %3518 = vst [vmem:[%s746 + $0x50] sm:$0xff] %v3482
          %3519 = vst [vmem:[%s746 + $0x58] sm:$0xff] %v3483
          %3520 = vst [vmem:[%s746 + $0x60] sm:$0xff] %v3484
          %3521 = vst [vmem:[%s746 + $0x68] sm:$0xff] %v3485
          %3522 = vst [vmem:[%s746 + $0x70] sm:$0xff] %v3486
          %3523 = vst [vmem:[%s746 + $0x78] sm:$0xff] %v3487
        $region100: #{tpu_custom_call.1} parent=75 // pred_fallthru
          _
        %s3524 = sand.u32 %s421, 1
        %s3525 = scalar_lea.sflag [#allocation7], %s3524
        %s3526 = sand.u32 %s421, 1
        %s3527 = smul.addr %s3526, 128
        %s3528 = scalar_lea.vmem [#allocation13], %s3527
        // Predicated region
        $region101: #{tpu_custom_call.1} parent=75 // pred_check
          %p3529 = pneg %p431
        $region102: #{tpu_custom_call.1} parent=75 // pred_check_branch
          %3531 = sbr.rel (%p3529) target = $region104
        $region103: #{tpu_custom_call.1} parent=75 // pred_region
          %s3533 = ssub.s32 2048, 2048
          %3534 = vsyncadd %s3525, %s3533
          %s3535 = smul.addr %s41, 16
          %s3536 = smul.addr %s3535, 128
          %s3537 = scalar_lea.hbm %s14, %s3536
          %s3538 = sshll.u32 %s3528, 4
          %s3539 = int_to_ptr.vmem [resolvable:$true] %s3538
          %3544 = dma.vmem_to_hbm [thread:$0]  %s3539, 2048, %s3537, %s3525, 128, 128, 8
        $region104: #{tpu_custom_call.1} parent=75 // pred_fallthru
          _
      $region76: #{tpu_custom_call.1} parent=5 // pred_fallthru
        _
      %p3545 = scmp.le.s32.totalorder 2, %s32
      // Predicated region
      $region105: #{tpu_custom_call.1} parent=5 // pred_check
        %p3546 = pneg %p3545
      $region106: #{tpu_custom_call.1} parent=5 // pred_check_branch
        %3548 = sbr.rel (%p3546) target = $region108
      $region107: #{tpu_custom_call.1} parent=5 // pred_region
        %s3549 = ssub.s32 %s32, 2
        // Predicated region
        $region109: #{tpu_custom_call.1} parent=107 // pred_check
          %p3550 = pneg %p437
        $region110: #{tpu_custom_call.1} parent=107 // pred_check_branch
          %3552 = sbr.rel (%p3550) target = $region112
        $region111: #{tpu_custom_call.1} parent=107 // pred_region
          %s3553 = sand.u32 %s422, 1
          %s3554 = scalar_lea.sflag [#allocation7], %s3553
          %s3555 = sand.u32 %s422, 1
          %s3556 = smul.addr %s3555, 128
          %s3557 = scalar_lea.vmem [#allocation13], %s3556
          %3558 = dma.done %s3554, 2048
        $region112: #{tpu_custom_call.1} parent=107 // pred_fallthru
          _
      $region108: #{tpu_custom_call.1} parent=5 // pred_fallthru
        _
    $region6: #{tpu_custom_call.1} parent=1 // loop_footer
      %s36 = sadd.s32 1, %s32
    $region7: #{tpu_custom_call.1} parent=1 // loop_footer_branch
      %31 = sbr.rel target = $region3
    $region8: #{tpu_custom_call.1} parent=1 // loop_exit
      _
    %3559 = vsyncpa [#allocation6], 1
    %s3560 = scalar_lea.sflag [#allocation6], 1
    %3561 = vsyncpa %s3560, 1
    %3562 = vsyncpa [#allocation9], 1
    %s3563 = scalar_lea.sflag [#allocation9], 1
    %3564 = vsyncpa %s3563, 1
    %3565 = vsyncpa [#allocation12], 1
    %s3566 = scalar_lea.sflag [#allocation12], 1
    %3567 = vsyncpa %s3566, 1
    %3568 = vsyncpa [#allocation7], 1
    %s3569 = scalar_lea.sflag [#allocation7], 1
    %3570 = vsyncpa %s3569, 1

</llo_original>
